<compile_context>
chip_gen: v6e
topology: v6e:2x2x1
jax: 0.10.0
libtpu: 0.0.40
codegen_flags: <defaults>
</compile_context>

<pallas_src>
import functools
import math

import jax
import jax.numpy as jnp
from jax.experimental import pallas as pl
from jax.experimental.pallas import tpu as pltpu

BN_SCALE = 1.0 / math.sqrt(1.0 + 1e-5)   # eval-mode BatchNorm with default stats

_LANE = 128
_X_TILE_BYTES = 6 * 1024 * 1024          # cap on the bf16 x-tile per grid step
_OUT_TILE_BYTES = 4 * 1024 * 1024        # cap on the f32 out-tile per grid step
_TM_MAX = 4096
_VMEM_LIMIT = 32 * 1024 * 1024


def _round_up(v, m):
    return ((v + m - 1) // m) * m


# ----------------------------------------------------------------------------------
# Pallas kernels
# ----------------------------------------------------------------------------------
def _gemm_bias_act_kernel(x_ref, w_ref, b_ref, o_ref, *, relu):
    """(TM, K) @ (K, Np) on the MXU, + bias (+ReLU) epilogue, dense (TM, Np) store."""
    acc = jnp.dot(x_ref[...], w_ref[...], preferred_element_type=jnp.float32)
    acc = acc + b_ref[...]
    if relu:
        acc = jnp.maximum(acc, 0.0)
    o_ref[...] = acc.astype(o_ref.dtype)


def _corr_kernel(a_ref, b_ref, o_ref, *, num_disp):
    """SpatialCorrelationSampler(kernel_size=1, patch=(1, num_disp)):
       out[h, w, d] = sum_c a[h, w, c] * b[h, w + d - max_disp, c].
       TODO(synk): no patch normalization (matches spatial_correlation_sampler default)."""
    a = a_ref[0]                                    # (H, W, C)
    w = a.shape[1]
    vals = [jnp.sum(a * b_ref[0, :, d:d + w, :], axis=-1) for d in range(num_disp)]
    o_ref[0] = jnp.stack(vals, axis=-1).astype(o_ref.dtype)


# ----------------------------------------------------------------------------------
# GEMM / conv / correlation wrappers
# ----------------------------------------------------------------------------------
def _fused_gemm(x2d, w2d, bias, relu):
    """(M, K) @ (K, Cout) + bias (+ReLU) -> (M, Cout) f32.  bf16 MXU, f32 accumulate."""
    M, K = x2d.shape
    Cout = w2d.shape[1]
    Np = _round_up(Cout, _LANE)                     # lane-dense output stores

    tm = min(_TM_MAX,
             max(8, (_X_TILE_BYTES // (2 * K)) // 8 * 8),
             max(8, (_OUT_TILE_BYTES // (4 * Np)) // 8 * 8),
             _round_up(M, 8))
    Mp = _round_up(M, tm)

    xb = x2d.astype(jnp.bfloat16)
    if Mp != M:
        xb = jnp.pad(xb, ((0, Mp - M), (0, 0)))
    wb = w2d.astype(jnp.bfloat16)
    bb = bias.astype(jnp.float32).reshape(1, Cout)
    if Np != Cout:
        wb = jnp.pad(wb, ((0, 0), (0, Np - Cout)))
        bb = jnp.pad(bb, ((0, 0), (0, Np - Cout)))

    out = pl.pallas_call(
        functools.partial(_gemm_bias_act_kernel, relu=relu),
        out_shape=jax.ShapeDtypeStruct((Mp, Np), jnp.float32),
        grid_spec=pltpu.PrefetchScalarGridSpec(
            num_scalar_prefetch=0,
            grid=(Mp // tm,),
            in_specs=[
                pl.BlockSpec((tm, K), lambda i: (i, 0)),
                pl.BlockSpec((K, Np), lambda i: (0, 0)),    # resident weight block
                pl.BlockSpec((1, Np), lambda i: (0, 0)),
            ],
            out_specs=pl.BlockSpec((tm, Np), lambda i: (i, 0)),
        ),
        compiler_params=pltpu.CompilerParams(
            dimension_semantics=("parallel",),
            vmem_limit_bytes=_VMEM_LIMIT),
    )(xb, wb, bb)
    return out[:M, :Cout]


@functools.partial(jax.jit, static_argnames=("pad", "dilation", "relu"))
def conv2d(x, w, bias, *, pad=0, dilation=1, relu=False):
    """stride-1 Conv2d (optionally dilated) + bias (+ReLU).  x: NHWC f32,
       w: (KH, KW, Cin, Cout) f32 (BN scale already folded in for convbn layers)."""
    N, H, W, Cin = x.shape
    KH, KW, _, Cout = w.shape
    Ho = H + 2 * pad - dilation * (KH - 1)
    Wo = W + 2 * pad - dilation * (KW - 1)

    xp = x.astype(jnp.bfloat16)
    if pad:
        xp = jnp.pad(xp, ((0, 0), (pad, pad), (pad, pad), (0, 0)))

    if KH == 1 and KW == 1:
        cols = xp.reshape(N * Ho * Wo, Cin)
    else:
        taps = [xp[:, kh * dilation:kh * dilation + Ho,
                      kw * dilation:kw * dilation + Wo, :]
                for kh in range(KH) for kw in range(KW)]
        cols = jnp.concatenate(taps, axis=-1).reshape(N * Ho * Wo, KH * KW * Cin)

    w2d = w.reshape(KH * KW * Cin, Cout)
    out = _fused_gemm(cols, w2d, bias, relu)
    return out.reshape(N, Ho, Wo, Cout)


def conv_transpose2d(x, w, bias, *, stride=1, pad=0, relu=False):
    """ConvTranspose2d as (input dilation + full conv).  `w` is stored as the
       equivalent forward-conv weight (KH, KW, Cin, Cout), i.e. already flipped.
       TODO(synk): a real PyTorch checkpoint port must flip + transpose the weight."""
    N, H, W, Cin = x.shape
    K = w.shape[0]
    if stride > 1:
        xd = jnp.zeros((N, (H - 1) * stride + 1, (W - 1) * stride + 1, Cin), x.dtype)
        xd = xd.at[:, ::stride, ::stride, :].set(x)
    else:
        xd = x
    return conv2d(xd, w, bias, pad=K - 1 - pad, dilation=1, relu=relu)


@functools.partial(jax.jit, static_argnames=("max_disp",))
def correlation(a, b, max_disp=8):
    """a, b: NHWC f32.  Returns (N, H, W, 2*max_disp+1)."""
    N, H, W, C = a.shape
    D = 2 * max_disp + 1
    bp = jnp.pad(b, ((0, 0), (0, 0), (max_disp, max_disp), (0, 0)))
    return pl.pallas_call(
        functools.partial(_corr_kernel, num_disp=D),
        out_shape=jax.ShapeDtypeStruct((N, H, W, D), jnp.float32),
        grid_spec=pltpu.PrefetchScalarGridSpec(
            num_scalar_prefetch=0,
            grid=(N,),
            in_specs=[
                pl.BlockSpec((1, H, W, C), lambda n: (n, 0, 0, 0)),
                pl.BlockSpec((1, H, W + 2 * max_disp, C), lambda n: (n, 0, 0, 0)),
            ],
            out_specs=pl.BlockSpec((1, H, W, D), lambda n: (n, 0, 0, 0)),
        ),
        compiler_params=pltpu.CompilerParams(
            dimension_semantics=("arbitrary",),
            vmem_limit_bytes=_VMEM_LIMIT),
    )(a, bp)


# ----------------------------------------------------------------------------------
# JAX glue: resize / pooling (PyTorch-compatible semantics)
# ----------------------------------------------------------------------------------
def avg_pool(x, k):
    N, H, W, C = x.shape
    return x.reshape(N, H // k, k, W // k, k, C).mean(axis=(2, 4))


def upsample_nearest(x, size=None, scale=None):
    N, H, W, C = x.shape
    if size is None:
        Ho, Wo = int(H * scale), int(W * scale)
    else:
        Ho, Wo = int(size[0]), int(size[1])
    hi = (jnp.arange(Ho) * H) // Ho
    wi = (jnp.arange(Wo) * W) // Wo
    return x[:, hi][:, :, wi]


def upsample_bilinear(x, size):
    # mode='bilinear', align_corners=False
    N, H, W, C = x.shape
    Ho, Wo = int(size[0]), int(size[1])

    def coords(out_n, in_n):
        c = (jnp.arange(out_n, dtype=jnp.float32) + 0.5) * (in_n / out_n) - 0.5
        c = jnp.clip(c, 0.0, in_n - 1)
        lo = jnp.floor(c).astype(jnp.int32)
        hi = jnp.minimum(lo + 1, in_n - 1)
        return lo, hi, c - lo

    h0, h1, hf = coords(Ho, H)
    w0, w1, wf = coords(Wo, W)
    hf = hf[None, :, None, None]
    wf = wf[None, None, :, None]
    top = x[:, h0][:, :, w0] * (1 - wf) + x[:, h0][:, :, w1] * wf
    bot = x[:, h1][:, :, w0] * (1 - wf) + x[:, h1][:, :, w1] * wf
    return top * (1 - hf) + bot * hf


# ----------------------------------------------------------------------------------
# Deterministic parameter construction (mirrors the nn.Module __init__)
# ----------------------------------------------------------------------------------
_KEY = jax.random.PRNGKey(0)
_COUNTER = [0]


def _conv_w(kh, kw, cin, cout, scale=1.0):
    _COUNTER[0] += 1
    key = jax.random.fold_in(_KEY, _COUNTER[0])
    std = math.sqrt(2.0 / (kh * kw * cin))
    return jax.random.normal(key, (kh, kw, cin, cout), jnp.float32) * (std * scale)


def make_convbn(cin, cout, k, pad, dil):
    # BN (eval mode, default stats) folded into the weight: scale=1/sqrt(1+eps), shift=0
    p = dil if dil > 1 else pad
    return dict(w=_conv_w(k, k, cin, cout, BN_SCALE),
                b=jnp.zeros((cout,), jnp.float32), pad=p, dil=dil)


def make_deconvbn(cin, cout, k, stride, pad, dil):
    return dict(w=_conv_w(k, k, cin, cout, BN_SCALE),
                b=jnp.zeros((cout,), jnp.float32), stride=stride, pad=pad)


def make_conv(cin, cout, k=1):      # plain nn.Conv2d (bias=True, stride 1, pad 0)
    return dict(w=_conv_w(k, k, cin, cout),
                b=jnp.zeros((cout,), jnp.float32), pad=0, dil=1)


def make_deconv(cin, cout, k):      # plain nn.ConvTranspose2d (bias=True, stride 1)
    return dict(w=_conv_w(k, k, cin, cout),
                b=jnp.zeros((cout,), jnp.float32), stride=1, pad=0)


def make_c2du(cin, cout, k):
    return dict(
        c1=make_convbn(cin, cout, k, 0, 1),
        c2=make_convbn(cout, cout, k, 0, 1),
        cd3c=make_convbn(cout, cout, k, 0, 1),
        cd3d=make_deconvbn(cout, cout, k, 1, 0, 1),
        d4=make_deconvbn(cout, cout, k, 1, 0, 1),
        d5=make_deconvbn(cout, cout, k, 1, 0, 1),
    )


def make_piramid():
    return dict(
        backbone=dict(c0=make_conv(3, 64), c1=make_conv(64, 256),
                      c2=make_conv(256, 512), c3=make_conv(512, 1024),
                      c4=make_conv(512, 2048)),
        b0=[make_convbn(64, 32, 1, 0, 1) for _ in range(4)],
        b1=[make_convbn(512, 32, 1, 0, 1) for _ in range(3)],
    )


def make_dsnet(labels=8):
    max_disp = 8
    return dict(
        piramid=make_piramid(),
        ba1=make_convbn(3, 1, 5, 0, 2),
        ba2=make_convbn(3, 1, 5, 0, 2),
        ba3=make_convbn(3, 1, 5, 0, 2),
        corrConv2d=make_conv(2 * max_disp + 1, 128),
        conv1d_1=make_conv(2048 * 2, 64),
        c2du1=make_c2du(64, 32, 3),
        c2du2=make_c2du(32, 32, 3), c2du2_t=make_deconv(32, labels, 3),
        c2du3=make_c2du(32, 128, 3),
        c2du4=make_c2du(256, 64, 3),
        conv1d_2=make_conv(65, 64),
        c2du5=make_c2du(64, 64, 5), c2du5_t=make_deconv(64, 1, 5),
        conv1d_3=make_conv(96, 64),
        c2du6=make_c2du(64, 64, 5),
        conv1d_4=make_conv(320, 64),
        c2dtba1=make_deconvbn(64, 32, 3, 2, 0, 1),
        conv1d_5=make_conv(96, 32),
        c2dtba2=make_deconvbn(32, 32, 3, 2, 0, 1),
        conv1d_6=make_conv(33, 32),
        c2du7=make_c2du(32, 32, 5), c2du7_t=make_deconv(32, labels, 5),
        conv1d_9=make_conv(256, 128),
        c2du8=make_c2du(32, 64, 3),
        c2du9=make_c2du(256, 64, 3),
        conv1d_8=make_conv(65, 64),
        c2du10=make_c2du(64, 64, 5), c2du10_t=make_deconv(64, 1, 5),
    )


# ----------------------------------------------------------------------------------
# Layer application helpers
# ----------------------------------------------------------------------------------
def apply_convbn(m, x, relu=True):
    return conv2d(x, m['w'], m['b'], pad=m['pad'], dilation=m['dil'], relu=relu)


def apply_deconvbn(m, x, relu=True):
    return conv_transpose2d(x, m['w'], m['b'], stride=m['stride'], pad=m['pad'],
                            relu=relu)


def apply_conv(m, x, relu=False):
    return conv2d(x, m['w'], m['b'], pad=m['pad'], dilation=m['dil'], relu=relu)


def apply_deconv(m, x):
    return conv_transpose2d(x, m['w'], m['b'], stride=m['stride'], pad=m['pad'])


def apply_c2du(m, x, last=True):
    x1 = apply_convbn(m['c1'], x)
    x2 = apply_convbn(m['c2'], x1)
    t = apply_deconvbn(m['cd3d'], apply_convbn(m['cd3c'], x2))
    x = x2 + t
    x = apply_deconvbn(m['d4'], x)
    x = x1 + x
    if not last:
        return x
    return apply_deconvbn(m['d5'], x)


def apply_backbone(m, x):
    # TODO(synk): synthetic densenet121 stand-in (see header comment).
    a0 = apply_conv(m['c0'], x, relu=True)                       # 64   @ H
    a1 = apply_conv(m['c1'], avg_pool(a0, 2), relu=True)         # 256  @ H/2
    a2 = apply_conv(m['c2'], a1, relu=True)                      # 512  @ H/2
    a3 = apply_conv(m['c3'], avg_pool(a2, 2), relu=True)         # 1024 @ H/4
    a4 = apply_conv(m['c4'], avg_pool(a2, 4), relu=True)         # 2048 @ H/8
    return a0, a1, a2, a3, a4


def apply_piramid(m, x):
    o0, o1, o2, o3, o4 = apply_backbone(m['backbone'], x)

    def branch(bm, feat, pool):
        v = avg_pool(feat, pool)
        v = apply_convbn(bm, v, relu=True)
        return upsample_bilinear(v, (feat.shape[1], feat.shape[2]))

    b0 = jnp.concatenate([branch(m['b0'][i], o0, k)
                          for i, k in enumerate((64, 32, 16, 8))], axis=-1)
    b1 = jnp.concatenate([branch(m['b1'][i], o2, k)
                          for i, k in enumerate((32, 16, 8))], axis=-1)
    return o0, o1, o2, o3, o4, b0, b1


# ----------------------------------------------------------------------------------
# dsnet forward
# ----------------------------------------------------------------------------------
def dsnet_forward(m, input_a, input_b):
    xa = jnp.transpose(input_a, (0, 2, 3, 1))     # NCHW -> NHWC
    xb = jnp.transpose(input_b, (0, 2, 3, 1))
    Hin, Win = xa.shape[1], xa.shape[2]
    na = xa.shape[0]

    # Batch the two pyramid passes (N=2) through one set of kernels.
    feats = apply_piramid(m['piramid'], jnp.concatenate([xa, xb], axis=0))
    split = lambda t: (t[:na], t[na:])
    (a0, b0), (a1, b1), (a2, b2), (a3, b3), (a4, b4), (aB0, bB0), (aB2, bB2) = \
        tuple(split(t) for t in feats)

    xleft3 = apply_convbn(m['ba3'], xa)
    xleft2 = apply_convbn(m['ba1'], xa)
    xleft1 = apply_convbn(m['ba2'], xa)

    x = jnp.concatenate((a4, b4), axis=-1)
    x = apply_conv(m['conv1d_1'], x)
    x = upsample_nearest(x, scale=2)
    x = apply_c2du(m['c2du1'], x)
    x1 = upsample_nearest(x, scale=2)

    seg = apply_c2du(m['c2du2'], x1, last=False)
    seg = apply_deconv(m['c2du2_t'], seg)
    seg_branch = upsample_nearest(seg, size=(Hin, Win))

    y = correlation(aB2, bB2, max_disp=8)
    y = apply_conv(m['corrConv2d'], y)
    y1 = apply_c2du(m['c2du3'], x1)
    y1 = upsample_bilinear(y1, (y.shape[1], y.shape[2]))
    y = jnp.concatenate((y1, y), axis=-1)
    y = apply_c2du(m['c2du4'], y)

    y2 = upsample_nearest(y, scale=8)
    xl2 = upsample_bilinear(xleft2, (y2.shape[1], y2.shape[2]))
    disp_out = jnp.concatenate((y2, xl2), axis=-1)
    disp_out = apply_conv(m['conv1d_2'], disp_out)
    disp_out = apply_c2du(m['c2du5'], disp_out, last=False)
    disp_out = apply_deconv(m['c2du5_t'], disp_out)
    disp_out = upsample_bilinear(disp_out, (Hin, Win))

    x = upsample_nearest(x, scale=4)
    y3 = upsample_nearest(y, scale=2)
    x = upsample_bilinear(x, (y3.shape[1], y3.shape[2]))
    x = jnp.concatenate((x, y3), axis=-1)
    x = apply_conv(m['conv1d_3'], x)
    x = apply_c2du(m['c2du6'], x)
    x = upsample_bilinear(x, (a1.shape[1], a1.shape[2]))
    x = jnp.concatenate((x, a1), axis=-1)
    x = apply_conv(m['conv1d_4'], x)
    x = apply_deconvbn(m['c2dtba1'], x)
    x3 = x
    x = upsample_bilinear(x, (a0.shape[1], a0.shape[2]))
    x = jnp.concatenate((x, a0), axis=-1)
    x = apply_conv(m['conv1d_5'], x)
    x = apply_deconvbn(m['c2dtba2'], x)
    xl1 = upsample_bilinear(xleft1, (x.shape[1], x.shape[2]))
    x = jnp.concatenate((x, xl1), axis=-1)
    x = apply_conv(m['conv1d_6'], x)
    seg2 = apply_c2du(m['c2du7'], x, last=False)
    seg2 = apply_deconv(m['c2du7_t'], seg2)
    seg_branch2 = upsample_bilinear(seg2, (Hin, Win))

    y4 = jnp.concatenate((aB0, bB0), axis=-1)
    y4 = apply_conv(m['conv1d_9'], y4)
    y = upsample_nearest(y, scale=4)
    y = upsample_bilinear(y, (y4.shape[1], y4.shape[2]))
    y = jnp.concatenate((y4, y), axis=-1)
    y5 = apply_c2du(m['c2du8'], x3)
    y = upsample_bilinear(y, (y5.shape[1], y5.shape[2]))
    y = jnp.concatenate((y5, y), axis=-1)
    y = apply_c2du(m['c2du9'], y)
    y = upsample_nearest(y, scale=2)
    xl3 = upsample_bilinear(xleft3, (y.shape[1], y.shape[2]))
    disp_out2 = jnp.concatenate((y, xl3), axis=-1)
    disp_out2 = apply_conv(m['conv1d_8'], disp_out2)
    disp_out2 = apply_c2du(m['c2du10'], disp_out2, last=False)
    disp_out2 = apply_deconv(m['c2du10_t'], disp_out2)
    disp_out2 = upsample_bilinear(disp_out2, (Hin, Win))
    disp_out2 = 0.8 * disp_out2 + 0.2 * disp_out

    to_nchw = lambda t: jnp.transpose(t, (0, 3, 1, 2))
    return (to_nchw(seg_branch), to_nchw(disp_out),
            to_nchw(seg_branch2), to_nchw(disp_out2))


# ----------------------------------------------------------------------------------
if __name__ == "__main__":
    params = make_dsnet(labels=8)

    key = jax.random.PRNGKey(0)
    ka, kb = jax.random.split(key)
    # Smallest spatial size compatible with the hard-coded 64x64 avg-pool branch.
    input_a = jax.random.normal(ka, (1, 3, 64, 64), jnp.float32)
    input_b = jax.random.normal(kb, (1, 3, 64, 64), jnp.float32)

    seg_branch, disp_out, seg_branch2, disp_out2 = jax.block_until_ready(
        dsnet_forward(params, input_a, input_b))

    assert seg_branch.shape == (1, 8, 64, 64)
    assert disp_out.shape == (1, 1, 64, 64)
    assert seg_branch2.shape == (1, 8, 64, 64)
    assert disp_out2.shape == (1, 1, 64, 64)
    assert all(bool(jnp.all(jnp.isfinite(t))) for t in
               (seg_branch, disp_out, seg_branch2, disp_out2))
    print("KERNEL_OK")
</pallas_src>

<mosaic_0001>
module attributes {stable_mosaic.version = 11 : i64} {
  func.func @_gemm_bias_act_kernel(%arg0: i32, %arg1: memref<4096x3xbf16, #tpu.memory_space<vmem>>, %arg2: memref<3x128xbf16, #tpu.memory_space<vmem>>, %arg3: memref<1x128xf32, #tpu.memory_space<vmem>>, %arg4: memref<4096x128xf32, #tpu.memory_space<vmem>>) attributes {dimension_semantics = [#tpu.dimension_semantics<parallel>], iteration_bounds = array<i64: 2>, scalar_prefetch = 0 : i64, scratch_operands = 0 : i64, tpu.core_type = #tpu.core_type<tc>, window_params = [{transform_indices = @transform_0, window_bounds = array<i64: 4096, 3>}, {pipeline_mode = #tpu.pipeline_mode<synchronous>, transform_indices = @transform_1, window_bounds = array<i64: 3, 128>}, {pipeline_mode = #tpu.pipeline_mode<synchronous>, transform_indices = @transform_2, window_bounds = array<i64: 1, 128>}, {transform_indices = @transform_3, window_bounds = array<i64: 4096, 128>}]} {
    %c0 = arith.constant 0 : index
    %c0_0 = arith.constant 0 : index
    %0 = vector.load %arg1[%c0, %c0_0] : memref<4096x3xbf16, #tpu.memory_space<vmem>>, vector<4096x3xbf16>
    %c0_1 = arith.constant 0 : index
    %c0_2 = arith.constant 0 : index
    %1 = vector.load %arg2[%c0_1, %c0_2] : memref<3x128xbf16, #tpu.memory_space<vmem>>, vector<3x128xbf16>
    %cst = arith.constant dense<0.000000e+00> : vector<4096x128xf32>
    %2 = tpu.matmul %0, %1, %cst {dimension_numbers = #tpu.dot_dimension_numbers<[1], [0], [0], [1], [0, 0, 1, 1], [], []>} : vector<4096x3xbf16>, vector<3x128xbf16>, vector<4096x128xf32> -> vector<4096x128xf32>
    %c0_3 = arith.constant 0 : index
    %c0_4 = arith.constant 0 : index
    %3 = vector.load %arg3[%c0_3, %c0_4] : memref<1x128xf32, #tpu.memory_space<vmem>>, vector<1x128xf32>
    %4 = vector.broadcast %3 : vector<1x128xf32> to vector<4096x128xf32>
    %5 = arith.addf %2, %4 : vector<4096x128xf32>
    %cst_5 = arith.constant 0.000000e+00 : f32
    %6 = vector.broadcast %cst_5 : f32 to vector<4096x128xf32>
    %7 = arith.maximumf %5, %6 : vector<4096x128xf32>
    %c0_6 = arith.constant 0 : index
    %c0_7 = arith.constant 0 : index
    %8 = vector.load %arg4[%c0_6, %c0_7] : memref<4096x128xf32, #tpu.memory_space<vmem>>, vector<4096x128xf32>
    tpu.vector_store %arg4[%c0_6, %c0_7], %7 {strides = array<i32>} : memref<4096x128xf32, #tpu.memory_space<vmem>>, vector<4096x128xf32>,
    return
  }
  func.func @transform_0(%arg0: i32) -> (i32, i32) {
    %c0_i32 = arith.constant 0 : i32
    %c0_i32_0 = arith.constant 0 : i32
    return %arg0, %c0_i32 : i32, i32
  }
  func.func @transform_1(%arg0: i32) -> (i32, i32) {
    %c0_i32 = arith.constant 0 : i32
    %c0_i32_0 = arith.constant 0 : i32
    %c0_i32_1 = arith.constant 0 : i32
    return %c0_i32, %c0_i32_0 : i32, i32
  }
  func.func @transform_2(%arg0: i32) -> (i32, i32) {
    %c0_i32 = arith.constant 0 : i32
    %c0_i32_0 = arith.constant 0 : i32
    %c0_i32_1 = arith.constant 0 : i32
    return %c0_i32, %c0_i32_0 : i32, i32
  }
  func.func @transform_3(%arg0: i32) -> (i32, i32) {
    %c0_i32 = arith.constant 0 : i32
    %c0_i32_0 = arith.constant 0 : i32
    return %arg0, %c0_i32 : i32, i32
  }
}

</mosaic_0001>

<llo_original>
// kernel: conv2d.1
$region0: #{conv2d.1}
  #allocation0 [shape = 'u32[]', space=smem, size = 0x4, offset = 0x4, fixed_abs, tag = 'smem constant byte address 0x4 - core index']
  #allocation1 [shape = 'u32[144,128]{1,0:T(1,128)}', space=vmem, size = 0x12000, scoped, tag = 'internal scratch']
  %s0 = inlined_call_operand.vmem [shape: bf16[8192,3], index: 0, kind: input, shape index: {}]
  %s1 = inlined_call_operand.vmem [shape: bf16[3,128], index: 1, kind: input, shape index: {}]
  %s2 = inlined_call_operand.vmem [shape: f32[1,128], index: 2, kind: input, shape index: {}]
  %s3 = inlined_call_operand.hbm [shape: f32[8192,128], index: 3, kind: output, shape index: {}]
  %s4 = sld [smem:[#allocation0]]
  $region45: #{conv2d.1} parent=0
    _
  %s6 = ssub.s32 1, %s4
  %s7 = scalar_select 0, %s6, %s4
  $region1: #{conv2d.1} parent=0
    #allocation2 [shape = 'u8[4194304]{0}', space=vmem, size = 0x400000, scoped, tag = 'output window, operand 0']
    #allocation3 [shape = 's32[2]{0}', space=sflag, size = 0x8, scoped, tag = 'scoped memory for conv2d.1']
    %8 = vsyncpa [#allocation3], 0
    %s9 = scalar_lea.sflag [#allocation3], 1
    %10 = vsyncpa %s9, 0
    loop: start=0, step=1, limit=4
    $region2: #{conv2d.1} parent=1 // loop_pre_header
      _
    $region3: #{conv2d.1} parent=1 // loop_header
      %s12 = sphi 0, %s16
      %p13 = scmp.ge.s32.totalorder %s12, 4
      %s22 = sphi 0, %s24
      %s25 = sphi 0, %s22
      %s26 = sphi 0, %s25
      %s42 = sphi 0, %s26
      %s46 = sphi 0, %s46
      %s48 = sphi 0, %s46
      %s49 = sphi 0, %s48
      %s63 = sphi 0, %s49
      %s67 = sphi 0, %s67
      %s69 = sphi 0, %s67
      %s70 = sphi 0, %s69
      %s84 = sphi 0, %s70
      %s90 = sphi 0, %s92
      %s93 = sphi 0, %s90
      %s94 = sphi 0, %s93
      %s110 = sphi 0, %s94
    $region4: #{conv2d.1} parent=1 // loop_header_branch
      %15 = sbr.rel (%p13) target = $region8
    $region5: #{conv2d.1} parent=1 // loop_body
      %s17 = ssub.s32 %s12, 1
      %s18 = ssub.s32 %s12, 2
      %s19 = sadd.s32 %s12, 1
      %s20 = ssub.s32 %s12, %s19
      %p21 = scmp.eq.s32.totalorder %s20, 0
      %s23 = sadd.s32 %s22, 1
      %s24 = scalar_select %p21, %s22, %s23
      %p27 = pneg %p21
      %p28 = scmp.eq.s32.totalorder %s12, 1
      %p29 = por %p27, %p28
      %p30 = scmp.ne.s32.totalorder %s22, %s25
      %p31 = scmp.eq.s32.totalorder %s12, 0
      %p32 = por %p30, %p31
      %p33 = scmp.ne.s32.totalorder %s22, %s25
      %p34 = scmp.eq.s32.totalorder %s17, 1
      %p35 = por %p33, %p34
      %p36 = scmp.ne.s32.totalorder %s25, %s26
      %p37 = scmp.eq.s32.totalorder %s17, 0
      %p38 = por %p36, %p37
      %p39 = scmp.ne.s32.totalorder %s25, %s26
      %p40 = scmp.eq.s32.totalorder %s18, 1
      %p41 = por %p39, %p40
      %p43 = scmp.ne.s32.totalorder %s26, %s42
      %p44 = scmp.eq.s32.totalorder %s18, 0
      %p45 = por %p43, %p44
      %s47 = sadd.s32 %s46, 1
      %p50 = scmp.eq.s32.totalorder %s12, 1
      %p51 = scmp.ne.s32.totalorder %s46, %s48
      %p52 = scmp.eq.s32.totalorder %s12, 0
      %p53 = por %p51, %p52
      %p54 = scmp.ne.s32.totalorder %s46, %s48
      %p55 = scmp.eq.s32.totalorder %s17, 1
      %p56 = por %p54, %p55
      %p57 = scmp.ne.s32.totalorder %s48, %s49
      %p58 = scmp.eq.s32.totalorder %s17, 0
      %p59 = por %p57, %p58
      %p60 = scmp.ne.s32.totalorder %s48, %s49
      %p61 = scmp.eq.s32.totalorder %s18, 1
      %p62 = por %p60, %p61
      %p64 = scmp.ne.s32.totalorder %s49, %s63
      %p65 = scmp.eq.s32.totalorder %s18, 0
      %p66 = por %p64, %p65
      %s68 = sadd.s32 %s67, 1
      %p71 = scmp.eq.s32.totalorder %s12, 1
      %p72 = scmp.ne.s32.totalorder %s67, %s69
      %p73 = scmp.eq.s32.totalorder %s12, 0
      %p74 = por %p72, %p73
      %p75 = scmp.ne.s32.totalorder %s67, %s69
      %p76 = scmp.eq.s32.totalorder %s17, 1
      %p77 = por %p75, %p76
      %p78 = scmp.ne.s32.totalorder %s69, %s70
      %p79 = scmp.eq.s32.totalorder %s17, 0
      %p80 = por %p78, %p79
      %p81 = scmp.ne.s32.totalorder %s69, %s70
      %p82 = scmp.eq.s32.totalorder %s18, 1
      %p83 = por %p81, %p82
      %p85 = scmp.ne.s32.totalorder %s70, %s84
      %p86 = scmp.eq.s32.totalorder %s18, 0
      %p87 = por %p85, %p86
      %s88 = ssub.s32 %s12, %s19
      %p89 = scmp.eq.s32.totalorder %s88, 0
      %s91 = sadd.s32 %s90, 1
      %s92 = scalar_select %p89, %s90, %s91
      %p95 = pneg %p89
      %p96 = scmp.eq.s32.totalorder %s12, 1
      %p97 = por %p95, %p96
      %p98 = scmp.ne.s32.totalorder %s90, %s93
      %p99 = scmp.eq.s32.totalorder %s12, 0
      %p100 = por %p98, %p99
      %p101 = scmp.ne.s32.totalorder %s90, %s93
      %p102 = scmp.eq.s32.totalorder %s17, 1
      %p103 = por %p101, %p102
      %p104 = scmp.ne.s32.totalorder %s93, %s94
      %p105 = scmp.eq.s32.totalorder %s17, 0
      %p106 = por %p104, %p105
      %p107 = scmp.ne.s32.totalorder %s93, %s94
      %p108 = scmp.eq.s32.totalorder %s18, 1
      %p109 = por %p107, %p108
      %p111 = scmp.ne.s32.totalorder %s94, %s110
      %p112 = scmp.eq.s32.totalorder %s18, 0
      %p113 = por %p111, %p112
      %p114 = scmp.le.s32.totalorder 1, %s12
      %p115 = scmp.lt.s32.totalorder %s12, 3
      %p116 = pnand %p114, %p115
      %p117 = pneg %p116
      // Predicated region
      $region9: #{conv2d.1} parent=5 // pred_check
        _
      $region10: #{conv2d.1} parent=5 // pred_check_branch
        %119 = sbr.rel (%p116) target = $region12
      $region11: #{conv2d.1} parent=5 // pred_region
        %s120 = ssub.s32 %s12, 1
        // Predicated region
        $region13: #{conv2d.1} parent=11 // pred_check
          %p121 = pneg %p59
        $region14: #{conv2d.1} parent=11 // pred_check_branch
          %123 = sbr.rel (%p121) target = $region16
        $region15: #{conv2d.1} parent=11 // pred_region
          _
        $region16: #{conv2d.1} parent=11 // pred_fallthru
          _
        // Predicated region
        $region17: #{conv2d.1} parent=11 // pred_check
          %p124 = pneg %p80
        $region18: #{conv2d.1} parent=11 // pred_check_branch
          %126 = sbr.rel (%p124) target = $region20
        $region19: #{conv2d.1} parent=11 // pred_region
          _
        $region20: #{conv2d.1} parent=11 // pred_fallthru
          _
      $region12: #{conv2d.1} parent=5 // pred_fallthru
        _
      %p127 = scmp.lt.s32.totalorder %s12, 2
      // Predicated region
      $region21: #{conv2d.1} parent=5 // pred_check
        %p128 = pneg %p127
      $region22: #{conv2d.1} parent=5 // pred_check_branch
        %130 = sbr.rel (%p128) target = $region24
      $region23: #{conv2d.1} parent=5 // pred_region
        // Predicated region
        $region25: #{conv2d.1} parent=23 // pred_check
          %p131 = pneg %p32
        $region26: #{conv2d.1} parent=23 // pred_check_branch
          %133 = sbr.rel (%p131) target = $region28
        $region27: #{conv2d.1} parent=23 // pred_region
          %s134 = smul.u32 512, %s12
          %p135 = scmp.lt.s32.totalorder %s134, 1023
          %s136 = scalar_select %p135, %s134, 1023
          %s137 = smul.addr %s136, 4
          %s138 = scalar_lea.vmem %s0, %s137
          %s139 = smul.u32 512, %s12
        $region28: #{conv2d.1} parent=23 // pred_fallthru
          _
      $region24: #{conv2d.1} parent=5 // pred_fallthru
        _
      %p140 = scmp.le.s32.totalorder 1, %s12
      %p141 = scmp.lt.s32.totalorder %s12, 3
      %p142 = pnand %p140, %p141
      %p143 = pneg %p142
      // Predicated region
      $region29: #{conv2d.1} parent=5 // pred_check
        _
      $region30: #{conv2d.1} parent=5 // pred_check_branch
        %145 = sbr.rel (%p142) target = $region32
      $region31: #{conv2d.1} parent=5 // pred_region
        %s146 = ssub.s32 %s12, 1
        %s147 = smul.u32 512, %s17
        %p148 = scmp.lt.s32.totalorder %s147, 1023
        %s149 = scalar_select %p148, %s147, 1023
        %s150 = smul.addr %s149, 4
        %s151 = scalar_lea.vmem %s0, %s150
        %p152 = pneg %p38
        %p153 = pneg %p35
        %p154 = pneg %p59
        %p155 = pneg %p56
        %p156 = pneg %p80
        %p157 = pneg %p77
        %p158 = pneg %p106
        %p159 = pneg %p103
        %s160 = sand.u32 %s93, 1
        %s161 = scalar_lea.sflag [#allocation3], %s160
        %s162 = sand.u32 %s93, 1
        %s163 = smul.addr %s162, 4096
        %s164 = scalar_lea.vmem [#allocation2], %s163
        %s165 = smul.u32 512, %s17
        %p166 = scmp.lt.s32.totalorder %s165, 1023
        %s167 = scalar_select %p166, %s165, 1023
        %s168 = smul.addr %s167, 4
        %s169 = scalar_lea.vmem %s0, %s168
        %s170 = smul.u32 512, %s17
        %s171 = smul.u32 512, %s17
        %v173 = vld [vmem:[%s169] sm:$0xf]
        %v174 = vld [vmem:[%s169 + $0x4] sm:$0xf]
        %v175 = vld [vmem:[%s169 + $0x8] sm:$0xf]
        %v176 = vld [vmem:[%s169 + $0xc] sm:$0xf]
        %v177 = vld [vmem:[%s169 + $0x10] sm:$0xf]
        %v178 = vld [vmem:[%s169 + $0x14] sm:$0xf]
        %v179 = vld [vmem:[%s169 + $0x18] sm:$0xf]
        %v180 = vld [vmem:[%s169 + $0x1c] sm:$0xf]
        %v181 = vld [vmem:[%s169 + $0x20] sm:$0xf]
        %v182 = vld [vmem:[%s169 + $0x24] sm:$0xf]
        %v183 = vld [vmem:[%s169 + $0x28] sm:$0xf]
        %v184 = vld [vmem:[%s169 + $0x2c] sm:$0xf]
        %v185 = vld [vmem:[%s169 + $0x30] sm:$0xf]
        %v186 = vld [vmem:[%s169 + $0x34] sm:$0xf]
        %v187 = vld [vmem:[%s169 + $0x38] sm:$0xf]
        %v188 = vld [vmem:[%s169 + $0x3c] sm:$0xf]
        %v189 = vld [vmem:[%s169 + $0x40] sm:$0xf]
        %v190 = vld [vmem:[%s169 + $0x44] sm:$0xf]
        %v191 = vld [vmem:[%s169 + $0x48] sm:$0xf]
        %v192 = vld [vmem:[%s169 + $0x4c] sm:$0xf]
        %v193 = vld [vmem:[%s169 + $0x50] sm:$0xf]
        %v194 = vld [vmem:[%s169 + $0x54] sm:$0xf]
        %v195 = vld [vmem:[%s169 + $0x58] sm:$0xf]
        %v196 = vld [vmem:[%s169 + $0x5c] sm:$0xf]
        %v197 = vld [vmem:[%s169 + $0x60] sm:$0xf]
        %v198 = vld [vmem:[%s169 + $0x64] sm:$0xf]
        %v199 = vld [vmem:[%s169 + $0x68] sm:$0xf]
        %v200 = vld [vmem:[%s169 + $0x6c] sm:$0xf]
        %v201 = vld [vmem:[%s169 + $0x70] sm:$0xf]
        %v202 = vld [vmem:[%s169 + $0x74] sm:$0xf]
        %v203 = vld [vmem:[%s169 + $0x78] sm:$0xf]
        %v204 = vld [vmem:[%s169 + $0x7c] sm:$0xf]
        %v205 = vld [vmem:[%s169 + $0x80] sm:$0xf]
        %v206 = vld [vmem:[%s169 + $0x84] sm:$0xf]
        %v207 = vld [vmem:[%s169 + $0x88] sm:$0xf]
        %v208 = vld [vmem:[%s169 + $0x8c] sm:$0xf]
        %v209 = vld [vmem:[%s169 + $0x90] sm:$0xf]
        %v210 = vld [vmem:[%s169 + $0x94] sm:$0xf]
        %v211 = vld [vmem:[%s169 + $0x98] sm:$0xf]
        %v212 = vld [vmem:[%s169 + $0x9c] sm:$0xf]
        %v213 = vld [vmem:[%s169 + $0xa0] sm:$0xf]
        %v214 = vld [vmem:[%s169 + $0xa4] sm:$0xf]
        %v215 = vld [vmem:[%s169 + $0xa8] sm:$0xf]
        %v216 = vld [vmem:[%s169 + $0xac] sm:$0xf]
        %v217 = vld [vmem:[%s169 + $0xb0] sm:$0xf]
        %v218 = vld [vmem:[%s169 + $0xb4] sm:$0xf]
        %v219 = vld [vmem:[%s169 + $0xb8] sm:$0xf]
        %v220 = vld [vmem:[%s169 + $0xbc] sm:$0xf]
        %v221 = vld [vmem:[%s169 + $0xc0] sm:$0xf]
        %v222 = vld [vmem:[%s169 + $0xc4] sm:$0xf]
        %v223 = vld [vmem:[%s169 + $0xc8] sm:$0xf]
        %v224 = vld [vmem:[%s169 + $0xcc] sm:$0xf]
        %v225 = vld [vmem:[%s169 + $0xd0] sm:$0xf]
        %v226 = vld [vmem:[%s169 + $0xd4] sm:$0xf]
        %v227 = vld [vmem:[%s169 + $0xd8] sm:$0xf]
        %v228 = vld [vmem:[%s169 + $0xdc] sm:$0xf]
        %v229 = vld [vmem:[%s169 + $0xe0] sm:$0xf]
        %v230 = vld [vmem:[%s169 + $0xe4] sm:$0xf]
        %v231 = vld [vmem:[%s169 + $0xe8] sm:$0xf]
        %v232 = vld [vmem:[%s169 + $0xec] sm:$0xf]
        %v233 = vld [vmem:[%s169 + $0xf0] sm:$0xf]
        %v234 = vld [vmem:[%s169 + $0xf4] sm:$0xf]
        %v235 = vld [vmem:[%s169 + $0xf8] sm:$0xf]
        %v236 = vld [vmem:[%s169 + $0xfc] sm:$0xf]
        %v237 = vld [vmem:[%s169 + $0x100] sm:$0xf]
        %v238 = vld [vmem:[%s169 + $0x104] sm:$0xf]
        %v239 = vld [vmem:[%s169 + $0x108] sm:$0xf]
        %v240 = vld [vmem:[%s169 + $0x10c] sm:$0xf]
        %v241 = vld [vmem:[%s169 + $0x110] sm:$0xf]
        %v242 = vld [vmem:[%s169 + $0x114] sm:$0xf]
        %v243 = vld [vmem:[%s169 + $0x118] sm:$0xf]
        %v244 = vld [vmem:[%s169 + $0x11c] sm:$0xf]
        %v245 = vld [vmem:[%s169 + $0x120] sm:$0xf]
        %v246 = vld [vmem:[%s169 + $0x124] sm:$0xf]
        %v247 = vld [vmem:[%s169 + $0x128] sm:$0xf]
        %v248 = vld [vmem:[%s169 + $0x12c] sm:$0xf]
        %v249 = vld [vmem:[%s169 + $0x130] sm:$0xf]
        %v250 = vld [vmem:[%s169 + $0x134] sm:$0xf]
        %v251 = vld [vmem:[%s169 + $0x138] sm:$0xf]
        %v252 = vld [vmem:[%s169 + $0x13c] sm:$0xf]
        %v253 = vld [vmem:[%s169 + $0x140] sm:$0xf]
        %v254 = vld [vmem:[%s169 + $0x144] sm:$0xf]
        %v255 = vld [vmem:[%s169 + $0x148] sm:$0xf]
        %v256 = vld [vmem:[%s169 + $0x14c] sm:$0xf]
        %v257 = vld [vmem:[%s169 + $0x150] sm:$0xf]
        %v258 = vld [vmem:[%s169 + $0x154] sm:$0xf]
        %v259 = vld [vmem:[%s169 + $0x158] sm:$0xf]
        %v260 = vld [vmem:[%s169 + $0x15c] sm:$0xf]
        %v261 = vld [vmem:[%s169 + $0x160] sm:$0xf]
        %v262 = vld [vmem:[%s169 + $0x164] sm:$0xf]
        %v263 = vld [vmem:[%s169 + $0x168] sm:$0xf]
        %v264 = vld [vmem:[%s169 + $0x16c] sm:$0xf]
        %v265 = vld [vmem:[%s169 + $0x170] sm:$0xf]
        %v266 = vld [vmem:[%s169 + $0x174] sm:$0xf]
        %v267 = vld [vmem:[%s169 + $0x178] sm:$0xf]
        %v268 = vld [vmem:[%s169 + $0x17c] sm:$0xf]
        %v269 = vld [vmem:[%s169 + $0x180] sm:$0xf]
        %v270 = vld [vmem:[%s169 + $0x184] sm:$0xf]
        %v271 = vld [vmem:[%s169 + $0x188] sm:$0xf]
        %v272 = vld [vmem:[%s169 + $0x18c] sm:$0xf]
        %v273 = vld [vmem:[%s169 + $0x190] sm:$0xf]
        %v274 = vld [vmem:[%s169 + $0x194] sm:$0xf]
        %v275 = vld [vmem:[%s169 + $0x198] sm:$0xf]
        %v276 = vld [vmem:[%s169 + $0x19c] sm:$0xf]
        %v277 = vld [vmem:[%s169 + $0x1a0] sm:$0xf]
        %v278 = vld [vmem:[%s169 + $0x1a4] sm:$0xf]
        %v279 = vld [vmem:[%s169 + $0x1a8] sm:$0xf]
        %v280 = vld [vmem:[%s169 + $0x1ac] sm:$0xf]
        %v281 = vld [vmem:[%s169 + $0x1b0] sm:$0xf]
        %v282 = vld [vmem:[%s169 + $0x1b4] sm:$0xf]
        %v283 = vld [vmem:[%s169 + $0x1b8] sm:$0xf]
        %v284 = vld [vmem:[%s169 + $0x1bc] sm:$0xf]
        %v285 = vld [vmem:[%s169 + $0x1c0] sm:$0xf]
        %v286 = vld [vmem:[%s169 + $0x1c4] sm:$0xf]
        %v287 = vld [vmem:[%s169 + $0x1c8] sm:$0xf]
        %v288 = vld [vmem:[%s169 + $0x1cc] sm:$0xf]
        %v289 = vld [vmem:[%s169 + $0x1d0] sm:$0xf]
        %v290 = vld [vmem:[%s169 + $0x1d4] sm:$0xf]
        %v291 = vld [vmem:[%s169 + $0x1d8] sm:$0xf]
        %v292 = vld [vmem:[%s169 + $0x1dc] sm:$0xf]
        %v293 = vld [vmem:[%s169 + $0x1e0] sm:$0xf]
        %v294 = vld [vmem:[%s169 + $0x1e4] sm:$0xf]
        %v295 = vld [vmem:[%s169 + $0x1e8] sm:$0xf]
        %v296 = vld [vmem:[%s169 + $0x1ec] sm:$0xf]
        %v297 = vld [vmem:[%s169 + $0x1f0] sm:$0xf]
        %v298 = vld [vmem:[%s169 + $0x1f4] sm:$0xf]
        %v299 = vld [vmem:[%s169 + $0x1f8] sm:$0xf]
        %v300 = vld [vmem:[%s169 + $0x1fc] sm:$0xf]
        %v301 = vld [vmem:[%s169 + $0x200] sm:$0xf]
        %v302 = vld [vmem:[%s169 + $0x204] sm:$0xf]
        %v303 = vld [vmem:[%s169 + $0x208] sm:$0xf]
        %v304 = vld [vmem:[%s169 + $0x20c] sm:$0xf]
        %v305 = vld [vmem:[%s169 + $0x210] sm:$0xf]
        %v306 = vld [vmem:[%s169 + $0x214] sm:$0xf]
        %v307 = vld [vmem:[%s169 + $0x218] sm:$0xf]
        %v308 = vld [vmem:[%s169 + $0x21c] sm:$0xf]
        %v309 = vld [vmem:[%s169 + $0x220] sm:$0xf]
        %v310 = vld [vmem:[%s169 + $0x224] sm:$0xf]
        %v311 = vld [vmem:[%s169 + $0x228] sm:$0xf]
        %v312 = vld [vmem:[%s169 + $0x22c] sm:$0xf]
        %v313 = vld [vmem:[%s169 + $0x230] sm:$0xf]
        %v314 = vld [vmem:[%s169 + $0x234] sm:$0xf]
        %v315 = vld [vmem:[%s169 + $0x238] sm:$0xf]
        %v316 = vld [vmem:[%s169 + $0x23c] sm:$0xf]
        %v317 = vld [vmem:[%s169 + $0x240] sm:$0xf]
        %v318 = vld [vmem:[%s169 + $0x244] sm:$0xf]
        %v319 = vld [vmem:[%s169 + $0x248] sm:$0xf]
        %v320 = vld [vmem:[%s169 + $0x24c] sm:$0xf]
        %v321 = vld [vmem:[%s169 + $0x250] sm:$0xf]
        %v322 = vld [vmem:[%s169 + $0x254] sm:$0xf]
        %v323 = vld [vmem:[%s169 + $0x258] sm:$0xf]
        %v324 = vld [vmem:[%s169 + $0x25c] sm:$0xf]
        %v325 = vld [vmem:[%s169 + $0x260] sm:$0xf]
        %v326 = vld [vmem:[%s169 + $0x264] sm:$0xf]
        %v327 = vld [vmem:[%s169 + $0x268] sm:$0xf]
        %v328 = vld [vmem:[%s169 + $0x26c] sm:$0xf]
        %v329 = vld [vmem:[%s169 + $0x270] sm:$0xf]
        %v330 = vld [vmem:[%s169 + $0x274] sm:$0xf]
        %v331 = vld [vmem:[%s169 + $0x278] sm:$0xf]
        %v332 = vld [vmem:[%s169 + $0x27c] sm:$0xf]
        %v333 = vld [vmem:[%s169 + $0x280] sm:$0xf]
        %v334 = vld [vmem:[%s169 + $0x284] sm:$0xf]
        %v335 = vld [vmem:[%s169 + $0x288] sm:$0xf]
        %v336 = vld [vmem:[%s169 + $0x28c] sm:$0xf]
        %v337 = vld [vmem:[%s169 + $0x290] sm:$0xf]
        %v338 = vld [vmem:[%s169 + $0x294] sm:$0xf]
        %v339 = vld [vmem:[%s169 + $0x298] sm:$0xf]
        %v340 = vld [vmem:[%s169 + $0x29c] sm:$0xf]
        %v341 = vld [vmem:[%s169 + $0x2a0] sm:$0xf]
        %v342 = vld [vmem:[%s169 + $0x2a4] sm:$0xf]
        %v343 = vld [vmem:[%s169 + $0x2a8] sm:$0xf]
        %v344 = vld [vmem:[%s169 + $0x2ac] sm:$0xf]
        %v345 = vld [vmem:[%s169 + $0x2b0] sm:$0xf]
        %v346 = vld [vmem:[%s169 + $0x2b4] sm:$0xf]
        %v347 = vld [vmem:[%s169 + $0x2b8] sm:$0xf]
        %v348 = vld [vmem:[%s169 + $0x2bc] sm:$0xf]
        %v349 = vld [vmem:[%s169 + $0x2c0] sm:$0xf]
        %v350 = vld [vmem:[%s169 + $0x2c4] sm:$0xf]
        %v351 = vld [vmem:[%s169 + $0x2c8] sm:$0xf]
        %v352 = vld [vmem:[%s169 + $0x2cc] sm:$0xf]
        %v353 = vld [vmem:[%s169 + $0x2d0] sm:$0xf]
        %v354 = vld [vmem:[%s169 + $0x2d4] sm:$0xf]
        %v355 = vld [vmem:[%s169 + $0x2d8] sm:$0xf]
        %v356 = vld [vmem:[%s169 + $0x2dc] sm:$0xf]
        %v357 = vld [vmem:[%s169 + $0x2e0] sm:$0xf]
        %v358 = vld [vmem:[%s169 + $0x2e4] sm:$0xf]
        %v359 = vld [vmem:[%s169 + $0x2e8] sm:$0xf]
        %v360 = vld [vmem:[%s169 + $0x2ec] sm:$0xf]
        %v361 = vld [vmem:[%s169 + $0x2f0] sm:$0xf]
        %v362 = vld [vmem:[%s169 + $0x2f4] sm:$0xf]
        %v363 = vld [vmem:[%s169 + $0x2f8] sm:$0xf]
        %v364 = vld [vmem:[%s169 + $0x2fc] sm:$0xf]
        %v365 = vld [vmem:[%s169 + $0x300] sm:$0xf]
        %v366 = vld [vmem:[%s169 + $0x304] sm:$0xf]
        %v367 = vld [vmem:[%s169 + $0x308] sm:$0xf]
        %v368 = vld [vmem:[%s169 + $0x30c] sm:$0xf]
        %v369 = vld [vmem:[%s169 + $0x310] sm:$0xf]
        %v370 = vld [vmem:[%s169 + $0x314] sm:$0xf]
        %v371 = vld [vmem:[%s169 + $0x318] sm:$0xf]
        %v372 = vld [vmem:[%s169 + $0x31c] sm:$0xf]
        %v373 = vld [vmem:[%s169 + $0x320] sm:$0xf]
        %v374 = vld [vmem:[%s169 + $0x324] sm:$0xf]
        %v375 = vld [vmem:[%s169 + $0x328] sm:$0xf]
        %v376 = vld [vmem:[%s169 + $0x32c] sm:$0xf]
        %v377 = vld [vmem:[%s169 + $0x330] sm:$0xf]
        %v378 = vld [vmem:[%s169 + $0x334] sm:$0xf]
        %v379 = vld [vmem:[%s169 + $0x338] sm:$0xf]
        %v380 = vld [vmem:[%s169 + $0x33c] sm:$0xf]
        %v381 = vld [vmem:[%s169 + $0x340] sm:$0xf]
        %v382 = vld [vmem:[%s169 + $0x344] sm:$0xf]
        %v383 = vld [vmem:[%s169 + $0x348] sm:$0xf]
        %v384 = vld [vmem:[%s169 + $0x34c] sm:$0xf]
        %v385 = vld [vmem:[%s169 + $0x350] sm:$0xf]
        %v386 = vld [vmem:[%s169 + $0x354] sm:$0xf]
        %v387 = vld [vmem:[%s169 + $0x358] sm:$0xf]
        %v388 = vld [vmem:[%s169 + $0x35c] sm:$0xf]
        %v389 = vld [vmem:[%s169 + $0x360] sm:$0xf]
        %v390 = vld [vmem:[%s169 + $0x364] sm:$0xf]
        %v391 = vld [vmem:[%s169 + $0x368] sm:$0xf]
        %v392 = vld [vmem:[%s169 + $0x36c] sm:$0xf]
        %v393 = vld [vmem:[%s169 + $0x370] sm:$0xf]
        %v394 = vld [vmem:[%s169 + $0x374] sm:$0xf]
        %v395 = vld [vmem:[%s169 + $0x378] sm:$0xf]
        %v396 = vld [vmem:[%s169 + $0x37c] sm:$0xf]
        %v397 = vld [vmem:[%s169 + $0x380] sm:$0xf]
        %v398 = vld [vmem:[%s169 + $0x384] sm:$0xf]
        %v399 = vld [vmem:[%s169 + $0x388] sm:$0xf]
        %v400 = vld [vmem:[%s169 + $0x38c] sm:$0xf]
        %v401 = vld [vmem:[%s169 + $0x390] sm:$0xf]
        %v402 = vld [vmem:[%s169 + $0x394] sm:$0xf]
        %v403 = vld [vmem:[%s169 + $0x398] sm:$0xf]
        %v404 = vld [vmem:[%s169 + $0x39c] sm:$0xf]
        %v405 = vld [vmem:[%s169 + $0x3a0] sm:$0xf]
        %v406 = vld [vmem:[%s169 + $0x3a4] sm:$0xf]
        %v407 = vld [vmem:[%s169 + $0x3a8] sm:$0xf]
        %v408 = vld [vmem:[%s169 + $0x3ac] sm:$0xf]
        %v409 = vld [vmem:[%s169 + $0x3b0] sm:$0xf]
        %v410 = vld [vmem:[%s169 + $0x3b4] sm:$0xf]
        %v411 = vld [vmem:[%s169 + $0x3b8] sm:$0xf]
        %v412 = vld [vmem:[%s169 + $0x3bc] sm:$0xf]
        %v413 = vld [vmem:[%s169 + $0x3c0] sm:$0xf]
        %v414 = vld [vmem:[%s169 + $0x3c4] sm:$0xf]
        %v415 = vld [vmem:[%s169 + $0x3c8] sm:$0xf]
        %v416 = vld [vmem:[%s169 + $0x3cc] sm:$0xf]
        %v417 = vld [vmem:[%s169 + $0x3d0] sm:$0xf]
        %v418 = vld [vmem:[%s169 + $0x3d4] sm:$0xf]
        %v419 = vld [vmem:[%s169 + $0x3d8] sm:$0xf]
        %v420 = vld [vmem:[%s169 + $0x3dc] sm:$0xf]
        %v421 = vld [vmem:[%s169 + $0x3e0] sm:$0xf]
        %v422 = vld [vmem:[%s169 + $0x3e4] sm:$0xf]
        %v423 = vld [vmem:[%s169 + $0x3e8] sm:$0xf]
        %v424 = vld [vmem:[%s169 + $0x3ec] sm:$0xf]
        %v425 = vld [vmem:[%s169 + $0x3f0] sm:$0xf]
        %v426 = vld [vmem:[%s169 + $0x3f4] sm:$0xf]
        %v427 = vld [vmem:[%s169 + $0x3f8] sm:$0xf]
        %v428 = vld [vmem:[%s169 + $0x3fc] sm:$0xf]
        %v429 = vld [vmem:[%s169 + $0x400] sm:$0xf]
        %v430 = vld [vmem:[%s169 + $0x404] sm:$0xf]
        %v431 = vld [vmem:[%s169 + $0x408] sm:$0xf]
        %v432 = vld [vmem:[%s169 + $0x40c] sm:$0xf]
        %v433 = vld [vmem:[%s169 + $0x410] sm:$0xf]
        %v434 = vld [vmem:[%s169 + $0x414] sm:$0xf]
        %v435 = vld [vmem:[%s169 + $0x418] sm:$0xf]
        %v436 = vld [vmem:[%s169 + $0x41c] sm:$0xf]
        %v437 = vld [vmem:[%s169 + $0x420] sm:$0xf]
        %v438 = vld [vmem:[%s169 + $0x424] sm:$0xf]
        %v439 = vld [vmem:[%s169 + $0x428] sm:$0xf]
        %v440 = vld [vmem:[%s169 + $0x42c] sm:$0xf]
        %v441 = vld [vmem:[%s169 + $0x430] sm:$0xf]
        %v442 = vld [vmem:[%s169 + $0x434] sm:$0xf]
        %v443 = vld [vmem:[%s169 + $0x438] sm:$0xf]
        %v444 = vld [vmem:[%s169 + $0x43c] sm:$0xf]
        %v445 = vld [vmem:[%s169 + $0x440] sm:$0xf]
        %v446 = vld [vmem:[%s169 + $0x444] sm:$0xf]
        %v447 = vld [vmem:[%s169 + $0x448] sm:$0xf]
        %v448 = vld [vmem:[%s169 + $0x44c] sm:$0xf]
        %v449 = vld [vmem:[%s169 + $0x450] sm:$0xf]
        %v450 = vld [vmem:[%s169 + $0x454] sm:$0xf]
        %v451 = vld [vmem:[%s169 + $0x458] sm:$0xf]
        %v452 = vld [vmem:[%s169 + $0x45c] sm:$0xf]
        %v453 = vld [vmem:[%s169 + $0x460] sm:$0xf]
        %v454 = vld [vmem:[%s169 + $0x464] sm:$0xf]
        %v455 = vld [vmem:[%s169 + $0x468] sm:$0xf]
        %v456 = vld [vmem:[%s169 + $0x46c] sm:$0xf]
        %v457 = vld [vmem:[%s169 + $0x470] sm:$0xf]
        %v458 = vld [vmem:[%s169 + $0x474] sm:$0xf]
        %v459 = vld [vmem:[%s169 + $0x478] sm:$0xf]
        %v460 = vld [vmem:[%s169 + $0x47c] sm:$0xf]
        %v461 = vld [vmem:[%s169 + $0x480] sm:$0xf]
        %v462 = vld [vmem:[%s169 + $0x484] sm:$0xf]
        %v463 = vld [vmem:[%s169 + $0x488] sm:$0xf]
        %v464 = vld [vmem:[%s169 + $0x48c] sm:$0xf]
        %v465 = vld [vmem:[%s169 + $0x490] sm:$0xf]
        %v466 = vld [vmem:[%s169 + $0x494] sm:$0xf]
        %v467 = vld [vmem:[%s169 + $0x498] sm:$0xf]
        %v468 = vld [vmem:[%s169 + $0x49c] sm:$0xf]
        %v469 = vld [vmem:[%s169 + $0x4a0] sm:$0xf]
        %v470 = vld [vmem:[%s169 + $0x4a4] sm:$0xf]
        %v471 = vld [vmem:[%s169 + $0x4a8] sm:$0xf]
        %v472 = vld [vmem:[%s169 + $0x4ac] sm:$0xf]
        %v473 = vld [vmem:[%s169 + $0x4b0] sm:$0xf]
        %v474 = vld [vmem:[%s169 + $0x4b4] sm:$0xf]
        %v475 = vld [vmem:[%s169 + $0x4b8] sm:$0xf]
        %v476 = vld [vmem:[%s169 + $0x4bc] sm:$0xf]
        %v477 = vld [vmem:[%s169 + $0x4c0] sm:$0xf]
        %v478 = vld [vmem:[%s169 + $0x4c4] sm:$0xf]
        %v479 = vld [vmem:[%s169 + $0x4c8] sm:$0xf]
        %v480 = vld [vmem:[%s169 + $0x4cc] sm:$0xf]
        %v481 = vld [vmem:[%s169 + $0x4d0] sm:$0xf]
        %v482 = vld [vmem:[%s169 + $0x4d4] sm:$0xf]
        %v483 = vld [vmem:[%s169 + $0x4d8] sm:$0xf]
        %v484 = vld [vmem:[%s169 + $0x4dc] sm:$0xf]
        %v485 = vld [vmem:[%s169 + $0x4e0] sm:$0xf]
        %v486 = vld [vmem:[%s169 + $0x4e4] sm:$0xf]
        %v487 = vld [vmem:[%s169 + $0x4e8] sm:$0xf]
        %v488 = vld [vmem:[%s169 + $0x4ec] sm:$0xf]
        %v489 = vld [vmem:[%s169 + $0x4f0] sm:$0xf]
        %v490 = vld [vmem:[%s169 + $0x4f4] sm:$0xf]
        %v491 = vld [vmem:[%s169 + $0x4f8] sm:$0xf]
        %v492 = vld [vmem:[%s169 + $0x4fc] sm:$0xf]
        %v493 = vld [vmem:[%s169 + $0x500] sm:$0xf]
        %v494 = vld [vmem:[%s169 + $0x504] sm:$0xf]
        %v495 = vld [vmem:[%s169 + $0x508] sm:$0xf]
        %v496 = vld [vmem:[%s169 + $0x50c] sm:$0xf]
        %v497 = vld [vmem:[%s169 + $0x510] sm:$0xf]
        %v498 = vld [vmem:[%s169 + $0x514] sm:$0xf]
        %v499 = vld [vmem:[%s169 + $0x518] sm:$0xf]
        %v500 = vld [vmem:[%s169 + $0x51c] sm:$0xf]
        %v501 = vld [vmem:[%s169 + $0x520] sm:$0xf]
        %v502 = vld [vmem:[%s169 + $0x524] sm:$0xf]
        %v503 = vld [vmem:[%s169 + $0x528] sm:$0xf]
        %v504 = vld [vmem:[%s169 + $0x52c] sm:$0xf]
        %v505 = vld [vmem:[%s169 + $0x530] sm:$0xf]
        %v506 = vld [vmem:[%s169 + $0x534] sm:$0xf]
        %v507 = vld [vmem:[%s169 + $0x538] sm:$0xf]
        %v508 = vld [vmem:[%s169 + $0x53c] sm:$0xf]
        %v509 = vld [vmem:[%s169 + $0x540] sm:$0xf]
        %v510 = vld [vmem:[%s169 + $0x544] sm:$0xf]
        %v511 = vld [vmem:[%s169 + $0x548] sm:$0xf]
        %v512 = vld [vmem:[%s169 + $0x54c] sm:$0xf]
        %v513 = vld [vmem:[%s169 + $0x550] sm:$0xf]
        %v514 = vld [vmem:[%s169 + $0x554] sm:$0xf]
        %v515 = vld [vmem:[%s169 + $0x558] sm:$0xf]
        %v516 = vld [vmem:[%s169 + $0x55c] sm:$0xf]
        %v517 = vld [vmem:[%s169 + $0x560] sm:$0xf]
        %v518 = vld [vmem:[%s169 + $0x564] sm:$0xf]
        %v519 = vld [vmem:[%s169 + $0x568] sm:$0xf]
        %v520 = vld [vmem:[%s169 + $0x56c] sm:$0xf]
        %v521 = vld [vmem:[%s169 + $0x570] sm:$0xf]
        %v522 = vld [vmem:[%s169 + $0x574] sm:$0xf]
        %v523 = vld [vmem:[%s169 + $0x578] sm:$0xf]
        %v524 = vld [vmem:[%s169 + $0x57c] sm:$0xf]
        %v525 = vld [vmem:[%s169 + $0x580] sm:$0xf]
        %v526 = vld [vmem:[%s169 + $0x584] sm:$0xf]
        %v527 = vld [vmem:[%s169 + $0x588] sm:$0xf]
        %v528 = vld [vmem:[%s169 + $0x58c] sm:$0xf]
        %v529 = vld [vmem:[%s169 + $0x590] sm:$0xf]
        %v530 = vld [vmem:[%s169 + $0x594] sm:$0xf]
        %v531 = vld [vmem:[%s169 + $0x598] sm:$0xf]
        %v532 = vld [vmem:[%s169 + $0x59c] sm:$0xf]
        %v533 = vld [vmem:[%s169 + $0x5a0] sm:$0xf]
        %v534 = vld [vmem:[%s169 + $0x5a4] sm:$0xf]
        %v535 = vld [vmem:[%s169 + $0x5a8] sm:$0xf]
        %v536 = vld [vmem:[%s169 + $0x5ac] sm:$0xf]
        %v537 = vld [vmem:[%s169 + $0x5b0] sm:$0xf]
        %v538 = vld [vmem:[%s169 + $0x5b4] sm:$0xf]
        %v539 = vld [vmem:[%s169 + $0x5b8] sm:$0xf]
        %v540 = vld [vmem:[%s169 + $0x5bc] sm:$0xf]
        %v541 = vld [vmem:[%s169 + $0x5c0] sm:$0xf]
        %v542 = vld [vmem:[%s169 + $0x5c4] sm:$0xf]
        %v543 = vld [vmem:[%s169 + $0x5c8] sm:$0xf]
        %v544 = vld [vmem:[%s169 + $0x5cc] sm:$0xf]
        %v545 = vld [vmem:[%s169 + $0x5d0] sm:$0xf]
        %v546 = vld [vmem:[%s169 + $0x5d4] sm:$0xf]
        %v547 = vld [vmem:[%s169 + $0x5d8] sm:$0xf]
        %v548 = vld [vmem:[%s169 + $0x5dc] sm:$0xf]
        %v549 = vld [vmem:[%s169 + $0x5e0] sm:$0xf]
        %v550 = vld [vmem:[%s169 + $0x5e4] sm:$0xf]
        %v551 = vld [vmem:[%s169 + $0x5e8] sm:$0xf]
        %v552 = vld [vmem:[%s169 + $0x5ec] sm:$0xf]
        %v553 = vld [vmem:[%s169 + $0x5f0] sm:$0xf]
        %v554 = vld [vmem:[%s169 + $0x5f4] sm:$0xf]
        %v555 = vld [vmem:[%s169 + $0x5f8] sm:$0xf]
        %v556 = vld [vmem:[%s169 + $0x5fc] sm:$0xf]
        %v557 = vld [vmem:[%s169 + $0x600] sm:$0xf]
        %v558 = vld [vmem:[%s169 + $0x604] sm:$0xf]
        %v559 = vld [vmem:[%s169 + $0x608] sm:$0xf]
        %v560 = vld [vmem:[%s169 + $0x60c] sm:$0xf]
        %v561 = vld [vmem:[%s169 + $0x610] sm:$0xf]
        %v562 = vld [vmem:[%s169 + $0x614] sm:$0xf]
        %v563 = vld [vmem:[%s169 + $0x618] sm:$0xf]
        %v564 = vld [vmem:[%s169 + $0x61c] sm:$0xf]
        %v565 = vld [vmem:[%s169 + $0x620] sm:$0xf]
        %v566 = vld [vmem:[%s169 + $0x624] sm:$0xf]
        %v567 = vld [vmem:[%s169 + $0x628] sm:$0xf]
        %v568 = vld [vmem:[%s169 + $0x62c] sm:$0xf]
        %v569 = vld [vmem:[%s169 + $0x630] sm:$0xf]
        %v570 = vld [vmem:[%s169 + $0x634] sm:$0xf]
        %v571 = vld [vmem:[%s169 + $0x638] sm:$0xf]
        %v572 = vld [vmem:[%s169 + $0x63c] sm:$0xf]
        %v573 = vld [vmem:[%s169 + $0x640] sm:$0xf]
        %v574 = vld [vmem:[%s169 + $0x644] sm:$0xf]
        %v575 = vld [vmem:[%s169 + $0x648] sm:$0xf]
        %v576 = vld [vmem:[%s169 + $0x64c] sm:$0xf]
        %v577 = vld [vmem:[%s169 + $0x650] sm:$0xf]
        %v578 = vld [vmem:[%s169 + $0x654] sm:$0xf]
        %v579 = vld [vmem:[%s169 + $0x658] sm:$0xf]
        %v580 = vld [vmem:[%s169 + $0x65c] sm:$0xf]
        %v581 = vld [vmem:[%s169 + $0x660] sm:$0xf]
        %v582 = vld [vmem:[%s169 + $0x664] sm:$0xf]
        %v583 = vld [vmem:[%s169 + $0x668] sm:$0xf]
        %v584 = vld [vmem:[%s169 + $0x66c] sm:$0xf]
        %v585 = vld [vmem:[%s169 + $0x670] sm:$0xf]
        %v586 = vld [vmem:[%s169 + $0x674] sm:$0xf]
        %v587 = vld [vmem:[%s169 + $0x678] sm:$0xf]
        %v588 = vld [vmem:[%s169 + $0x67c] sm:$0xf]
        %v589 = vld [vmem:[%s169 + $0x680] sm:$0xf]
        %v590 = vld [vmem:[%s169 + $0x684] sm:$0xf]
        %v591 = vld [vmem:[%s169 + $0x688] sm:$0xf]
        %v592 = vld [vmem:[%s169 + $0x68c] sm:$0xf]
        %v593 = vld [vmem:[%s169 + $0x690] sm:$0xf]
        %v594 = vld [vmem:[%s169 + $0x694] sm:$0xf]
        %v595 = vld [vmem:[%s169 + $0x698] sm:$0xf]
        %v596 = vld [vmem:[%s169 + $0x69c] sm:$0xf]
        %v597 = vld [vmem:[%s169 + $0x6a0] sm:$0xf]
        %v598 = vld [vmem:[%s169 + $0x6a4] sm:$0xf]
        %v599 = vld [vmem:[%s169 + $0x6a8] sm:$0xf]
        %v600 = vld [vmem:[%s169 + $0x6ac] sm:$0xf]
        %v601 = vld [vmem:[%s169 + $0x6b0] sm:$0xf]
        %v602 = vld [vmem:[%s169 + $0x6b4] sm:$0xf]
        %v603 = vld [vmem:[%s169 + $0x6b8] sm:$0xf]
        %v604 = vld [vmem:[%s169 + $0x6bc] sm:$0xf]
        %v605 = vld [vmem:[%s169 + $0x6c0] sm:$0xf]
        %v606 = vld [vmem:[%s169 + $0x6c4] sm:$0xf]
        %v607 = vld [vmem:[%s169 + $0x6c8] sm:$0xf]
        %v608 = vld [vmem:[%s169 + $0x6cc] sm:$0xf]
        %v609 = vld [vmem:[%s169 + $0x6d0] sm:$0xf]
        %v610 = vld [vmem:[%s169 + $0x6d4] sm:$0xf]
        %v611 = vld [vmem:[%s169 + $0x6d8] sm:$0xf]
        %v612 = vld [vmem:[%s169 + $0x6dc] sm:$0xf]
        %v613 = vld [vmem:[%s169 + $0x6e0] sm:$0xf]
        %v614 = vld [vmem:[%s169 + $0x6e4] sm:$0xf]
        %v615 = vld [vmem:[%s169 + $0x6e8] sm:$0xf]
        %v616 = vld [vmem:[%s169 + $0x6ec] sm:$0xf]
        %v617 = vld [vmem:[%s169 + $0x6f0] sm:$0xf]
        %v618 = vld [vmem:[%s169 + $0x6f4] sm:$0xf]
        %v619 = vld [vmem:[%s169 + $0x6f8] sm:$0xf]
        %v620 = vld [vmem:[%s169 + $0x6fc] sm:$0xf]
        %v621 = vld [vmem:[%s169 + $0x700] sm:$0xf]
        %v622 = vld [vmem:[%s169 + $0x704] sm:$0xf]
        %v623 = vld [vmem:[%s169 + $0x708] sm:$0xf]
        %v624 = vld [vmem:[%s169 + $0x70c] sm:$0xf]
        %v625 = vld [vmem:[%s169 + $0x710] sm:$0xf]
        %v626 = vld [vmem:[%s169 + $0x714] sm:$0xf]
        %v627 = vld [vmem:[%s169 + $0x718] sm:$0xf]
        %v628 = vld [vmem:[%s169 + $0x71c] sm:$0xf]
        %v629 = vld [vmem:[%s169 + $0x720] sm:$0xf]
        %v630 = vld [vmem:[%s169 + $0x724] sm:$0xf]
        %v631 = vld [vmem:[%s169 + $0x728] sm:$0xf]
        %v632 = vld [vmem:[%s169 + $0x72c] sm:$0xf]
        %v633 = vld [vmem:[%s169 + $0x730] sm:$0xf]
        %v634 = vld [vmem:[%s169 + $0x734] sm:$0xf]
        %v635 = vld [vmem:[%s169 + $0x738] sm:$0xf]
        %v636 = vld [vmem:[%s169 + $0x73c] sm:$0xf]
        %v637 = vld [vmem:[%s169 + $0x740] sm:$0xf]
        %v638 = vld [vmem:[%s169 + $0x744] sm:$0xf]
        %v639 = vld [vmem:[%s169 + $0x748] sm:$0xf]
        %v640 = vld [vmem:[%s169 + $0x74c] sm:$0xf]
        %v641 = vld [vmem:[%s169 + $0x750] sm:$0xf]
        %v642 = vld [vmem:[%s169 + $0x754] sm:$0xf]
        %v643 = vld [vmem:[%s169 + $0x758] sm:$0xf]
        %v644 = vld [vmem:[%s169 + $0x75c] sm:$0xf]
        %v645 = vld [vmem:[%s169 + $0x760] sm:$0xf]
        %v646 = vld [vmem:[%s169 + $0x764] sm:$0xf]
        %v647 = vld [vmem:[%s169 + $0x768] sm:$0xf]
        %v648 = vld [vmem:[%s169 + $0x76c] sm:$0xf]
        %v649 = vld [vmem:[%s169 + $0x770] sm:$0xf]
        %v650 = vld [vmem:[%s169 + $0x774] sm:$0xf]
        %v651 = vld [vmem:[%s169 + $0x778] sm:$0xf]
        %v652 = vld [vmem:[%s169 + $0x77c] sm:$0xf]
        %v653 = vld [vmem:[%s169 + $0x780] sm:$0xf]
        %v654 = vld [vmem:[%s169 + $0x784] sm:$0xf]
        %v655 = vld [vmem:[%s169 + $0x788] sm:$0xf]
        %v656 = vld [vmem:[%s169 + $0x78c] sm:$0xf]
        %v657 = vld [vmem:[%s169 + $0x790] sm:$0xf]
        %v658 = vld [vmem:[%s169 + $0x794] sm:$0xf]
        %v659 = vld [vmem:[%s169 + $0x798] sm:$0xf]
        %v660 = vld [vmem:[%s169 + $0x79c] sm:$0xf]
        %v661 = vld [vmem:[%s169 + $0x7a0] sm:$0xf]
        %v662 = vld [vmem:[%s169 + $0x7a4] sm:$0xf]
        %v663 = vld [vmem:[%s169 + $0x7a8] sm:$0xf]
        %v664 = vld [vmem:[%s169 + $0x7ac] sm:$0xf]
        %v665 = vld [vmem:[%s169 + $0x7b0] sm:$0xf]
        %v666 = vld [vmem:[%s169 + $0x7b4] sm:$0xf]
        %v667 = vld [vmem:[%s169 + $0x7b8] sm:$0xf]
        %v668 = vld [vmem:[%s169 + $0x7bc] sm:$0xf]
        %v669 = vld [vmem:[%s169 + $0x7c0] sm:$0xf]
        %v670 = vld [vmem:[%s169 + $0x7c4] sm:$0xf]
        %v671 = vld [vmem:[%s169 + $0x7c8] sm:$0xf]
        %v672 = vld [vmem:[%s169 + $0x7cc] sm:$0xf]
        %v673 = vld [vmem:[%s169 + $0x7d0] sm:$0xf]
        %v674 = vld [vmem:[%s169 + $0x7d4] sm:$0xf]
        %v675 = vld [vmem:[%s169 + $0x7d8] sm:$0xf]
        %v676 = vld [vmem:[%s169 + $0x7dc] sm:$0xf]
        %v677 = vld [vmem:[%s169 + $0x7e0] sm:$0xf]
        %v678 = vld [vmem:[%s169 + $0x7e4] sm:$0xf]
        %v679 = vld [vmem:[%s169 + $0x7e8] sm:$0xf]
        %v680 = vld [vmem:[%s169 + $0x7ec] sm:$0xf]
        %v681 = vld [vmem:[%s169 + $0x7f0] sm:$0xf]
        %v682 = vld [vmem:[%s169 + $0x7f4] sm:$0xf]
        %v683 = vld [vmem:[%s169 + $0x7f8] sm:$0xf]
        %v684 = vld [vmem:[%s169 + $0x7fc] sm:$0xf]
        %v685 = vld [vmem:[%s1] sm:$0x3]
        %v686 = vld [vmem:[%s2] sm:$0x1]
        %v688 = vlaneseq
        %v689 = vshrl.u32 %v688, 7
        %v690 = vsub.s32 0, %v689
        %v691 = vrot.slane %v686, %v690
        %v1205 = vunpack.c.l.b16 %v173
        %v1206 = vunpack.c.l.b16 %v174
        %v1207 = vunpack.c.l.b16 %v175
        %v1208 = vunpack.c.l.b16 %v176
        %v1209 = vunpack.c.l.b16 %v177
        %v1210 = vunpack.c.l.b16 %v178
        %v1211 = vunpack.c.l.b16 %v179
        %v1212 = vunpack.c.l.b16 %v180
        %v1213 = vunpack.c.l.b16 %v181
        %v1214 = vunpack.c.l.b16 %v182
        %v1215 = vunpack.c.l.b16 %v183
        %v1216 = vunpack.c.l.b16 %v184
        %v1217 = vunpack.c.l.b16 %v185
        %v1218 = vunpack.c.l.b16 %v186
        %v1219 = vunpack.c.l.b16 %v187
        %v1220 = vunpack.c.l.b16 %v188
        %v1221 = vunpack.c.l.b16 %v189
        %v1222 = vunpack.c.l.b16 %v190
        %v1223 = vunpack.c.l.b16 %v191
        %v1224 = vunpack.c.l.b16 %v192
        %v1225 = vunpack.c.l.b16 %v193
        %v1226 = vunpack.c.l.b16 %v194
        %v1227 = vunpack.c.l.b16 %v195
        %v1228 = vunpack.c.l.b16 %v196
        %v1229 = vunpack.c.l.b16 %v197
        %v1230 = vunpack.c.l.b16 %v198
        %v1231 = vunpack.c.l.b16 %v199
        %v1232 = vunpack.c.l.b16 %v200
        %v1233 = vunpack.c.l.b16 %v201
        %v1234 = vunpack.c.l.b16 %v202
        %v1235 = vunpack.c.l.b16 %v203
        %v1236 = vunpack.c.l.b16 %v204
        %v1237 = vunpack.c.l.b16 %v205
        %v1238 = vunpack.c.l.b16 %v206
        %v1239 = vunpack.c.l.b16 %v207
        %v1240 = vunpack.c.l.b16 %v208
        %v1241 = vunpack.c.l.b16 %v209
        %v1242 = vunpack.c.l.b16 %v210
        %v1243 = vunpack.c.l.b16 %v211
        %v1244 = vunpack.c.l.b16 %v212
        %v1245 = vunpack.c.l.b16 %v213
        %v1246 = vunpack.c.l.b16 %v214
        %v1247 = vunpack.c.l.b16 %v215
        %v1248 = vunpack.c.l.b16 %v216
        %v1249 = vunpack.c.l.b16 %v217
        %v1250 = vunpack.c.l.b16 %v218
        %v1251 = vunpack.c.l.b16 %v219
        %v1252 = vunpack.c.l.b16 %v220
        %v1253 = vunpack.c.l.b16 %v221
        %v1254 = vunpack.c.l.b16 %v222
        %v1255 = vunpack.c.l.b16 %v223
        %v1256 = vunpack.c.l.b16 %v224
        %v1257 = vunpack.c.l.b16 %v225
        %v1258 = vunpack.c.l.b16 %v226
        %v1259 = vunpack.c.l.b16 %v227
        %v1260 = vunpack.c.l.b16 %v228
        %v1261 = vunpack.c.l.b16 %v229
        %v1262 = vunpack.c.l.b16 %v230
        %v1263 = vunpack.c.l.b16 %v231
        %v1264 = vunpack.c.l.b16 %v232
        %v1265 = vunpack.c.l.b16 %v233
        %v1266 = vunpack.c.l.b16 %v234
        %v1267 = vunpack.c.l.b16 %v235
        %v1268 = vunpack.c.l.b16 %v236
        %v1269 = vunpack.c.l.b16 %v237
        %v1270 = vunpack.c.l.b16 %v238
        %v1271 = vunpack.c.l.b16 %v239
        %v1272 = vunpack.c.l.b16 %v240
        %v1273 = vunpack.c.l.b16 %v241
        %v1274 = vunpack.c.l.b16 %v242
        %v1275 = vunpack.c.l.b16 %v243
        %v1276 = vunpack.c.l.b16 %v244
        %v1277 = vunpack.c.l.b16 %v245
        %v1278 = vunpack.c.l.b16 %v246
        %v1279 = vunpack.c.l.b16 %v247
        %v1280 = vunpack.c.l.b16 %v248
        %v1281 = vunpack.c.l.b16 %v249
        %v1282 = vunpack.c.l.b16 %v250
        %v1283 = vunpack.c.l.b16 %v251
        %v1284 = vunpack.c.l.b16 %v252
        %v1285 = vunpack.c.l.b16 %v253
        %v1286 = vunpack.c.l.b16 %v254
        %v1287 = vunpack.c.l.b16 %v255
        %v1288 = vunpack.c.l.b16 %v256
        %v1289 = vunpack.c.l.b16 %v257
        %v1290 = vunpack.c.l.b16 %v258
        %v1291 = vunpack.c.l.b16 %v259
        %v1292 = vunpack.c.l.b16 %v260
        %v1293 = vunpack.c.l.b16 %v261
        %v1294 = vunpack.c.l.b16 %v262
        %v1295 = vunpack.c.l.b16 %v263
        %v1296 = vunpack.c.l.b16 %v264
        %v1297 = vunpack.c.l.b16 %v265
        %v1298 = vunpack.c.l.b16 %v266
        %v1299 = vunpack.c.l.b16 %v267
        %v1300 = vunpack.c.l.b16 %v268
        %v1301 = vunpack.c.l.b16 %v269
        %v1302 = vunpack.c.l.b16 %v270
        %v1303 = vunpack.c.l.b16 %v271
        %v1304 = vunpack.c.l.b16 %v272
        %v1305 = vunpack.c.l.b16 %v273
        %v1306 = vunpack.c.l.b16 %v274
        %v1307 = vunpack.c.l.b16 %v275
        %v1308 = vunpack.c.l.b16 %v276
        %v1309 = vunpack.c.l.b16 %v277
        %v1310 = vunpack.c.l.b16 %v278
        %v1311 = vunpack.c.l.b16 %v279
        %v1312 = vunpack.c.l.b16 %v280
        %v1313 = vunpack.c.l.b16 %v281
        %v1314 = vunpack.c.l.b16 %v282
        %v1315 = vunpack.c.l.b16 %v283
        %v1316 = vunpack.c.l.b16 %v284
        %v1317 = vunpack.c.l.b16 %v285
        %v1318 = vunpack.c.l.b16 %v286
        %v1319 = vunpack.c.l.b16 %v287
        %v1320 = vunpack.c.l.b16 %v288
        %v1321 = vunpack.c.l.b16 %v289
        %v1322 = vunpack.c.l.b16 %v290
        %v1323 = vunpack.c.l.b16 %v291
        %v1324 = vunpack.c.l.b16 %v292
        %v1325 = vunpack.c.l.b16 %v293
        %v1326 = vunpack.c.l.b16 %v294
        %v1327 = vunpack.c.l.b16 %v295
        %v1328 = vunpack.c.l.b16 %v296
        %v1329 = vunpack.c.l.b16 %v297
        %v1330 = vunpack.c.l.b16 %v298
        %v1331 = vunpack.c.l.b16 %v299
        %v1332 = vunpack.c.l.b16 %v300
        %v1333 = vunpack.c.l.b16 %v301
        %v1334 = vunpack.c.l.b16 %v302
        %v1335 = vunpack.c.l.b16 %v303
        %v1336 = vunpack.c.l.b16 %v304
        %v1337 = vunpack.c.l.b16 %v305
        %v1338 = vunpack.c.l.b16 %v306
        %v1339 = vunpack.c.l.b16 %v307
        %v1340 = vunpack.c.l.b16 %v308
        %v1341 = vunpack.c.l.b16 %v309
        %v1342 = vunpack.c.l.b16 %v310
        %v1343 = vunpack.c.l.b16 %v311
        %v1344 = vunpack.c.l.b16 %v312
        %v1345 = vunpack.c.l.b16 %v313
        %v1346 = vunpack.c.l.b16 %v314
        %v1347 = vunpack.c.l.b16 %v315
        %v1348 = vunpack.c.l.b16 %v316
        %v1349 = vunpack.c.l.b16 %v317
        %v1350 = vunpack.c.l.b16 %v318
        %v1351 = vunpack.c.l.b16 %v319
        %v1352 = vunpack.c.l.b16 %v320
        %v1353 = vunpack.c.l.b16 %v321
        %v1354 = vunpack.c.l.b16 %v322
        %v1355 = vunpack.c.l.b16 %v323
        %v1356 = vunpack.c.l.b16 %v324
        %v1357 = vunpack.c.l.b16 %v325
        %v1358 = vunpack.c.l.b16 %v326
        %v1359 = vunpack.c.l.b16 %v327
        %v1360 = vunpack.c.l.b16 %v328
        %v1361 = vunpack.c.l.b16 %v329
        %v1362 = vunpack.c.l.b16 %v330
        %v1363 = vunpack.c.l.b16 %v331
        %v1364 = vunpack.c.l.b16 %v332
        %v1365 = vunpack.c.l.b16 %v333
        %v1366 = vunpack.c.l.b16 %v334
        %v1367 = vunpack.c.l.b16 %v335
        %v1368 = vunpack.c.l.b16 %v336
        %v1369 = vunpack.c.l.b16 %v337
        %v1370 = vunpack.c.l.b16 %v338
        %v1371 = vunpack.c.l.b16 %v339
        %v1372 = vunpack.c.l.b16 %v340
        %v1373 = vunpack.c.l.b16 %v341
        %v1374 = vunpack.c.l.b16 %v342
        %v1375 = vunpack.c.l.b16 %v343
        %v1376 = vunpack.c.l.b16 %v344
        %v1377 = vunpack.c.l.b16 %v345
        %v1378 = vunpack.c.l.b16 %v346
        %v1379 = vunpack.c.l.b16 %v347
        %v1380 = vunpack.c.l.b16 %v348
        %v1381 = vunpack.c.l.b16 %v349
        %v1382 = vunpack.c.l.b16 %v350
        %v1383 = vunpack.c.l.b16 %v351
        %v1384 = vunpack.c.l.b16 %v352
        %v1385 = vunpack.c.l.b16 %v353
        %v1386 = vunpack.c.l.b16 %v354
        %v1387 = vunpack.c.l.b16 %v355
        %v1388 = vunpack.c.l.b16 %v356
        %v1389 = vunpack.c.l.b16 %v357
        %v1390 = vunpack.c.l.b16 %v358
        %v1391 = vunpack.c.l.b16 %v359
        %v1392 = vunpack.c.l.b16 %v360
        %v1393 = vunpack.c.l.b16 %v361
        %v1394 = vunpack.c.l.b16 %v362
        %v1395 = vunpack.c.l.b16 %v363
        %v1396 = vunpack.c.l.b16 %v364
        %v1397 = vunpack.c.l.b16 %v365
        %v1398 = vunpack.c.l.b16 %v366
        %v1399 = vunpack.c.l.b16 %v367
        %v1400 = vunpack.c.l.b16 %v368
        %v1401 = vunpack.c.l.b16 %v369
        %v1402 = vunpack.c.l.b16 %v370
        %v1403 = vunpack.c.l.b16 %v371
        %v1404 = vunpack.c.l.b16 %v372
        %v1405 = vunpack.c.l.b16 %v373
        %v1406 = vunpack.c.l.b16 %v374
        %v1407 = vunpack.c.l.b16 %v375
        %v1408 = vunpack.c.l.b16 %v376
        %v1409 = vunpack.c.l.b16 %v377
        %v1410 = vunpack.c.l.b16 %v378
        %v1411 = vunpack.c.l.b16 %v379
        %v1412 = vunpack.c.l.b16 %v380
        %v1413 = vunpack.c.l.b16 %v381
        %v1414 = vunpack.c.l.b16 %v382
        %v1415 = vunpack.c.l.b16 %v383
        %v1416 = vunpack.c.l.b16 %v384
        %v1417 = vunpack.c.l.b16 %v385
        %v1418 = vunpack.c.l.b16 %v386
        %v1419 = vunpack.c.l.b16 %v387
        %v1420 = vunpack.c.l.b16 %v388
        %v1421 = vunpack.c.l.b16 %v389
        %v1422 = vunpack.c.l.b16 %v390
        %v1423 = vunpack.c.l.b16 %v391
        %v1424 = vunpack.c.l.b16 %v392
        %v1425 = vunpack.c.l.b16 %v393
        %v1426 = vunpack.c.l.b16 %v394
        %v1427 = vunpack.c.l.b16 %v395
        %v1428 = vunpack.c.l.b16 %v396
        %v1429 = vunpack.c.l.b16 %v397
        %v1430 = vunpack.c.l.b16 %v398
        %v1431 = vunpack.c.l.b16 %v399
        %v1432 = vunpack.c.l.b16 %v400
        %v1433 = vunpack.c.l.b16 %v401
        %v1434 = vunpack.c.l.b16 %v402
        %v1435 = vunpack.c.l.b16 %v403
        %v1436 = vunpack.c.l.b16 %v404
        %v1437 = vunpack.c.l.b16 %v405
        %v1438 = vunpack.c.l.b16 %v406
        %v1439 = vunpack.c.l.b16 %v407
        %v1440 = vunpack.c.l.b16 %v408
        %v1441 = vunpack.c.l.b16 %v409
        %v1442 = vunpack.c.l.b16 %v410
        %v1443 = vunpack.c.l.b16 %v411
        %v1444 = vunpack.c.l.b16 %v412
        %v1445 = vunpack.c.l.b16 %v413
        %v1446 = vunpack.c.l.b16 %v414
        %v1447 = vunpack.c.l.b16 %v415
        %v1448 = vunpack.c.l.b16 %v416
        %v1449 = vunpack.c.l.b16 %v417
        %v1450 = vunpack.c.l.b16 %v418
        %v1451 = vunpack.c.l.b16 %v419
        %v1452 = vunpack.c.l.b16 %v420
        %v1453 = vunpack.c.l.b16 %v421
        %v1454 = vunpack.c.l.b16 %v422
        %v1455 = vunpack.c.l.b16 %v423
        %v1456 = vunpack.c.l.b16 %v424
        %v1457 = vunpack.c.l.b16 %v425
        %v1458 = vunpack.c.l.b16 %v426
        %v1459 = vunpack.c.l.b16 %v427
        %v1460 = vunpack.c.l.b16 %v428
        %v1461 = vunpack.c.l.b16 %v429
        %v1462 = vunpack.c.l.b16 %v430
        %v1463 = vunpack.c.l.b16 %v431
        %v1464 = vunpack.c.l.b16 %v432
        %v1465 = vunpack.c.l.b16 %v433
        %v1466 = vunpack.c.l.b16 %v434
        %v1467 = vunpack.c.l.b16 %v435
        %v1468 = vunpack.c.l.b16 %v436
        %v1469 = vunpack.c.l.b16 %v437
        %v1470 = vunpack.c.l.b16 %v438
        %v1471 = vunpack.c.l.b16 %v439
        %v1472 = vunpack.c.l.b16 %v440
        %v1473 = vunpack.c.l.b16 %v441
        %v1474 = vunpack.c.l.b16 %v442
        %v1475 = vunpack.c.l.b16 %v443
        %v1476 = vunpack.c.l.b16 %v444
        %v1477 = vunpack.c.l.b16 %v445
        %v1478 = vunpack.c.l.b16 %v446
        %v1479 = vunpack.c.l.b16 %v447
        %v1480 = vunpack.c.l.b16 %v448
        %v1481 = vunpack.c.l.b16 %v449
        %v1482 = vunpack.c.l.b16 %v450
        %v1483 = vunpack.c.l.b16 %v451
        %v1484 = vunpack.c.l.b16 %v452
        %v1485 = vunpack.c.l.b16 %v453
        %v1486 = vunpack.c.l.b16 %v454
        %v1487 = vunpack.c.l.b16 %v455
        %v1488 = vunpack.c.l.b16 %v456
        %v1489 = vunpack.c.l.b16 %v457
        %v1490 = vunpack.c.l.b16 %v458
        %v1491 = vunpack.c.l.b16 %v459
        %v1492 = vunpack.c.l.b16 %v460
        %v1493 = vunpack.c.l.b16 %v461
        %v1494 = vunpack.c.l.b16 %v462
        %v1495 = vunpack.c.l.b16 %v463
        %v1496 = vunpack.c.l.b16 %v464
        %v1497 = vunpack.c.l.b16 %v465
        %v1498 = vunpack.c.l.b16 %v466
        %v1499 = vunpack.c.l.b16 %v467
        %v1500 = vunpack.c.l.b16 %v468
        %v1501 = vunpack.c.l.b16 %v469
        %v1502 = vunpack.c.l.b16 %v470
        %v1503 = vunpack.c.l.b16 %v471
        %v1504 = vunpack.c.l.b16 %v472
        %v1505 = vunpack.c.l.b16 %v473
        %v1506 = vunpack.c.l.b16 %v474
        %v1507 = vunpack.c.l.b16 %v475
        %v1508 = vunpack.c.l.b16 %v476
        %v1509 = vunpack.c.l.b16 %v477
        %v1510 = vunpack.c.l.b16 %v478
        %v1511 = vunpack.c.l.b16 %v479
        %v1512 = vunpack.c.l.b16 %v480
        %v1513 = vunpack.c.l.b16 %v481
        %v1514 = vunpack.c.l.b16 %v482
        %v1515 = vunpack.c.l.b16 %v483
        %v1516 = vunpack.c.l.b16 %v484
        %v1517 = vunpack.c.l.b16 %v485
        %v1518 = vunpack.c.l.b16 %v486
        %v1519 = vunpack.c.l.b16 %v487
        %v1520 = vunpack.c.l.b16 %v488
        %v1521 = vunpack.c.l.b16 %v489
        %v1522 = vunpack.c.l.b16 %v490
        %v1523 = vunpack.c.l.b16 %v491
        %v1524 = vunpack.c.l.b16 %v492
        %v1525 = vunpack.c.l.b16 %v493
        %v1526 = vunpack.c.l.b16 %v494
        %v1527 = vunpack.c.l.b16 %v495
        %v1528 = vunpack.c.l.b16 %v496
        %v1529 = vunpack.c.l.b16 %v497
        %v1530 = vunpack.c.l.b16 %v498
        %v1531 = vunpack.c.l.b16 %v499
        %v1532 = vunpack.c.l.b16 %v500
        %v1533 = vunpack.c.l.b16 %v501
        %v1534 = vunpack.c.l.b16 %v502
        %v1535 = vunpack.c.l.b16 %v503
        %v1536 = vunpack.c.l.b16 %v504
        %v1537 = vunpack.c.l.b16 %v505
        %v1538 = vunpack.c.l.b16 %v506
        %v1539 = vunpack.c.l.b16 %v507
        %v1540 = vunpack.c.l.b16 %v508
        %v1541 = vunpack.c.l.b16 %v509
        %v1542 = vunpack.c.l.b16 %v510
        %v1543 = vunpack.c.l.b16 %v511
        %v1544 = vunpack.c.l.b16 %v512
        %v1545 = vunpack.c.l.b16 %v513
        %v1546 = vunpack.c.l.b16 %v514
        %v1547 = vunpack.c.l.b16 %v515
        %v1548 = vunpack.c.l.b16 %v516
        %v1549 = vunpack.c.l.b16 %v517
        %v1550 = vunpack.c.l.b16 %v518
        %v1551 = vunpack.c.l.b16 %v519
        %v1552 = vunpack.c.l.b16 %v520
        %v1553 = vunpack.c.l.b16 %v521
        %v1554 = vunpack.c.l.b16 %v522
        %v1555 = vunpack.c.l.b16 %v523
        %v1556 = vunpack.c.l.b16 %v524
        %v1557 = vunpack.c.l.b16 %v525
        %v1558 = vunpack.c.l.b16 %v526
        %v1559 = vunpack.c.l.b16 %v527
        %v1560 = vunpack.c.l.b16 %v528
        %v1561 = vunpack.c.l.b16 %v529
        %v1562 = vunpack.c.l.b16 %v530
        %v1563 = vunpack.c.l.b16 %v531
        %v1564 = vunpack.c.l.b16 %v532
        %v1565 = vunpack.c.l.b16 %v533
        %v1566 = vunpack.c.l.b16 %v534
        %v1567 = vunpack.c.l.b16 %v535
        %v1568 = vunpack.c.l.b16 %v536
        %v1569 = vunpack.c.l.b16 %v537
        %v1570 = vunpack.c.l.b16 %v538
        %v1571 = vunpack.c.l.b16 %v539
        %v1572 = vunpack.c.l.b16 %v540
        %v1573 = vunpack.c.l.b16 %v541
        %v1574 = vunpack.c.l.b16 %v542
        %v1575 = vunpack.c.l.b16 %v543
        %v1576 = vunpack.c.l.b16 %v544
        %v1577 = vunpack.c.l.b16 %v545
        %v1578 = vunpack.c.l.b16 %v546
        %v1579 = vunpack.c.l.b16 %v547
        %v1580 = vunpack.c.l.b16 %v548
        %v1581 = vunpack.c.l.b16 %v549
        %v1582 = vunpack.c.l.b16 %v550
        %v1583 = vunpack.c.l.b16 %v551
        %v1584 = vunpack.c.l.b16 %v552
        %v1585 = vunpack.c.l.b16 %v553
        %v1586 = vunpack.c.l.b16 %v554
        %v1587 = vunpack.c.l.b16 %v555
        %v1588 = vunpack.c.l.b16 %v556
        %v1589 = vunpack.c.l.b16 %v557
        %v1590 = vunpack.c.l.b16 %v558
        %v1591 = vunpack.c.l.b16 %v559
        %v1592 = vunpack.c.l.b16 %v560
        %v1593 = vunpack.c.l.b16 %v561
        %v1594 = vunpack.c.l.b16 %v562
        %v1595 = vunpack.c.l.b16 %v563
        %v1596 = vunpack.c.l.b16 %v564
        %v1597 = vunpack.c.l.b16 %v565
        %v1598 = vunpack.c.l.b16 %v566
        %v1599 = vunpack.c.l.b16 %v567
        %v1600 = vunpack.c.l.b16 %v568
        %v1601 = vunpack.c.l.b16 %v569
        %v1602 = vunpack.c.l.b16 %v570
        %v1603 = vunpack.c.l.b16 %v571
        %v1604 = vunpack.c.l.b16 %v572
        %v1605 = vunpack.c.l.b16 %v573
        %v1606 = vunpack.c.l.b16 %v574
        %v1607 = vunpack.c.l.b16 %v575
        %v1608 = vunpack.c.l.b16 %v576
        %v1609 = vunpack.c.l.b16 %v577
        %v1610 = vunpack.c.l.b16 %v578
        %v1611 = vunpack.c.l.b16 %v579
        %v1612 = vunpack.c.l.b16 %v580
        %v1613 = vunpack.c.l.b16 %v581
        %v1614 = vunpack.c.l.b16 %v582
        %v1615 = vunpack.c.l.b16 %v583
        %v1616 = vunpack.c.l.b16 %v584
        %v1617 = vunpack.c.l.b16 %v585
        %v1618 = vunpack.c.l.b16 %v586
        %v1619 = vunpack.c.l.b16 %v587
        %v1620 = vunpack.c.l.b16 %v588
        %v1621 = vunpack.c.l.b16 %v589
        %v1622 = vunpack.c.l.b16 %v590
        %v1623 = vunpack.c.l.b16 %v591
        %v1624 = vunpack.c.l.b16 %v592
        %v1625 = vunpack.c.l.b16 %v593
        %v1626 = vunpack.c.l.b16 %v594
        %v1627 = vunpack.c.l.b16 %v595
        %v1628 = vunpack.c.l.b16 %v596
        %v1629 = vunpack.c.l.b16 %v597
        %v1630 = vunpack.c.l.b16 %v598
        %v1631 = vunpack.c.l.b16 %v599
        %v1632 = vunpack.c.l.b16 %v600
        %v1633 = vunpack.c.l.b16 %v601
        %v1634 = vunpack.c.l.b16 %v602
        %v1635 = vunpack.c.l.b16 %v603
        %v1636 = vunpack.c.l.b16 %v604
        %v1637 = vunpack.c.l.b16 %v605
        %v1638 = vunpack.c.l.b16 %v606
        %v1639 = vunpack.c.l.b16 %v607
        %v1640 = vunpack.c.l.b16 %v608
        %v1641 = vunpack.c.l.b16 %v609
        %v1642 = vunpack.c.l.b16 %v610
        %v1643 = vunpack.c.l.b16 %v611
        %v1644 = vunpack.c.l.b16 %v612
        %v1645 = vunpack.c.l.b16 %v613
        %v1646 = vunpack.c.l.b16 %v614
        %v1647 = vunpack.c.l.b16 %v615
        %v1648 = vunpack.c.l.b16 %v616
        %v1649 = vunpack.c.l.b16 %v617
        %v1650 = vunpack.c.l.b16 %v618
        %v1651 = vunpack.c.l.b16 %v619
        %v1652 = vunpack.c.l.b16 %v620
        %v1653 = vunpack.c.l.b16 %v621
        %v1654 = vunpack.c.l.b16 %v622
        %v1655 = vunpack.c.l.b16 %v623
        %v1656 = vunpack.c.l.b16 %v624
        %v1657 = vunpack.c.l.b16 %v625
        %v1658 = vunpack.c.l.b16 %v626
        %v1659 = vunpack.c.l.b16 %v627
        %v1660 = vunpack.c.l.b16 %v628
        %v1661 = vunpack.c.l.b16 %v629
        %v1662 = vunpack.c.l.b16 %v630
        %v1663 = vunpack.c.l.b16 %v631
        %v1664 = vunpack.c.l.b16 %v632
        %v1665 = vunpack.c.l.b16 %v633
        %v1666 = vunpack.c.l.b16 %v634
        %v1667 = vunpack.c.l.b16 %v635
        %v1668 = vunpack.c.l.b16 %v636
        %v1669 = vunpack.c.l.b16 %v637
        %v1670 = vunpack.c.l.b16 %v638
        %v1671 = vunpack.c.l.b16 %v639
        %v1672 = vunpack.c.l.b16 %v640
        %v1673 = vunpack.c.l.b16 %v641
        %v1674 = vunpack.c.l.b16 %v642
        %v1675 = vunpack.c.l.b16 %v643
        %v1676 = vunpack.c.l.b16 %v644
        %v1677 = vunpack.c.l.b16 %v645
        %v1678 = vunpack.c.l.b16 %v646
        %v1679 = vunpack.c.l.b16 %v647
        %v1680 = vunpack.c.l.b16 %v648
        %v1681 = vunpack.c.l.b16 %v649
        %v1682 = vunpack.c.l.b16 %v650
        %v1683 = vunpack.c.l.b16 %v651
        %v1684 = vunpack.c.l.b16 %v652
        %v1685 = vunpack.c.l.b16 %v653
        %v1686 = vunpack.c.l.b16 %v654
        %v1687 = vunpack.c.l.b16 %v655
        %v1688 = vunpack.c.l.b16 %v656
        %v1689 = vunpack.c.l.b16 %v657
        %v1690 = vunpack.c.l.b16 %v658
        %v1691 = vunpack.c.l.b16 %v659
        %v1692 = vunpack.c.l.b16 %v660
        %v1693 = vunpack.c.l.b16 %v661
        %v1694 = vunpack.c.l.b16 %v662
        %v1695 = vunpack.c.l.b16 %v663
        %v1696 = vunpack.c.l.b16 %v664
        %v1697 = vunpack.c.l.b16 %v665
        %v1698 = vunpack.c.l.b16 %v666
        %v1699 = vunpack.c.l.b16 %v667
        %v1700 = vunpack.c.l.b16 %v668
        %v1701 = vunpack.c.l.b16 %v669
        %v1702 = vunpack.c.l.b16 %v670
        %v1703 = vunpack.c.l.b16 %v671
        %v1704 = vunpack.c.l.b16 %v672
        %v1705 = vunpack.c.l.b16 %v673
        %v1706 = vunpack.c.l.b16 %v674
        %v1707 = vunpack.c.l.b16 %v675
        %v1708 = vunpack.c.l.b16 %v676
        %v1709 = vunpack.c.l.b16 %v677
        %v1710 = vunpack.c.l.b16 %v678
        %v1711 = vunpack.c.l.b16 %v679
        %v1712 = vunpack.c.l.b16 %v680
        %v1713 = vunpack.c.l.b16 %v681
        %v1714 = vunpack.c.l.b16 %v682
        %v1715 = vunpack.c.l.b16 %v683
        %v1716 = vunpack.c.l.b16 %v684
        %v1717 = vpack.c.b16 %v1206, %v1205
        %v1718 = vpack.c.b16 %v1208, %v1207
        %v1719 = vpack.c.b16 %v1210, %v1209
        %v1720 = vpack.c.b16 %v1212, %v1211
        %v1721 = vpack.c.b16 %v1214, %v1213
        %v1722 = vpack.c.b16 %v1216, %v1215
        %v1723 = vpack.c.b16 %v1218, %v1217
        %v1724 = vpack.c.b16 %v1220, %v1219
        %v1725 = vpack.c.b16 %v1222, %v1221
        %v1726 = vpack.c.b16 %v1224, %v1223
        %v1727 = vpack.c.b16 %v1226, %v1225
        %v1728 = vpack.c.b16 %v1228, %v1227
        %v1729 = vpack.c.b16 %v1230, %v1229
        %v1730 = vpack.c.b16 %v1232, %v1231
        %v1731 = vpack.c.b16 %v1234, %v1233
        %v1732 = vpack.c.b16 %v1236, %v1235
        %v1733 = vpack.c.b16 %v1238, %v1237
        %v1734 = vpack.c.b16 %v1240, %v1239
        %v1735 = vpack.c.b16 %v1242, %v1241
        %v1736 = vpack.c.b16 %v1244, %v1243
        %v1737 = vpack.c.b16 %v1246, %v1245
        %v1738 = vpack.c.b16 %v1248, %v1247
        %v1739 = vpack.c.b16 %v1250, %v1249
        %v1740 = vpack.c.b16 %v1252, %v1251
        %v1741 = vpack.c.b16 %v1254, %v1253
        %v1742 = vpack.c.b16 %v1256, %v1255
        %v1743 = vpack.c.b16 %v1258, %v1257
        %v1744 = vpack.c.b16 %v1260, %v1259
        %v1745 = vpack.c.b16 %v1262, %v1261
        %v1746 = vpack.c.b16 %v1264, %v1263
        %v1747 = vpack.c.b16 %v1266, %v1265
        %v1748 = vpack.c.b16 %v1268, %v1267
        %v1749 = vpack.c.b16 %v1270, %v1269
        %v1750 = vpack.c.b16 %v1272, %v1271
        %v1751 = vpack.c.b16 %v1274, %v1273
        %v1752 = vpack.c.b16 %v1276, %v1275
        %v1753 = vpack.c.b16 %v1278, %v1277
        %v1754 = vpack.c.b16 %v1280, %v1279
        %v1755 = vpack.c.b16 %v1282, %v1281
        %v1756 = vpack.c.b16 %v1284, %v1283
        %v1757 = vpack.c.b16 %v1286, %v1285
        %v1758 = vpack.c.b16 %v1288, %v1287
        %v1759 = vpack.c.b16 %v1290, %v1289
        %v1760 = vpack.c.b16 %v1292, %v1291
        %v1761 = vpack.c.b16 %v1294, %v1293
        %v1762 = vpack.c.b16 %v1296, %v1295
        %v1763 = vpack.c.b16 %v1298, %v1297
        %v1764 = vpack.c.b16 %v1300, %v1299
        %v1765 = vpack.c.b16 %v1302, %v1301
        %v1766 = vpack.c.b16 %v1304, %v1303
        %v1767 = vpack.c.b16 %v1306, %v1305
        %v1768 = vpack.c.b16 %v1308, %v1307
        %v1769 = vpack.c.b16 %v1310, %v1309
        %v1770 = vpack.c.b16 %v1312, %v1311
        %v1771 = vpack.c.b16 %v1314, %v1313
        %v1772 = vpack.c.b16 %v1316, %v1315
        %v1773 = vpack.c.b16 %v1318, %v1317
        %v1774 = vpack.c.b16 %v1320, %v1319
        %v1775 = vpack.c.b16 %v1322, %v1321
        %v1776 = vpack.c.b16 %v1324, %v1323
        %v1777 = vpack.c.b16 %v1326, %v1325
        %v1778 = vpack.c.b16 %v1328, %v1327
        %v1779 = vpack.c.b16 %v1330, %v1329
        %v1780 = vpack.c.b16 %v1332, %v1331
        %v1781 = vpack.c.b16 %v1334, %v1333
        %v1782 = vpack.c.b16 %v1336, %v1335
        %v1783 = vpack.c.b16 %v1338, %v1337
        %v1784 = vpack.c.b16 %v1340, %v1339
        %v1785 = vpack.c.b16 %v1342, %v1341
        %v1786 = vpack.c.b16 %v1344, %v1343
        %v1787 = vpack.c.b16 %v1346, %v1345
        %v1788 = vpack.c.b16 %v1348, %v1347
        %v1789 = vpack.c.b16 %v1350, %v1349
        %v1790 = vpack.c.b16 %v1352, %v1351
        %v1791 = vpack.c.b16 %v1354, %v1353
        %v1792 = vpack.c.b16 %v1356, %v1355
        %v1793 = vpack.c.b16 %v1358, %v1357
        %v1794 = vpack.c.b16 %v1360, %v1359
        %v1795 = vpack.c.b16 %v1362, %v1361
        %v1796 = vpack.c.b16 %v1364, %v1363
        %v1797 = vpack.c.b16 %v1366, %v1365
        %v1798 = vpack.c.b16 %v1368, %v1367
        %v1799 = vpack.c.b16 %v1370, %v1369
        %v1800 = vpack.c.b16 %v1372, %v1371
        %v1801 = vpack.c.b16 %v1374, %v1373
        %v1802 = vpack.c.b16 %v1376, %v1375
        %v1803 = vpack.c.b16 %v1378, %v1377
        %v1804 = vpack.c.b16 %v1380, %v1379
        %v1805 = vpack.c.b16 %v1382, %v1381
        %v1806 = vpack.c.b16 %v1384, %v1383
        %v1807 = vpack.c.b16 %v1386, %v1385
        %v1808 = vpack.c.b16 %v1388, %v1387
        %v1809 = vpack.c.b16 %v1390, %v1389
        %v1810 = vpack.c.b16 %v1392, %v1391
        %v1811 = vpack.c.b16 %v1394, %v1393
        %v1812 = vpack.c.b16 %v1396, %v1395
        %v1813 = vpack.c.b16 %v1398, %v1397
        %v1814 = vpack.c.b16 %v1400, %v1399
        %v1815 = vpack.c.b16 %v1402, %v1401
        %v1816 = vpack.c.b16 %v1404, %v1403
        %v1817 = vpack.c.b16 %v1406, %v1405
        %v1818 = vpack.c.b16 %v1408, %v1407
        %v1819 = vpack.c.b16 %v1410, %v1409
        %v1820 = vpack.c.b16 %v1412, %v1411
        %v1821 = vpack.c.b16 %v1414, %v1413
        %v1822 = vpack.c.b16 %v1416, %v1415
        %v1823 = vpack.c.b16 %v1418, %v1417
        %v1824 = vpack.c.b16 %v1420, %v1419
        %v1825 = vpack.c.b16 %v1422, %v1421
        %v1826 = vpack.c.b16 %v1424, %v1423
        %v1827 = vpack.c.b16 %v1426, %v1425
        %v1828 = vpack.c.b16 %v1428, %v1427
        %v1829 = vpack.c.b16 %v1430, %v1429
        %v1830 = vpack.c.b16 %v1432, %v1431
        %v1831 = vpack.c.b16 %v1434, %v1433
        %v1832 = vpack.c.b16 %v1436, %v1435
        %v1833 = vpack.c.b16 %v1438, %v1437
        %v1834 = vpack.c.b16 %v1440, %v1439
        %v1835 = vpack.c.b16 %v1442, %v1441
        %v1836 = vpack.c.b16 %v1444, %v1443
        %v1837 = vpack.c.b16 %v1446, %v1445
        %v1838 = vpack.c.b16 %v1448, %v1447
        %v1839 = vpack.c.b16 %v1450, %v1449
        %v1840 = vpack.c.b16 %v1452, %v1451
        %v1841 = vpack.c.b16 %v1454, %v1453
        %v1842 = vpack.c.b16 %v1456, %v1455
        %v1843 = vpack.c.b16 %v1458, %v1457
        %v1844 = vpack.c.b16 %v1460, %v1459
        %v1845 = vpack.c.b16 %v1462, %v1461
        %v1846 = vpack.c.b16 %v1464, %v1463
        %v1847 = vpack.c.b16 %v1466, %v1465
        %v1848 = vpack.c.b16 %v1468, %v1467
        %v1849 = vpack.c.b16 %v1470, %v1469
        %v1850 = vpack.c.b16 %v1472, %v1471
        %v1851 = vpack.c.b16 %v1474, %v1473
        %v1852 = vpack.c.b16 %v1476, %v1475
        %v1853 = vpack.c.b16 %v1478, %v1477
        %v1854 = vpack.c.b16 %v1480, %v1479
        %v1855 = vpack.c.b16 %v1482, %v1481
        %v1856 = vpack.c.b16 %v1484, %v1483
        %v1857 = vpack.c.b16 %v1486, %v1485
        %v1858 = vpack.c.b16 %v1488, %v1487
        %v1859 = vpack.c.b16 %v1490, %v1489
        %v1860 = vpack.c.b16 %v1492, %v1491
        %v1861 = vpack.c.b16 %v1494, %v1493
        %v1862 = vpack.c.b16 %v1496, %v1495
        %v1863 = vpack.c.b16 %v1498, %v1497
        %v1864 = vpack.c.b16 %v1500, %v1499
        %v1865 = vpack.c.b16 %v1502, %v1501
        %v1866 = vpack.c.b16 %v1504, %v1503
        %v1867 = vpack.c.b16 %v1506, %v1505
        %v1868 = vpack.c.b16 %v1508, %v1507
        %v1869 = vpack.c.b16 %v1510, %v1509
        %v1870 = vpack.c.b16 %v1512, %v1511
        %v1871 = vpack.c.b16 %v1514, %v1513
        %v1872 = vpack.c.b16 %v1516, %v1515
        %v1873 = vpack.c.b16 %v1518, %v1517
        %v1874 = vpack.c.b16 %v1520, %v1519
        %v1875 = vpack.c.b16 %v1522, %v1521
        %v1876 = vpack.c.b16 %v1524, %v1523
        %v1877 = vpack.c.b16 %v1526, %v1525
        %v1878 = vpack.c.b16 %v1528, %v1527
        %v1879 = vpack.c.b16 %v1530, %v1529
        %v1880 = vpack.c.b16 %v1532, %v1531
        %v1881 = vpack.c.b16 %v1534, %v1533
        %v1882 = vpack.c.b16 %v1536, %v1535
        %v1883 = vpack.c.b16 %v1538, %v1537
        %v1884 = vpack.c.b16 %v1540, %v1539
        %v1885 = vpack.c.b16 %v1542, %v1541
        %v1886 = vpack.c.b16 %v1544, %v1543
        %v1887 = vpack.c.b16 %v1546, %v1545
        %v1888 = vpack.c.b16 %v1548, %v1547
        %v1889 = vpack.c.b16 %v1550, %v1549
        %v1890 = vpack.c.b16 %v1552, %v1551
        %v1891 = vpack.c.b16 %v1554, %v1553
        %v1892 = vpack.c.b16 %v1556, %v1555
        %v1893 = vpack.c.b16 %v1558, %v1557
        %v1894 = vpack.c.b16 %v1560, %v1559
        %v1895 = vpack.c.b16 %v1562, %v1561
        %v1896 = vpack.c.b16 %v1564, %v1563
        %v1897 = vpack.c.b16 %v1566, %v1565
        %v1898 = vpack.c.b16 %v1568, %v1567
        %v1899 = vpack.c.b16 %v1570, %v1569
        %v1900 = vpack.c.b16 %v1572, %v1571
        %v1901 = vpack.c.b16 %v1574, %v1573
        %v1902 = vpack.c.b16 %v1576, %v1575
        %v1903 = vpack.c.b16 %v1578, %v1577
        %v1904 = vpack.c.b16 %v1580, %v1579
        %v1905 = vpack.c.b16 %v1582, %v1581
        %v1906 = vpack.c.b16 %v1584, %v1583
        %v1907 = vpack.c.b16 %v1586, %v1585
        %v1908 = vpack.c.b16 %v1588, %v1587
        %v1909 = vpack.c.b16 %v1590, %v1589
        %v1910 = vpack.c.b16 %v1592, %v1591
        %v1911 = vpack.c.b16 %v1594, %v1593
        %v1912 = vpack.c.b16 %v1596, %v1595
        %v1913 = vpack.c.b16 %v1598, %v1597
        %v1914 = vpack.c.b16 %v1600, %v1599
        %v1915 = vpack.c.b16 %v1602, %v1601
        %v1916 = vpack.c.b16 %v1604, %v1603
        %v1917 = vpack.c.b16 %v1606, %v1605
        %v1918 = vpack.c.b16 %v1608, %v1607
        %v1919 = vpack.c.b16 %v1610, %v1609
        %v1920 = vpack.c.b16 %v1612, %v1611
        %v1921 = vpack.c.b16 %v1614, %v1613
        %v1922 = vpack.c.b16 %v1616, %v1615
        %v1923 = vpack.c.b16 %v1618, %v1617
        %v1924 = vpack.c.b16 %v1620, %v1619
        %v1925 = vpack.c.b16 %v1622, %v1621
        %v1926 = vpack.c.b16 %v1624, %v1623
        %v1927 = vpack.c.b16 %v1626, %v1625
        %v1928 = vpack.c.b16 %v1628, %v1627
        %v1929 = vpack.c.b16 %v1630, %v1629
        %v1930 = vpack.c.b16 %v1632, %v1631
        %v1931 = vpack.c.b16 %v1634, %v1633
        %v1932 = vpack.c.b16 %v1636, %v1635
        %v1933 = vpack.c.b16 %v1638, %v1637
        %v1934 = vpack.c.b16 %v1640, %v1639
        %v1935 = vpack.c.b16 %v1642, %v1641
        %v1936 = vpack.c.b16 %v1644, %v1643
        %v1937 = vpack.c.b16 %v1646, %v1645
        %v1938 = vpack.c.b16 %v1648, %v1647
        %v1939 = vpack.c.b16 %v1650, %v1649
        %v1940 = vpack.c.b16 %v1652, %v1651
        %v1941 = vpack.c.b16 %v1654, %v1653
        %v1942 = vpack.c.b16 %v1656, %v1655
        %v1943 = vpack.c.b16 %v1658, %v1657
        %v1944 = vpack.c.b16 %v1660, %v1659
        %v1945 = vpack.c.b16 %v1662, %v1661
        %v1946 = vpack.c.b16 %v1664, %v1663
        %v1947 = vpack.c.b16 %v1666, %v1665
        %v1948 = vpack.c.b16 %v1668, %v1667
        %v1949 = vpack.c.b16 %v1670, %v1669
        %v1950 = vpack.c.b16 %v1672, %v1671
        %v1951 = vpack.c.b16 %v1674, %v1673
        %v1952 = vpack.c.b16 %v1676, %v1675
        %v1953 = vpack.c.b16 %v1678, %v1677
        %v1954 = vpack.c.b16 %v1680, %v1679
        %v1955 = vpack.c.b16 %v1682, %v1681
        %v1956 = vpack.c.b16 %v1684, %v1683
        %v1957 = vpack.c.b16 %v1686, %v1685
        %v1958 = vpack.c.b16 %v1688, %v1687
        %v1959 = vpack.c.b16 %v1690, %v1689
        %v1960 = vpack.c.b16 %v1692, %v1691
        %v1961 = vpack.c.b16 %v1694, %v1693
        %v1962 = vpack.c.b16 %v1696, %v1695
        %v1963 = vpack.c.b16 %v1698, %v1697
        %v1964 = vpack.c.b16 %v1700, %v1699
        %v1965 = vpack.c.b16 %v1702, %v1701
        %v1966 = vpack.c.b16 %v1704, %v1703
        %v1967 = vpack.c.b16 %v1706, %v1705
        %v1968 = vpack.c.b16 %v1708, %v1707
        %v1969 = vpack.c.b16 %v1710, %v1709
        %v1970 = vpack.c.b16 %v1712, %v1711
        %v1971 = vpack.c.b16 %v1714, %v1713
        %v1972 = vpack.c.b16 %v1716, %v1715
        %vm1973 = vcmask 23552
        %v1975 = vsel %vm1973, %v1717, 0
        %v1978 = vsel %vm1973, %v1718, 0
        %v1981 = vsel %vm1973, %v1719, 0
        %v1984 = vsel %vm1973, %v1720, 0
        %v1987 = vsel %vm1973, %v1721, 0
        %v1990 = vsel %vm1973, %v1722, 0
        %v1993 = vsel %vm1973, %v1723, 0
        %v1996 = vsel %vm1973, %v1724, 0
        %v1999 = vsel %vm1973, %v1725, 0
        %v2002 = vsel %vm1973, %v1726, 0
        %v2005 = vsel %vm1973, %v1727, 0
        %v2008 = vsel %vm1973, %v1728, 0
        %v2011 = vsel %vm1973, %v1729, 0
        %v2014 = vsel %vm1973, %v1730, 0
        %v2017 = vsel %vm1973, %v1731, 0
        %v2020 = vsel %vm1973, %v1732, 0
        %v2023 = vsel %vm1973, %v1733, 0
        %v2026 = vsel %vm1973, %v1734, 0
        %v2029 = vsel %vm1973, %v1735, 0
        %v2032 = vsel %vm1973, %v1736, 0
        %v2035 = vsel %vm1973, %v1737, 0
        %v2038 = vsel %vm1973, %v1738, 0
        %v2041 = vsel %vm1973, %v1739, 0
        %v2044 = vsel %vm1973, %v1740, 0
        %v2047 = vsel %vm1973, %v1741, 0
        %v2050 = vsel %vm1973, %v1742, 0
        %v2053 = vsel %vm1973, %v1743, 0
        %v2056 = vsel %vm1973, %v1744, 0
        %v2059 = vsel %vm1973, %v1745, 0
        %v2062 = vsel %vm1973, %v1746, 0
        %v2065 = vsel %vm1973, %v1747, 0
        %v2068 = vsel %vm1973, %v1748, 0
        %v2071 = vsel %vm1973, %v1749, 0
        %v2074 = vsel %vm1973, %v1750, 0
        %v2077 = vsel %vm1973, %v1751, 0
        %v2080 = vsel %vm1973, %v1752, 0
        %v2083 = vsel %vm1973, %v1753, 0
        %v2086 = vsel %vm1973, %v1754, 0
        %v2089 = vsel %vm1973, %v1755, 0
        %v2092 = vsel %vm1973, %v1756, 0
        %v2095 = vsel %vm1973, %v1757, 0
        %v2098 = vsel %vm1973, %v1758, 0
        %v2101 = vsel %vm1973, %v1759, 0
        %v2104 = vsel %vm1973, %v1760, 0
        %v2107 = vsel %vm1973, %v1761, 0
        %v2110 = vsel %vm1973, %v1762, 0
        %v2113 = vsel %vm1973, %v1763, 0
        %v2116 = vsel %vm1973, %v1764, 0
        %v2119 = vsel %vm1973, %v1765, 0
        %v2122 = vsel %vm1973, %v1766, 0
        %v2125 = vsel %vm1973, %v1767, 0
        %v2128 = vsel %vm1973, %v1768, 0
        %v2131 = vsel %vm1973, %v1769, 0
        %v2134 = vsel %vm1973, %v1770, 0
        %v2137 = vsel %vm1973, %v1771, 0
        %v2140 = vsel %vm1973, %v1772, 0
        %v2143 = vsel %vm1973, %v1773, 0
        %v2146 = vsel %vm1973, %v1774, 0
        %v2149 = vsel %vm1973, %v1775, 0
        %v2152 = vsel %vm1973, %v1776, 0
        %v2155 = vsel %vm1973, %v1777, 0
        %v2158 = vsel %vm1973, %v1778, 0
        %v2161 = vsel %vm1973, %v1779, 0
        %v2164 = vsel %vm1973, %v1780, 0
        %v2167 = vsel %vm1973, %v1781, 0
        %v2170 = vsel %vm1973, %v1782, 0
        %v2173 = vsel %vm1973, %v1783, 0
        %v2176 = vsel %vm1973, %v1784, 0
        %v2179 = vsel %vm1973, %v1785, 0
        %v2182 = vsel %vm1973, %v1786, 0
        %v2185 = vsel %vm1973, %v1787, 0
        %v2188 = vsel %vm1973, %v1788, 0
        %v2191 = vsel %vm1973, %v1789, 0
        %v2194 = vsel %vm1973, %v1790, 0
        %v2197 = vsel %vm1973, %v1791, 0
        %v2200 = vsel %vm1973, %v1792, 0
        %v2203 = vsel %vm1973, %v1793, 0
        %v2206 = vsel %vm1973, %v1794, 0
        %v2209 = vsel %vm1973, %v1795, 0
        %v2212 = vsel %vm1973, %v1796, 0
        %v2215 = vsel %vm1973, %v1797, 0
        %v2218 = vsel %vm1973, %v1798, 0
        %v2221 = vsel %vm1973, %v1799, 0
        %v2224 = vsel %vm1973, %v1800, 0
        %v2227 = vsel %vm1973, %v1801, 0
        %v2230 = vsel %vm1973, %v1802, 0
        %v2233 = vsel %vm1973, %v1803, 0
        %v2236 = vsel %vm1973, %v1804, 0
        %v2239 = vsel %vm1973, %v1805, 0
        %v2242 = vsel %vm1973, %v1806, 0
        %v2245 = vsel %vm1973, %v1807, 0
        %v2248 = vsel %vm1973, %v1808, 0
        %v2251 = vsel %vm1973, %v1809, 0
        %v2254 = vsel %vm1973, %v1810, 0
        %v2257 = vsel %vm1973, %v1811, 0
        %v2260 = vsel %vm1973, %v1812, 0
        %v2263 = vsel %vm1973, %v1813, 0
        %v2266 = vsel %vm1973, %v1814, 0
        %v2269 = vsel %vm1973, %v1815, 0
        %v2272 = vsel %vm1973, %v1816, 0
        %v2275 = vsel %vm1973, %v1817, 0
        %v2278 = vsel %vm1973, %v1818, 0
        %v2281 = vsel %vm1973, %v1819, 0
        %v2284 = vsel %vm1973, %v1820, 0
        %v2287 = vsel %vm1973, %v1821, 0
        %v2290 = vsel %vm1973, %v1822, 0
        %v2293 = vsel %vm1973, %v1823, 0
        %v2296 = vsel %vm1973, %v1824, 0
        %v2299 = vsel %vm1973, %v1825, 0
        %v2302 = vsel %vm1973, %v1826, 0
        %v2305 = vsel %vm1973, %v1827, 0
        %v2308 = vsel %vm1973, %v1828, 0
        %v2311 = vsel %vm1973, %v1829, 0
        %v2314 = vsel %vm1973, %v1830, 0
        %v2317 = vsel %vm1973, %v1831, 0
        %v2320 = vsel %vm1973, %v1832, 0
        %v2323 = vsel %vm1973, %v1833, 0
        %v2326 = vsel %vm1973, %v1834, 0
        %v2329 = vsel %vm1973, %v1835, 0
        %v2332 = vsel %vm1973, %v1836, 0
        %v2335 = vsel %vm1973, %v1837, 0
        %v2338 = vsel %vm1973, %v1838, 0
        %v2341 = vsel %vm1973, %v1839, 0
        %v2344 = vsel %vm1973, %v1840, 0
        %v2347 = vsel %vm1973, %v1841, 0
        %v2350 = vsel %vm1973, %v1842, 0
        %v2353 = vsel %vm1973, %v1843, 0
        %v2356 = vsel %vm1973, %v1844, 0
        %v2359 = vsel %vm1973, %v1845, 0
        %v2362 = vsel %vm1973, %v1846, 0
        %v2365 = vsel %vm1973, %v1847, 0
        %v2368 = vsel %vm1973, %v1848, 0
        %v2371 = vsel %vm1973, %v1849, 0
        %v2374 = vsel %vm1973, %v1850, 0
        %v2377 = vsel %vm1973, %v1851, 0
        %v2380 = vsel %vm1973, %v1852, 0
        %v2383 = vsel %vm1973, %v1853, 0
        %v2386 = vsel %vm1973, %v1854, 0
        %v2389 = vsel %vm1973, %v1855, 0
        %v2392 = vsel %vm1973, %v1856, 0
        %v2395 = vsel %vm1973, %v1857, 0
        %v2398 = vsel %vm1973, %v1858, 0
        %v2401 = vsel %vm1973, %v1859, 0
        %v2404 = vsel %vm1973, %v1860, 0
        %v2407 = vsel %vm1973, %v1861, 0
        %v2410 = vsel %vm1973, %v1862, 0
        %v2413 = vsel %vm1973, %v1863, 0
        %v2416 = vsel %vm1973, %v1864, 0
        %v2419 = vsel %vm1973, %v1865, 0
        %v2422 = vsel %vm1973, %v1866, 0
        %v2425 = vsel %vm1973, %v1867, 0
        %v2428 = vsel %vm1973, %v1868, 0
        %v2431 = vsel %vm1973, %v1869, 0
        %v2434 = vsel %vm1973, %v1870, 0
        %v2437 = vsel %vm1973, %v1871, 0
        %v2440 = vsel %vm1973, %v1872, 0
        %v2443 = vsel %vm1973, %v1873, 0
        %v2446 = vsel %vm1973, %v1874, 0
        %v2449 = vsel %vm1973, %v1875, 0
        %v2452 = vsel %vm1973, %v1876, 0
        %v2455 = vsel %vm1973, %v1877, 0
        %v2458 = vsel %vm1973, %v1878, 0
        %v2461 = vsel %vm1973, %v1879, 0
        %v2464 = vsel %vm1973, %v1880, 0
        %v2467 = vsel %vm1973, %v1881, 0
        %v2470 = vsel %vm1973, %v1882, 0
        %v2473 = vsel %vm1973, %v1883, 0
        %v2476 = vsel %vm1973, %v1884, 0
        %v2479 = vsel %vm1973, %v1885, 0
        %v2482 = vsel %vm1973, %v1886, 0
        %v2485 = vsel %vm1973, %v1887, 0
        %v2488 = vsel %vm1973, %v1888, 0
        %v2491 = vsel %vm1973, %v1889, 0
        %v2494 = vsel %vm1973, %v1890, 0
        %v2497 = vsel %vm1973, %v1891, 0
        %v2500 = vsel %vm1973, %v1892, 0
        %v2503 = vsel %vm1973, %v1893, 0
        %v2506 = vsel %vm1973, %v1894, 0
        %v2509 = vsel %vm1973, %v1895, 0
        %v2512 = vsel %vm1973, %v1896, 0
        %v2515 = vsel %vm1973, %v1897, 0
        %v2518 = vsel %vm1973, %v1898, 0
        %v2521 = vsel %vm1973, %v1899, 0
        %v2524 = vsel %vm1973, %v1900, 0
        %v2527 = vsel %vm1973, %v1901, 0
        %v2530 = vsel %vm1973, %v1902, 0
        %v2533 = vsel %vm1973, %v1903, 0
        %v2536 = vsel %vm1973, %v1904, 0
        %v2539 = vsel %vm1973, %v1905, 0
        %v2542 = vsel %vm1973, %v1906, 0
        %v2545 = vsel %vm1973, %v1907, 0
        %v2548 = vsel %vm1973, %v1908, 0
        %v2551 = vsel %vm1973, %v1909, 0
        %v2554 = vsel %vm1973, %v1910, 0
        %v2557 = vsel %vm1973, %v1911, 0
        %v2560 = vsel %vm1973, %v1912, 0
        %v2563 = vsel %vm1973, %v1913, 0
        %v2566 = vsel %vm1973, %v1914, 0
        %v2569 = vsel %vm1973, %v1915, 0
        %v2572 = vsel %vm1973, %v1916, 0
        %v2575 = vsel %vm1973, %v1917, 0
        %v2578 = vsel %vm1973, %v1918, 0
        %v2581 = vsel %vm1973, %v1919, 0
        %v2584 = vsel %vm1973, %v1920, 0
        %v2587 = vsel %vm1973, %v1921, 0
        %v2590 = vsel %vm1973, %v1922, 0
        %v2593 = vsel %vm1973, %v1923, 0
        %v2596 = vsel %vm1973, %v1924, 0
        %v2599 = vsel %vm1973, %v1925, 0
        %v2602 = vsel %vm1973, %v1926, 0
        %v2605 = vsel %vm1973, %v1927, 0
        %v2608 = vsel %vm1973, %v1928, 0
        %v2611 = vsel %vm1973, %v1929, 0
        %v2614 = vsel %vm1973, %v1930, 0
        %v2617 = vsel %vm1973, %v1931, 0
        %v2620 = vsel %vm1973, %v1932, 0
        %v2623 = vsel %vm1973, %v1933, 0
        %v2626 = vsel %vm1973, %v1934, 0
        %v2629 = vsel %vm1973, %v1935, 0
        %v2632 = vsel %vm1973, %v1936, 0
        %v2635 = vsel %vm1973, %v1937, 0
        %v2638 = vsel %vm1973, %v1938, 0
        %v2641 = vsel %vm1973, %v1939, 0
        %v2644 = vsel %vm1973, %v1940, 0
        %v2647 = vsel %vm1973, %v1941, 0
        %v2650 = vsel %vm1973, %v1942, 0
        %v2653 = vsel %vm1973, %v1943, 0
        %v2656 = vsel %vm1973, %v1944, 0
        %v2659 = vsel %vm1973, %v1945, 0
        %v2662 = vsel %vm1973, %v1946, 0
        %v2665 = vsel %vm1973, %v1947, 0
        %v2668 = vsel %vm1973, %v1948, 0
        %v2671 = vsel %vm1973, %v1949, 0
        %v2674 = vsel %vm1973, %v1950, 0
        %v2677 = vsel %vm1973, %v1951, 0
        %v2680 = vsel %vm1973, %v1952, 0
        %v2683 = vsel %vm1973, %v1953, 0
        %v2686 = vsel %vm1973, %v1954, 0
        %v2689 = vsel %vm1973, %v1955, 0
        %v2692 = vsel %vm1973, %v1956, 0
        %v2695 = vsel %vm1973, %v1957, 0
        %v2698 = vsel %vm1973, %v1958, 0
        %v2701 = vsel %vm1973, %v1959, 0
        %v2704 = vsel %vm1973, %v1960, 0
        %v2707 = vsel %vm1973, %v1961, 0
        %v2710 = vsel %vm1973, %v1962, 0
        %v2713 = vsel %vm1973, %v1963, 0
        %v2716 = vsel %vm1973, %v1964, 0
        %v2719 = vsel %vm1973, %v1965, 0
        %v2722 = vsel %vm1973, %v1966, 0
        %v2725 = vsel %vm1973, %v1967, 0
        %v2728 = vsel %vm1973, %v1968, 0
        %v2731 = vsel %vm1973, %v1969, 0
        %v2734 = vsel %vm1973, %v1970, 0
        %v2737 = vsel %vm1973, %v1971, 0
        %v2740 = vsel %vm1973, %v1972, 0
        %vm2742 = vcmask 1040384
        %vm2743 = vcmask 1041408
        %v2744 = vsel %vm2742, 4294967295, 65535
        %v2745 = vsel %vm2743, %v2744, 0
        %v2747 = vand.u32 %v685, %v2745
        %2749 = vmatprep.subr.bf16.mxu0 0
        %2750 = vmatpush1.bf16.msra.mxu0 0
        %2751 = vmatprep.subr.bf16.mxu0 0
        %2752 = vmatpush1.bf16.msra.mxu0 0
        %2753 = vmatprep.subr.bf16.mxu0 0
        %2754 = vmatpush1.bf16.msra.mxu0 0
        %2755 = vmatprep.subr.bf16.mxu0 0
        %2756 = vmatpush1.bf16.msra.mxu0 0
        %2757 = vmatprep.subr.bf16.mxu0 0
        %2758 = vmatpush1.bf16.msra.mxu0 0
        %2759 = vmatprep.subr.bf16.mxu0 0
        %2760 = vmatpush1.bf16.msra.mxu0 0
        %2761 = vmatprep.subr.bf16.mxu0 0
        %2762 = vmatpush1.bf16.msra.mxu0 0
        %2763 = vmatprep.subr.bf16.mxu0 0
        %2764 = vmatpush1.bf16.msra.mxu0 %v2747
        %2765 = vmatprep.subr.bf16.mxu0 0
        %2766 = vmatpush2.bf16.msra.mxu0 0
        %2767 = vmatprep.subr.bf16.mxu0 0
        %2768 = vmatpush2.bf16.msra.mxu0 0
        %2769 = vmatprep.subr.bf16.mxu0 0
        %2770 = vmatpush2.bf16.msra.mxu0 0
        %2771 = vmatprep.subr.bf16.mxu0 0
        %2772 = vmatpush2.bf16.msra.mxu0 0
        %2773 = vmatprep.subr.bf16.mxu0 0
        %2774 = vmatpush2.bf16.msra.mxu0 0
        %2775 = vmatprep.subr.bf16.mxu0 0
        %2776 = vmatpush2.bf16.msra.mxu0 0
        %2777 = vmatprep.subr.bf16.mxu0 0
        %2778 = vmatpush2.bf16.msra.mxu0 0
        %2779 = vmatprep.subr.bf16.mxu0 0
        %2780 = vmatpush2.bf16.msra.mxu0 0
        %2781 = vmatprep.mubr.bf16.mxu0 0
        %2782 = vmatmul.mubr.bf16.gmra.mxu0 %v1975
        %v2783 = vpop.f32.mrf.mxu0
        %v2784 = vadd.f32 %v691, %v2783
        %v2785 = vpop.f32.mrf.mxu0
        %v2786 = vpop.f32.mrf.mxu0
        %v2787 = vadd.f32 %v691, %v2786
        %v2788 = vpop.f32.mrf.mxu0
        %2789 = vmatprep.mubr.bf16.mxu0 0
        %2790 = vmatmul.mubr.bf16.gmra.mxu0 %v1978
        %v2791 = vpop.f32.mrf.mxu0
        %v2792 = vadd.f32 %v691, %v2791
        %v2793 = vpop.f32.mrf.mxu0
        %v2794 = vpop.f32.mrf.mxu0
        %v2795 = vadd.f32 %v691, %v2794
        %v2796 = vpop.f32.mrf.mxu0
        %2797 = vmatprep.mubr.bf16.mxu0 0
        %2798 = vmatmul.mubr.bf16.gmra.mxu0 %v1981
        %v2799 = vpop.f32.mrf.mxu0
        %v2800 = vadd.f32 %v691, %v2799
        %v2801 = vpop.f32.mrf.mxu0
        %v2802 = vpop.f32.mrf.mxu0
        %v2803 = vadd.f32 %v691, %v2802
        %v2804 = vpop.f32.mrf.mxu0
        %2805 = vmatprep.mubr.bf16.mxu0 0
        %2806 = vmatmul.mubr.bf16.gmra.mxu0 %v1984
        %v2807 = vpop.f32.mrf.mxu0
        %v2808 = vadd.f32 %v691, %v2807
        %v2809 = vpop.f32.mrf.mxu0
        %v2810 = vpop.f32.mrf.mxu0
        %v2811 = vadd.f32 %v691, %v2810
        %v2812 = vpop.f32.mrf.mxu0
        %2813 = vmatprep.mubr.bf16.mxu0 0
        %2814 = vmatmul.mubr.bf16.gmra.mxu0 %v1987
        %v2815 = vpop.f32.mrf.mxu0
        %v2816 = vadd.f32 %v691, %v2815
        %v2817 = vpop.f32.mrf.mxu0
        %v2818 = vpop.f32.mrf.mxu0
        %v2819 = vadd.f32 %v691, %v2818
        %v2820 = vpop.f32.mrf.mxu0
        %2821 = vmatprep.mubr.bf16.mxu0 0
        %2822 = vmatmul.mubr.bf16.gmra.mxu0 %v1990
        %v2823 = vpop.f32.mrf.mxu0
        %v2824 = vadd.f32 %v691, %v2823
        %v2825 = vpop.f32.mrf.mxu0
        %v2826 = vpop.f32.mrf.mxu0
        %v2827 = vadd.f32 %v691, %v2826
        %v2828 = vpop.f32.mrf.mxu0
        %2829 = vmatprep.mubr.bf16.mxu0 0
        %2830 = vmatmul.mubr.bf16.gmra.mxu0 %v1993
        %v2831 = vpop.f32.mrf.mxu0
        %v2832 = vadd.f32 %v691, %v2831
        %v2833 = vpop.f32.mrf.mxu0
        %v2834 = vpop.f32.mrf.mxu0
        %v2835 = vadd.f32 %v691, %v2834
        %v2836 = vpop.f32.mrf.mxu0
        %2837 = vmatprep.mubr.bf16.mxu0 0
        %2838 = vmatmul.mubr.bf16.gmra.mxu0 %v1996
        %v2839 = vpop.f32.mrf.mxu0
        %v2840 = vadd.f32 %v691, %v2839
        %v2841 = vpop.f32.mrf.mxu0
        %v2842 = vpop.f32.mrf.mxu0
        %v2843 = vadd.f32 %v691, %v2842
        %v2844 = vpop.f32.mrf.mxu0
        %2845 = vmatprep.mubr.bf16.mxu0 0
        %2846 = vmatmul.mubr.bf16.gmra.mxu0 %v1999
        %v2847 = vpop.f32.mrf.mxu0
        %v2848 = vadd.f32 %v691, %v2847
        %v2849 = vpop.f32.mrf.mxu0
        %v2850 = vpop.f32.mrf.mxu0
        %v2851 = vadd.f32 %v691, %v2850
        %v2852 = vpop.f32.mrf.mxu0
        %2853 = vmatprep.mubr.bf16.mxu0 0
        %2854 = vmatmul.mubr.bf16.gmra.mxu0 %v2002
        %v2855 = vpop.f32.mrf.mxu0
        %v2856 = vadd.f32 %v691, %v2855
        %v2857 = vpop.f32.mrf.mxu0
        %v2858 = vpop.f32.mrf.mxu0
        %v2859 = vadd.f32 %v691, %v2858
        %v2860 = vpop.f32.mrf.mxu0
        %2861 = vmatprep.mubr.bf16.mxu0 0
        %2862 = vmatmul.mubr.bf16.gmra.mxu0 %v2005
        %v2863 = vpop.f32.mrf.mxu0
        %v2864 = vadd.f32 %v691, %v2863
        %v2865 = vpop.f32.mrf.mxu0
        %v2866 = vpop.f32.mrf.mxu0
        %v2867 = vadd.f32 %v691, %v2866
        %v2868 = vpop.f32.mrf.mxu0
        %2869 = vmatprep.mubr.bf16.mxu0 0
        %2870 = vmatmul.mubr.bf16.gmra.mxu0 %v2008
        %v2871 = vpop.f32.mrf.mxu0
        %v2872 = vadd.f32 %v691, %v2871
        %v2873 = vpop.f32.mrf.mxu0
        %v2874 = vpop.f32.mrf.mxu0
        %v2875 = vadd.f32 %v691, %v2874
        %v2876 = vpop.f32.mrf.mxu0
        %2877 = vmatprep.mubr.bf16.mxu0 0
        %2878 = vmatmul.mubr.bf16.gmra.mxu0 %v2011
        %v2879 = vpop.f32.mrf.mxu0
        %v2880 = vadd.f32 %v691, %v2879
        %v2881 = vpop.f32.mrf.mxu0
        %v2882 = vpop.f32.mrf.mxu0
        %v2883 = vadd.f32 %v691, %v2882
        %v2884 = vpop.f32.mrf.mxu0
        %2885 = vmatprep.mubr.bf16.mxu0 0
        %2886 = vmatmul.mubr.bf16.gmra.mxu0 %v2014
        %v2887 = vpop.f32.mrf.mxu0
        %v2888 = vadd.f32 %v691, %v2887
        %v2889 = vpop.f32.mrf.mxu0
        %v2890 = vpop.f32.mrf.mxu0
        %v2891 = vadd.f32 %v691, %v2890
        %v2892 = vpop.f32.mrf.mxu0
        %2893 = vmatprep.mubr.bf16.mxu0 0
        %2894 = vmatmul.mubr.bf16.gmra.mxu0 %v2017
        %v2895 = vpop.f32.mrf.mxu0
        %v2896 = vadd.f32 %v691, %v2895
        %v2897 = vpop.f32.mrf.mxu0
        %v2898 = vpop.f32.mrf.mxu0
        %v2899 = vadd.f32 %v691, %v2898
        %v2900 = vpop.f32.mrf.mxu0
        %2901 = vmatprep.mubr.bf16.mxu0 0
        %2902 = vmatmul.mubr.bf16.gmra.mxu0 %v2020
        %v2903 = vpop.f32.mrf.mxu0
        %v2904 = vadd.f32 %v691, %v2903
        %v2905 = vpop.f32.mrf.mxu0
        %v2906 = vpop.f32.mrf.mxu0
        %v2907 = vadd.f32 %v691, %v2906
        %v2908 = vpop.f32.mrf.mxu0
        %2909 = vmatprep.mubr.bf16.mxu0 0
        %2910 = vmatmul.mubr.bf16.gmra.mxu0 %v2023
        %v2911 = vpop.f32.mrf.mxu0
        %v2912 = vadd.f32 %v691, %v2911
        %v2913 = vpop.f32.mrf.mxu0
        %v2914 = vpop.f32.mrf.mxu0
        %v2915 = vadd.f32 %v691, %v2914
        %v2916 = vpop.f32.mrf.mxu0
        %2917 = vmatprep.mubr.bf16.mxu0 0
        %2918 = vmatmul.mubr.bf16.gmra.mxu0 %v2026
        %v2919 = vpop.f32.mrf.mxu0
        %v2920 = vadd.f32 %v691, %v2919
        %v2921 = vpop.f32.mrf.mxu0
        %v2922 = vpop.f32.mrf.mxu0
        %v2923 = vadd.f32 %v691, %v2922
        %v2924 = vpop.f32.mrf.mxu0
        %2925 = vmatprep.mubr.bf16.mxu0 0
        %2926 = vmatmul.mubr.bf16.gmra.mxu0 %v2029
        %v2927 = vpop.f32.mrf.mxu0
        %v2928 = vadd.f32 %v691, %v2927
        %v2929 = vpop.f32.mrf.mxu0
        %v2930 = vpop.f32.mrf.mxu0
        %v2931 = vadd.f32 %v691, %v2930
        %v2932 = vpop.f32.mrf.mxu0
        %2933 = vmatprep.mubr.bf16.mxu0 0
        %2934 = vmatmul.mubr.bf16.gmra.mxu0 %v2032
        %v2935 = vpop.f32.mrf.mxu0
        %v2936 = vadd.f32 %v691, %v2935
        %v2937 = vpop.f32.mrf.mxu0
        %v2938 = vpop.f32.mrf.mxu0
        %v2939 = vadd.f32 %v691, %v2938
        %v2940 = vpop.f32.mrf.mxu0
        %2941 = vmatprep.mubr.bf16.mxu0 0
        %2942 = vmatmul.mubr.bf16.gmra.mxu0 %v2035
        %v2943 = vpop.f32.mrf.mxu0
        %v2944 = vadd.f32 %v691, %v2943
        %v2945 = vpop.f32.mrf.mxu0
        %v2946 = vpop.f32.mrf.mxu0
        %v2947 = vadd.f32 %v691, %v2946
        %v2948 = vpop.f32.mrf.mxu0
        %2949 = vmatprep.mubr.bf16.mxu0 0
        %2950 = vmatmul.mubr.bf16.gmra.mxu0 %v2038
        %v2951 = vpop.f32.mrf.mxu0
        %v2952 = vadd.f32 %v691, %v2951
        %v2953 = vpop.f32.mrf.mxu0
        %v2954 = vpop.f32.mrf.mxu0
        %v2955 = vadd.f32 %v691, %v2954
        %v2956 = vpop.f32.mrf.mxu0
        %2957 = vmatprep.mubr.bf16.mxu0 0
        %2958 = vmatmul.mubr.bf16.gmra.mxu0 %v2041
        %v2959 = vpop.f32.mrf.mxu0
        %v2960 = vadd.f32 %v691, %v2959
        %v2961 = vpop.f32.mrf.mxu0
        %v2962 = vpop.f32.mrf.mxu0
        %v2963 = vadd.f32 %v691, %v2962
        %v2964 = vpop.f32.mrf.mxu0
        %2965 = vmatprep.mubr.bf16.mxu0 0
        %2966 = vmatmul.mubr.bf16.gmra.mxu0 %v2044
        %v2967 = vpop.f32.mrf.mxu0
        %v2968 = vadd.f32 %v691, %v2967
        %v2969 = vpop.f32.mrf.mxu0
        %v2970 = vpop.f32.mrf.mxu0
        %v2971 = vadd.f32 %v691, %v2970
        %v2972 = vpop.f32.mrf.mxu0
        %2973 = vmatprep.mubr.bf16.mxu0 0
        %2974 = vmatmul.mubr.bf16.gmra.mxu0 %v2047
        %v2975 = vpop.f32.mrf.mxu0
        %v2976 = vadd.f32 %v691, %v2975
        %v2977 = vpop.f32.mrf.mxu0
        %v2978 = vpop.f32.mrf.mxu0
        %v2979 = vadd.f32 %v691, %v2978
        %v2980 = vpop.f32.mrf.mxu0
        %2981 = vmatprep.mubr.bf16.mxu0 0
        %2982 = vmatmul.mubr.bf16.gmra.mxu0 %v2050
        %v2983 = vpop.f32.mrf.mxu0
        %v2984 = vadd.f32 %v691, %v2983
        %v2985 = vpop.f32.mrf.mxu0
        %v2986 = vpop.f32.mrf.mxu0
        %v2987 = vadd.f32 %v691, %v2986
        %v2988 = vpop.f32.mrf.mxu0
        %2989 = vmatprep.mubr.bf16.mxu0 0
        %2990 = vmatmul.mubr.bf16.gmra.mxu0 %v2053
        %v2991 = vpop.f32.mrf.mxu0
        %v2992 = vadd.f32 %v691, %v2991
        %v2993 = vpop.f32.mrf.mxu0
        %v2994 = vpop.f32.mrf.mxu0
        %v2995 = vadd.f32 %v691, %v2994
        %v2996 = vpop.f32.mrf.mxu0
        %2997 = vmatprep.mubr.bf16.mxu0 0
        %2998 = vmatmul.mubr.bf16.gmra.mxu0 %v2056
        %v2999 = vpop.f32.mrf.mxu0
        %v3000 = vadd.f32 %v691, %v2999
        %v3001 = vpop.f32.mrf.mxu0
        %v3002 = vpop.f32.mrf.mxu0
        %v3003 = vadd.f32 %v691, %v3002
        %v3004 = vpop.f32.mrf.mxu0
        %3005 = vmatprep.mubr.bf16.mxu0 0
        %3006 = vmatmul.mubr.bf16.gmra.mxu0 %v2059
        %v3007 = vpop.f32.mrf.mxu0
        %v3008 = vadd.f32 %v691, %v3007
        %v3009 = vpop.f32.mrf.mxu0
        %v3010 = vpop.f32.mrf.mxu0
        %v3011 = vadd.f32 %v691, %v3010
        %v3012 = vpop.f32.mrf.mxu0
        %3013 = vmatprep.mubr.bf16.mxu0 0
        %3014 = vmatmul.mubr.bf16.gmra.mxu0 %v2062
        %v3015 = vpop.f32.mrf.mxu0
        %v3016 = vadd.f32 %v691, %v3015
        %v3017 = vpop.f32.mrf.mxu0
        %v3018 = vpop.f32.mrf.mxu0
        %v3019 = vadd.f32 %v691, %v3018
        %v3020 = vpop.f32.mrf.mxu0
        %3021 = vmatprep.mubr.bf16.mxu0 0
        %3022 = vmatmul.mubr.bf16.gmra.mxu0 %v2065
        %v3023 = vpop.f32.mrf.mxu0
        %v3024 = vadd.f32 %v691, %v3023
        %v3025 = vpop.f32.mrf.mxu0
        %v3026 = vpop.f32.mrf.mxu0
        %v3027 = vadd.f32 %v691, %v3026
        %v3028 = vpop.f32.mrf.mxu0
        %3029 = vmatprep.mubr.bf16.mxu0 0
        %3030 = vmatmul.mubr.bf16.gmra.mxu0 %v2068
        %v3031 = vpop.f32.mrf.mxu0
        %v3032 = vadd.f32 %v691, %v3031
        %v3033 = vpop.f32.mrf.mxu0
        %v3034 = vpop.f32.mrf.mxu0
        %v3035 = vadd.f32 %v691, %v3034
        %v3036 = vpop.f32.mrf.mxu0
        %3037 = vmatprep.mubr.bf16.mxu0 0
        %3038 = vmatmul.mubr.bf16.gmra.mxu0 %v2071
        %v3039 = vpop.f32.mrf.mxu0
        %v3040 = vadd.f32 %v691, %v3039
        %v3041 = vpop.f32.mrf.mxu0
        %v3042 = vpop.f32.mrf.mxu0
        %v3043 = vadd.f32 %v691, %v3042
        %v3044 = vpop.f32.mrf.mxu0
        %3045 = vmatprep.mubr.bf16.mxu0 0
        %3046 = vmatmul.mubr.bf16.gmra.mxu0 %v2074
        %v3047 = vpop.f32.mrf.mxu0
        %v3048 = vadd.f32 %v691, %v3047
        %v3049 = vpop.f32.mrf.mxu0
        %v3050 = vpop.f32.mrf.mxu0
        %v3051 = vadd.f32 %v691, %v3050
        %v3052 = vpop.f32.mrf.mxu0
        %3053 = vmatprep.mubr.bf16.mxu0 0
        %3054 = vmatmul.mubr.bf16.gmra.mxu0 %v2077
        %v3055 = vpop.f32.mrf.mxu0
        %v3056 = vadd.f32 %v691, %v3055
        %v3057 = vpop.f32.mrf.mxu0
        %v3058 = vpop.f32.mrf.mxu0
        %v3059 = vadd.f32 %v691, %v3058
        %v3060 = vpop.f32.mrf.mxu0
        %3061 = vmatprep.mubr.bf16.mxu0 0
        %3062 = vmatmul.mubr.bf16.gmra.mxu0 %v2080
        %v3063 = vpop.f32.mrf.mxu0
        %v3064 = vadd.f32 %v691, %v3063
        %v3065 = vpop.f32.mrf.mxu0
        %v3066 = vpop.f32.mrf.mxu0
        %v3067 = vadd.f32 %v691, %v3066
        %v3068 = vpop.f32.mrf.mxu0
        %3069 = vmatprep.mubr.bf16.mxu0 0
        %3070 = vmatmul.mubr.bf16.gmra.mxu0 %v2083
        %v3071 = vpop.f32.mrf.mxu0
        %v3072 = vadd.f32 %v691, %v3071
        %v3073 = vpop.f32.mrf.mxu0
        %v3074 = vpop.f32.mrf.mxu0
        %v3075 = vadd.f32 %v691, %v3074
        %v3076 = vpop.f32.mrf.mxu0
        %3077 = vmatprep.mubr.bf16.mxu0 0
        %3078 = vmatmul.mubr.bf16.gmra.mxu0 %v2086
        %v3079 = vpop.f32.mrf.mxu0
        %v3080 = vadd.f32 %v691, %v3079
        %v3081 = vpop.f32.mrf.mxu0
        %v3082 = vpop.f32.mrf.mxu0
        %v3083 = vadd.f32 %v691, %v3082
        %v3084 = vpop.f32.mrf.mxu0
        %3085 = vmatprep.mubr.bf16.mxu0 0
        %3086 = vmatmul.mubr.bf16.gmra.mxu0 %v2089
        %v3087 = vpop.f32.mrf.mxu0
        %v3088 = vadd.f32 %v691, %v3087
        %v3089 = vpop.f32.mrf.mxu0
        %v3090 = vpop.f32.mrf.mxu0
        %v3091 = vadd.f32 %v691, %v3090
        %v3092 = vpop.f32.mrf.mxu0
        %3093 = vmatprep.mubr.bf16.mxu0 0
        %3094 = vmatmul.mubr.bf16.gmra.mxu0 %v2092
        %v3095 = vpop.f32.mrf.mxu0
        %v3096 = vadd.f32 %v691, %v3095
        %v3097 = vpop.f32.mrf.mxu0
        %v3098 = vpop.f32.mrf.mxu0
        %v3099 = vadd.f32 %v691, %v3098
        %v3100 = vpop.f32.mrf.mxu0
        %3101 = vmatprep.mubr.bf16.mxu0 0
        %3102 = vmatmul.mubr.bf16.gmra.mxu0 %v2095
        %v3103 = vpop.f32.mrf.mxu0
        %v3104 = vadd.f32 %v691, %v3103
        %v3105 = vpop.f32.mrf.mxu0
        %v3106 = vpop.f32.mrf.mxu0
        %v3107 = vadd.f32 %v691, %v3106
        %v3108 = vpop.f32.mrf.mxu0
        %3109 = vmatprep.mubr.bf16.mxu0 0
        %3110 = vmatmul.mubr.bf16.gmra.mxu0 %v2098
        %v3111 = vpop.f32.mrf.mxu0
        %v3112 = vadd.f32 %v691, %v3111
        %v3113 = vpop.f32.mrf.mxu0
        %v3114 = vpop.f32.mrf.mxu0
        %v3115 = vadd.f32 %v691, %v3114
        %v3116 = vpop.f32.mrf.mxu0
        %3117 = vmatprep.mubr.bf16.mxu0 0
        %3118 = vmatmul.mubr.bf16.gmra.mxu0 %v2101
        %v3119 = vpop.f32.mrf.mxu0
        %v3120 = vadd.f32 %v691, %v3119
        %v3121 = vpop.f32.mrf.mxu0
        %v3122 = vpop.f32.mrf.mxu0
        %v3123 = vadd.f32 %v691, %v3122
        %v3124 = vpop.f32.mrf.mxu0
        %3125 = vmatprep.mubr.bf16.mxu0 0
        %3126 = vmatmul.mubr.bf16.gmra.mxu0 %v2104
        %v3127 = vpop.f32.mrf.mxu0
        %v3128 = vadd.f32 %v691, %v3127
        %v3129 = vpop.f32.mrf.mxu0
        %v3130 = vpop.f32.mrf.mxu0
        %v3131 = vadd.f32 %v691, %v3130
        %v3132 = vpop.f32.mrf.mxu0
        %3133 = vmatprep.mubr.bf16.mxu0 0
        %3134 = vmatmul.mubr.bf16.gmra.mxu0 %v2107
        %v3135 = vpop.f32.mrf.mxu0
        %v3136 = vadd.f32 %v691, %v3135
        %v3137 = vpop.f32.mrf.mxu0
        %v3138 = vpop.f32.mrf.mxu0
        %v3139 = vadd.f32 %v691, %v3138
        %v3140 = vpop.f32.mrf.mxu0
        %3141 = vmatprep.mubr.bf16.mxu0 0
        %3142 = vmatmul.mubr.bf16.gmra.mxu0 %v2110
        %v3143 = vpop.f32.mrf.mxu0
        %v3144 = vadd.f32 %v691, %v3143
        %v3145 = vpop.f32.mrf.mxu0
        %v3146 = vpop.f32.mrf.mxu0
        %v3147 = vadd.f32 %v691, %v3146
        %v3148 = vpop.f32.mrf.mxu0
        %3149 = vmatprep.mubr.bf16.mxu0 0
        %3150 = vmatmul.mubr.bf16.gmra.mxu0 %v2113
        %v3151 = vpop.f32.mrf.mxu0
        %v3152 = vadd.f32 %v691, %v3151
        %v3153 = vpop.f32.mrf.mxu0
        %v3154 = vpop.f32.mrf.mxu0
        %v3155 = vadd.f32 %v691, %v3154
        %v3156 = vpop.f32.mrf.mxu0
        %3157 = vmatprep.mubr.bf16.mxu0 0
        %3158 = vmatmul.mubr.bf16.gmra.mxu0 %v2116
        %v3159 = vpop.f32.mrf.mxu0
        %v3160 = vadd.f32 %v691, %v3159
        %v3161 = vpop.f32.mrf.mxu0
        %v3162 = vpop.f32.mrf.mxu0
        %v3163 = vadd.f32 %v691, %v3162
        %v3164 = vpop.f32.mrf.mxu0
        %3165 = vmatprep.mubr.bf16.mxu0 0
        %3166 = vmatmul.mubr.bf16.gmra.mxu0 %v2119
        %v3167 = vpop.f32.mrf.mxu0
        %v3168 = vadd.f32 %v691, %v3167
        %v3169 = vpop.f32.mrf.mxu0
        %v3170 = vpop.f32.mrf.mxu0
        %v3171 = vadd.f32 %v691, %v3170
        %v3172 = vpop.f32.mrf.mxu0
        %3173 = vmatprep.mubr.bf16.mxu0 0
        %3174 = vmatmul.mubr.bf16.gmra.mxu0 %v2122
        %v3175 = vpop.f32.mrf.mxu0
        %v3176 = vadd.f32 %v691, %v3175
        %v3177 = vpop.f32.mrf.mxu0
        %v3178 = vpop.f32.mrf.mxu0
        %v3179 = vadd.f32 %v691, %v3178
        %v3180 = vpop.f32.mrf.mxu0
        %3181 = vmatprep.mubr.bf16.mxu0 0
        %3182 = vmatmul.mubr.bf16.gmra.mxu0 %v2125
        %v3183 = vpop.f32.mrf.mxu0
        %v3184 = vadd.f32 %v691, %v3183
        %v3185 = vpop.f32.mrf.mxu0
        %v3186 = vpop.f32.mrf.mxu0
        %v3187 = vadd.f32 %v691, %v3186
        %v3188 = vpop.f32.mrf.mxu0
        %3189 = vmatprep.mubr.bf16.mxu0 0
        %3190 = vmatmul.mubr.bf16.gmra.mxu0 %v2128
        %v3191 = vpop.f32.mrf.mxu0
        %v3192 = vadd.f32 %v691, %v3191
        %v3193 = vpop.f32.mrf.mxu0
        %v3194 = vpop.f32.mrf.mxu0
        %v3195 = vadd.f32 %v691, %v3194
        %v3196 = vpop.f32.mrf.mxu0
        %3197 = vmatprep.mubr.bf16.mxu0 0
        %3198 = vmatmul.mubr.bf16.gmra.mxu0 %v2131
        %v3199 = vpop.f32.mrf.mxu0
        %v3200 = vadd.f32 %v691, %v3199
        %v3201 = vpop.f32.mrf.mxu0
        %v3202 = vpop.f32.mrf.mxu0
        %v3203 = vadd.f32 %v691, %v3202
        %v3204 = vpop.f32.mrf.mxu0
        %3205 = vmatprep.mubr.bf16.mxu0 0
        %3206 = vmatmul.mubr.bf16.gmra.mxu0 %v2134
        %v3207 = vpop.f32.mrf.mxu0
        %v3208 = vadd.f32 %v691, %v3207
        %v3209 = vpop.f32.mrf.mxu0
        %v3210 = vpop.f32.mrf.mxu0
        %v3211 = vadd.f32 %v691, %v3210
        %v3212 = vpop.f32.mrf.mxu0
        %3213 = vmatprep.mubr.bf16.mxu0 0
        %3214 = vmatmul.mubr.bf16.gmra.mxu0 %v2137
        %v3215 = vpop.f32.mrf.mxu0
        %v3216 = vadd.f32 %v691, %v3215
        %v3217 = vpop.f32.mrf.mxu0
        %v3218 = vpop.f32.mrf.mxu0
        %v3219 = vadd.f32 %v691, %v3218
        %v3220 = vpop.f32.mrf.mxu0
        %3221 = vmatprep.mubr.bf16.mxu0 0
        %3222 = vmatmul.mubr.bf16.gmra.mxu0 %v2140
        %v3223 = vpop.f32.mrf.mxu0
        %v3224 = vadd.f32 %v691, %v3223
        %v3225 = vpop.f32.mrf.mxu0
        %v3226 = vpop.f32.mrf.mxu0
        %v3227 = vadd.f32 %v691, %v3226
        %v3228 = vpop.f32.mrf.mxu0
        %3229 = vmatprep.mubr.bf16.mxu0 0
        %3230 = vmatmul.mubr.bf16.gmra.mxu0 %v2143
        %v3231 = vpop.f32.mrf.mxu0
        %v3232 = vadd.f32 %v691, %v3231
        %v3233 = vpop.f32.mrf.mxu0
        %v3234 = vpop.f32.mrf.mxu0
        %v3235 = vadd.f32 %v691, %v3234
        %v3236 = vpop.f32.mrf.mxu0
        %3237 = vmatprep.mubr.bf16.mxu0 0
        %3238 = vmatmul.mubr.bf16.gmra.mxu0 %v2146
        %v3239 = vpop.f32.mrf.mxu0
        %v3240 = vadd.f32 %v691, %v3239
        %v3241 = vpop.f32.mrf.mxu0
        %v3242 = vpop.f32.mrf.mxu0
        %v3243 = vadd.f32 %v691, %v3242
        %v3244 = vpop.f32.mrf.mxu0
        %3245 = vmatprep.mubr.bf16.mxu0 0
        %3246 = vmatmul.mubr.bf16.gmra.mxu0 %v2149
        %v3247 = vpop.f32.mrf.mxu0
        %v3248 = vadd.f32 %v691, %v3247
        %v3249 = vpop.f32.mrf.mxu0
        %v3250 = vpop.f32.mrf.mxu0
        %v3251 = vadd.f32 %v691, %v3250
        %v3252 = vpop.f32.mrf.mxu0
        %3253 = vmatprep.mubr.bf16.mxu0 0
        %3254 = vmatmul.mubr.bf16.gmra.mxu0 %v2152
        %v3255 = vpop.f32.mrf.mxu0
        %v3256 = vadd.f32 %v691, %v3255
        %v3257 = vpop.f32.mrf.mxu0
        %v3258 = vpop.f32.mrf.mxu0
        %v3259 = vadd.f32 %v691, %v3258
        %v3260 = vpop.f32.mrf.mxu0
        %3261 = vmatprep.mubr.bf16.mxu0 0
        %3262 = vmatmul.mubr.bf16.gmra.mxu0 %v2155
        %v3263 = vpop.f32.mrf.mxu0
        %v3264 = vadd.f32 %v691, %v3263
        %v3265 = vpop.f32.mrf.mxu0
        %v3266 = vpop.f32.mrf.mxu0
        %v3267 = vadd.f32 %v691, %v3266
        %v3268 = vpop.f32.mrf.mxu0
        %3269 = vmatprep.mubr.bf16.mxu0 0
        %3270 = vmatmul.mubr.bf16.gmra.mxu0 %v2158
        %v3271 = vpop.f32.mrf.mxu0
        %v3272 = vadd.f32 %v691, %v3271
        %v3273 = vpop.f32.mrf.mxu0
        %v3274 = vpop.f32.mrf.mxu0
        %v3275 = vadd.f32 %v691, %v3274
        %v3276 = vpop.f32.mrf.mxu0
        %3277 = vmatprep.mubr.bf16.mxu0 0
        %3278 = vmatmul.mubr.bf16.gmra.mxu0 %v2161
        %v3279 = vpop.f32.mrf.mxu0
        %v3280 = vadd.f32 %v691, %v3279
        %v3281 = vpop.f32.mrf.mxu0
        %v3282 = vpop.f32.mrf.mxu0
        %v3283 = vadd.f32 %v691, %v3282
        %v3284 = vpop.f32.mrf.mxu0
        %3285 = vmatprep.mubr.bf16.mxu0 0
        %3286 = vmatmul.mubr.bf16.gmra.mxu0 %v2164
        %v3287 = vpop.f32.mrf.mxu0
        %v3288 = vadd.f32 %v691, %v3287
        %v3289 = vpop.f32.mrf.mxu0
        %v3290 = vpop.f32.mrf.mxu0
        %v3291 = vadd.f32 %v691, %v3290
        %v3292 = vpop.f32.mrf.mxu0
        %3293 = vmatprep.mubr.bf16.mxu0 0
        %3294 = vmatmul.mubr.bf16.gmra.mxu0 %v2167
        %v3295 = vpop.f32.mrf.mxu0
        %v3296 = vadd.f32 %v691, %v3295
        %v3297 = vpop.f32.mrf.mxu0
        %v3298 = vpop.f32.mrf.mxu0
        %v3299 = vadd.f32 %v691, %v3298
        %v3300 = vpop.f32.mrf.mxu0
        %3301 = vmatprep.mubr.bf16.mxu0 0
        %3302 = vmatmul.mubr.bf16.gmra.mxu0 %v2170
        %v3303 = vpop.f32.mrf.mxu0
        %v3304 = vadd.f32 %v691, %v3303
        %v3305 = vpop.f32.mrf.mxu0
        %v3306 = vpop.f32.mrf.mxu0
        %v3307 = vadd.f32 %v691, %v3306
        %v3308 = vpop.f32.mrf.mxu0
        %3309 = vmatprep.mubr.bf16.mxu0 0
        %3310 = vmatmul.mubr.bf16.gmra.mxu0 %v2173
        %v3311 = vpop.f32.mrf.mxu0
        %v3312 = vadd.f32 %v691, %v3311
        %v3313 = vpop.f32.mrf.mxu0
        %v3314 = vpop.f32.mrf.mxu0
        %v3315 = vadd.f32 %v691, %v3314
        %v3316 = vpop.f32.mrf.mxu0
        %3317 = vmatprep.mubr.bf16.mxu0 0
        %3318 = vmatmul.mubr.bf16.gmra.mxu0 %v2176
        %v3319 = vpop.f32.mrf.mxu0
        %v3320 = vadd.f32 %v691, %v3319
        %v3321 = vpop.f32.mrf.mxu0
        %v3322 = vpop.f32.mrf.mxu0
        %v3323 = vadd.f32 %v691, %v3322
        %v3324 = vpop.f32.mrf.mxu0
        %3325 = vmatprep.mubr.bf16.mxu0 0
        %3326 = vmatmul.mubr.bf16.gmra.mxu0 %v2179
        %v3327 = vpop.f32.mrf.mxu0
        %v3328 = vadd.f32 %v691, %v3327
        %v3329 = vpop.f32.mrf.mxu0
        %v3330 = vpop.f32.mrf.mxu0
        %v3331 = vadd.f32 %v691, %v3330
        %v3332 = vpop.f32.mrf.mxu0
        %3333 = vmatprep.mubr.bf16.mxu0 0
        %3334 = vmatmul.mubr.bf16.gmra.mxu0 %v2182
        %v3335 = vpop.f32.mrf.mxu0
        %v3336 = vadd.f32 %v691, %v3335
        %v3337 = vpop.f32.mrf.mxu0
        %v3338 = vpop.f32.mrf.mxu0
        %v3339 = vadd.f32 %v691, %v3338
        %v3340 = vpop.f32.mrf.mxu0
        %3341 = vmatprep.mubr.bf16.mxu0 0
        %3342 = vmatmul.mubr.bf16.gmra.mxu0 %v2185
        %v3343 = vpop.f32.mrf.mxu0
        %v3344 = vadd.f32 %v691, %v3343
        %v3345 = vpop.f32.mrf.mxu0
        %v3346 = vpop.f32.mrf.mxu0
        %v3347 = vadd.f32 %v691, %v3346
        %v3348 = vpop.f32.mrf.mxu0
        %3349 = vmatprep.mubr.bf16.mxu0 0
        %3350 = vmatmul.mubr.bf16.gmra.mxu0 %v2188
        %v3351 = vpop.f32.mrf.mxu0
        %v3352 = vadd.f32 %v691, %v3351
        %v3353 = vpop.f32.mrf.mxu0
        %v3354 = vpop.f32.mrf.mxu0
        %v3355 = vadd.f32 %v691, %v3354
        %v3356 = vpop.f32.mrf.mxu0
        %3357 = vmatprep.mubr.bf16.mxu0 0
        %3358 = vmatmul.mubr.bf16.gmra.mxu0 %v2191
        %v3359 = vpop.f32.mrf.mxu0
        %v3360 = vadd.f32 %v691, %v3359
        %v3361 = vpop.f32.mrf.mxu0
        %v3362 = vpop.f32.mrf.mxu0
        %v3363 = vadd.f32 %v691, %v3362
        %v3364 = vpop.f32.mrf.mxu0
        %3365 = vmatprep.mubr.bf16.mxu0 0
        %3366 = vmatmul.mubr.bf16.gmra.mxu0 %v2194
        %v3367 = vpop.f32.mrf.mxu0
        %v3368 = vadd.f32 %v691, %v3367
        %v3369 = vpop.f32.mrf.mxu0
        %v3370 = vpop.f32.mrf.mxu0
        %v3371 = vadd.f32 %v691, %v3370
        %v3372 = vpop.f32.mrf.mxu0
        %3373 = vmatprep.mubr.bf16.mxu0 0
        %3374 = vmatmul.mubr.bf16.gmra.mxu0 %v2197
        %v3375 = vpop.f32.mrf.mxu0
        %v3376 = vadd.f32 %v691, %v3375
        %v3377 = vpop.f32.mrf.mxu0
        %v3378 = vpop.f32.mrf.mxu0
        %v3379 = vadd.f32 %v691, %v3378
        %v3380 = vpop.f32.mrf.mxu0
        %3381 = vmatprep.mubr.bf16.mxu0 0
        %3382 = vmatmul.mubr.bf16.gmra.mxu0 %v2200
        %v3383 = vpop.f32.mrf.mxu0
        %v3384 = vadd.f32 %v691, %v3383
        %v3385 = vpop.f32.mrf.mxu0
        %v3386 = vpop.f32.mrf.mxu0
        %v3387 = vadd.f32 %v691, %v3386
        %v3388 = vpop.f32.mrf.mxu0
        %3389 = vmatprep.mubr.bf16.mxu0 0
        %3390 = vmatmul.mubr.bf16.gmra.mxu0 %v2203
        %v3391 = vpop.f32.mrf.mxu0
        %v3392 = vadd.f32 %v691, %v3391
        %v3393 = vpop.f32.mrf.mxu0
        %v3394 = vpop.f32.mrf.mxu0
        %v3395 = vadd.f32 %v691, %v3394
        %v3396 = vpop.f32.mrf.mxu0
        %3397 = vmatprep.mubr.bf16.mxu0 0
        %3398 = vmatmul.mubr.bf16.gmra.mxu0 %v2206
        %v3399 = vpop.f32.mrf.mxu0
        %v3400 = vadd.f32 %v691, %v3399
        %v3401 = vpop.f32.mrf.mxu0
        %v3402 = vpop.f32.mrf.mxu0
        %v3403 = vadd.f32 %v691, %v3402
        %v3404 = vpop.f32.mrf.mxu0
        %3405 = vmatprep.mubr.bf16.mxu0 0
        %3406 = vmatmul.mubr.bf16.gmra.mxu0 %v2209
        %v3407 = vpop.f32.mrf.mxu0
        %v3408 = vadd.f32 %v691, %v3407
        %v3409 = vpop.f32.mrf.mxu0
        %v3410 = vpop.f32.mrf.mxu0
        %v3411 = vadd.f32 %v691, %v3410
        %v3412 = vpop.f32.mrf.mxu0
        %3413 = vmatprep.mubr.bf16.mxu0 0
        %3414 = vmatmul.mubr.bf16.gmra.mxu0 %v2212
        %v3415 = vpop.f32.mrf.mxu0
        %v3416 = vadd.f32 %v691, %v3415
        %v3417 = vpop.f32.mrf.mxu0
        %v3418 = vpop.f32.mrf.mxu0
        %v3419 = vadd.f32 %v691, %v3418
        %v3420 = vpop.f32.mrf.mxu0
        %3421 = vmatprep.mubr.bf16.mxu0 0
        %3422 = vmatmul.mubr.bf16.gmra.mxu0 %v2215
        %v3423 = vpop.f32.mrf.mxu0
        %v3424 = vadd.f32 %v691, %v3423
        %v3425 = vpop.f32.mrf.mxu0
        %v3426 = vpop.f32.mrf.mxu0
        %v3427 = vadd.f32 %v691, %v3426
        %v3428 = vpop.f32.mrf.mxu0
        %3429 = vmatprep.mubr.bf16.mxu0 0
        %3430 = vmatmul.mubr.bf16.gmra.mxu0 %v2218
        %v3431 = vpop.f32.mrf.mxu0
        %v3432 = vadd.f32 %v691, %v3431
        %v3433 = vpop.f32.mrf.mxu0
        %v3434 = vpop.f32.mrf.mxu0
        %v3435 = vadd.f32 %v691, %v3434
        %v3436 = vpop.f32.mrf.mxu0
        %3437 = vmatprep.mubr.bf16.mxu0 0
        %3438 = vmatmul.mubr.bf16.gmra.mxu0 %v2221
        %v3439 = vpop.f32.mrf.mxu0
        %v3440 = vadd.f32 %v691, %v3439
        %v3441 = vpop.f32.mrf.mxu0
        %v3442 = vpop.f32.mrf.mxu0
        %v3443 = vadd.f32 %v691, %v3442
        %v3444 = vpop.f32.mrf.mxu0
        %3445 = vmatprep.mubr.bf16.mxu0 0
        %3446 = vmatmul.mubr.bf16.gmra.mxu0 %v2224
        %v3447 = vpop.f32.mrf.mxu0
        %v3448 = vadd.f32 %v691, %v3447
        %v3449 = vpop.f32.mrf.mxu0
        %v3450 = vpop.f32.mrf.mxu0
        %v3451 = vadd.f32 %v691, %v3450
        %v3452 = vpop.f32.mrf.mxu0
        %3453 = vmatprep.mubr.bf16.mxu0 0
        %3454 = vmatmul.mubr.bf16.gmra.mxu0 %v2227
        %v3455 = vpop.f32.mrf.mxu0
        %v3456 = vadd.f32 %v691, %v3455
        %v3457 = vpop.f32.mrf.mxu0
        %v3458 = vpop.f32.mrf.mxu0
        %v3459 = vadd.f32 %v691, %v3458
        %v3460 = vpop.f32.mrf.mxu0
        %3461 = vmatprep.mubr.bf16.mxu0 0
        %3462 = vmatmul.mubr.bf16.gmra.mxu0 %v2230
        %v3463 = vpop.f32.mrf.mxu0
        %v3464 = vadd.f32 %v691, %v3463
        %v3465 = vpop.f32.mrf.mxu0
        %v3466 = vpop.f32.mrf.mxu0
        %v3467 = vadd.f32 %v691, %v3466
        %v3468 = vpop.f32.mrf.mxu0
        %3469 = vmatprep.mubr.bf16.mxu0 0
        %3470 = vmatmul.mubr.bf16.gmra.mxu0 %v2233
        %v3471 = vpop.f32.mrf.mxu0
        %v3472 = vadd.f32 %v691, %v3471
        %v3473 = vpop.f32.mrf.mxu0
        %v3474 = vpop.f32.mrf.mxu0
        %v3475 = vadd.f32 %v691, %v3474
        %v3476 = vpop.f32.mrf.mxu0
        %3477 = vmatprep.mubr.bf16.mxu0 0
        %3478 = vmatmul.mubr.bf16.gmra.mxu0 %v2236
        %v3479 = vpop.f32.mrf.mxu0
        %v3480 = vadd.f32 %v691, %v3479
        %v3481 = vpop.f32.mrf.mxu0
        %v3482 = vpop.f32.mrf.mxu0
        %v3483 = vadd.f32 %v691, %v3482
        %v3484 = vpop.f32.mrf.mxu0
        %3485 = vmatprep.mubr.bf16.mxu0 0
        %3486 = vmatmul.mubr.bf16.gmra.mxu0 %v2239
        %v3487 = vpop.f32.mrf.mxu0
        %v3488 = vadd.f32 %v691, %v3487
        %v3489 = vpop.f32.mrf.mxu0
        %v3490 = vpop.f32.mrf.mxu0
        %v3491 = vadd.f32 %v691, %v3490
        %v3492 = vpop.f32.mrf.mxu0
        %3493 = vmatprep.mubr.bf16.mxu0 0
        %3494 = vmatmul.mubr.bf16.gmra.mxu0 %v2242
        %v3495 = vpop.f32.mrf.mxu0
        %v3496 = vadd.f32 %v691, %v3495
        %v3497 = vpop.f32.mrf.mxu0
        %v3498 = vpop.f32.mrf.mxu0
        %v3499 = vadd.f32 %v691, %v3498
        %v3500 = vpop.f32.mrf.mxu0
        %3501 = vmatprep.mubr.bf16.mxu0 0
        %3502 = vmatmul.mubr.bf16.gmra.mxu0 %v2245
        %v3503 = vpop.f32.mrf.mxu0
        %v3504 = vadd.f32 %v691, %v3503
        %v3505 = vpop.f32.mrf.mxu0
        %v3506 = vpop.f32.mrf.mxu0
        %v3507 = vadd.f32 %v691, %v3506
        %v3508 = vpop.f32.mrf.mxu0
        %3509 = vmatprep.mubr.bf16.mxu0 0
        %3510 = vmatmul.mubr.bf16.gmra.mxu0 %v2248
        %v3511 = vpop.f32.mrf.mxu0
        %v3512 = vadd.f32 %v691, %v3511
        %v3513 = vpop.f32.mrf.mxu0
        %v3514 = vpop.f32.mrf.mxu0
        %v3515 = vadd.f32 %v691, %v3514
        %v3516 = vpop.f32.mrf.mxu0
        %3517 = vmatprep.mubr.bf16.mxu0 0
        %3518 = vmatmul.mubr.bf16.gmra.mxu0 %v2251
        %v3519 = vpop.f32.mrf.mxu0
        %v3520 = vadd.f32 %v691, %v3519
        %v3521 = vpop.f32.mrf.mxu0
        %v3522 = vpop.f32.mrf.mxu0
        %v3523 = vadd.f32 %v691, %v3522
        %v3524 = vpop.f32.mrf.mxu0
        %3525 = vmatprep.mubr.bf16.mxu0 0
        %3526 = vmatmul.mubr.bf16.gmra.mxu0 %v2254
        %v3527 = vpop.f32.mrf.mxu0
        %v3528 = vadd.f32 %v691, %v3527
        %v3529 = vpop.f32.mrf.mxu0
        %v3530 = vpop.f32.mrf.mxu0
        %v3531 = vadd.f32 %v691, %v3530
        %v3532 = vpop.f32.mrf.mxu0
        %3533 = vmatprep.mubr.bf16.mxu0 0
        %3534 = vmatmul.mubr.bf16.gmra.mxu0 %v2257
        %v3535 = vpop.f32.mrf.mxu0
        %v3536 = vadd.f32 %v691, %v3535
        %v3537 = vpop.f32.mrf.mxu0
        %v3538 = vpop.f32.mrf.mxu0
        %v3539 = vadd.f32 %v691, %v3538
        %v3540 = vpop.f32.mrf.mxu0
        %3541 = vmatprep.mubr.bf16.mxu0 0
        %3542 = vmatmul.mubr.bf16.gmra.mxu0 %v2260
        %v3543 = vpop.f32.mrf.mxu0
        %v3544 = vadd.f32 %v691, %v3543
        %v3545 = vpop.f32.mrf.mxu0
        %v3546 = vpop.f32.mrf.mxu0
        %v3547 = vadd.f32 %v691, %v3546
        %v3548 = vpop.f32.mrf.mxu0
        %3549 = vmatprep.mubr.bf16.mxu0 0
        %3550 = vmatmul.mubr.bf16.gmra.mxu0 %v2263
        %v3551 = vpop.f32.mrf.mxu0
        %v3552 = vadd.f32 %v691, %v3551
        %v3553 = vpop.f32.mrf.mxu0
        %v3554 = vpop.f32.mrf.mxu0
        %v3555 = vadd.f32 %v691, %v3554
        %v3556 = vpop.f32.mrf.mxu0
        %3557 = vmatprep.mubr.bf16.mxu0 0
        %3558 = vmatmul.mubr.bf16.gmra.mxu0 %v2266
        %v3559 = vpop.f32.mrf.mxu0
        %v3560 = vadd.f32 %v691, %v3559
        %v3561 = vpop.f32.mrf.mxu0
        %v3562 = vpop.f32.mrf.mxu0
        %v3563 = vadd.f32 %v691, %v3562
        %v3564 = vpop.f32.mrf.mxu0
        %3565 = vmatprep.mubr.bf16.mxu0 0
        %3566 = vmatmul.mubr.bf16.gmra.mxu0 %v2269
        %v3567 = vpop.f32.mrf.mxu0
        %v3568 = vadd.f32 %v691, %v3567
        %v3569 = vpop.f32.mrf.mxu0
        %v3570 = vpop.f32.mrf.mxu0
        %v3571 = vadd.f32 %v691, %v3570
        %v3572 = vpop.f32.mrf.mxu0
        %3573 = vmatprep.mubr.bf16.mxu0 0
        %3574 = vmatmul.mubr.bf16.gmra.mxu0 %v2272
        %v3575 = vpop.f32.mrf.mxu0
        %v3576 = vadd.f32 %v691, %v3575
        %v3577 = vpop.f32.mrf.mxu0
        %v3578 = vpop.f32.mrf.mxu0
        %v3579 = vadd.f32 %v691, %v3578
        %v3580 = vpop.f32.mrf.mxu0
        %3581 = vmatprep.mubr.bf16.mxu0 0
        %3582 = vmatmul.mubr.bf16.gmra.mxu0 %v2275
        %v3583 = vpop.f32.mrf.mxu0
        %v3584 = vadd.f32 %v691, %v3583
        %v3585 = vpop.f32.mrf.mxu0
        %v3586 = vpop.f32.mrf.mxu0
        %v3587 = vadd.f32 %v691, %v3586
        %v3588 = vpop.f32.mrf.mxu0
        %3589 = vmatprep.mubr.bf16.mxu0 0
        %3590 = vmatmul.mubr.bf16.gmra.mxu0 %v2278
        %v3591 = vpop.f32.mrf.mxu0
        %v3592 = vadd.f32 %v691, %v3591
        %v3593 = vpop.f32.mrf.mxu0
        %v3594 = vpop.f32.mrf.mxu0
        %v3595 = vadd.f32 %v691, %v3594
        %v3596 = vpop.f32.mrf.mxu0
        %3597 = vmatprep.mubr.bf16.mxu0 0
        %3598 = vmatmul.mubr.bf16.gmra.mxu0 %v2281
        %v3599 = vpop.f32.mrf.mxu0
        %v3600 = vadd.f32 %v691, %v3599
        %v3601 = vpop.f32.mrf.mxu0
        %v3602 = vpop.f32.mrf.mxu0
        %v3603 = vadd.f32 %v691, %v3602
        %v3604 = vpop.f32.mrf.mxu0
        %3605 = vmatprep.mubr.bf16.mxu0 0
        %3606 = vmatmul.mubr.bf16.gmra.mxu0 %v2284
        %v3607 = vpop.f32.mrf.mxu0
        %v3608 = vadd.f32 %v691, %v3607
        %v3609 = vpop.f32.mrf.mxu0
        %v3610 = vpop.f32.mrf.mxu0
        %v3611 = vadd.f32 %v691, %v3610
        %v3612 = vpop.f32.mrf.mxu0
        %3613 = vmatprep.mubr.bf16.mxu0 0
        %3614 = vmatmul.mubr.bf16.gmra.mxu0 %v2287
        %v3615 = vpop.f32.mrf.mxu0
        %v3616 = vadd.f32 %v691, %v3615
        %v3617 = vpop.f32.mrf.mxu0
        %v3618 = vpop.f32.mrf.mxu0
        %v3619 = vadd.f32 %v691, %v3618
        %v3620 = vpop.f32.mrf.mxu0
        %3621 = vmatprep.mubr.bf16.mxu0 0
        %3622 = vmatmul.mubr.bf16.gmra.mxu0 %v2290
        %v3623 = vpop.f32.mrf.mxu0
        %v3624 = vadd.f32 %v691, %v3623
        %v3625 = vpop.f32.mrf.mxu0
        %v3626 = vpop.f32.mrf.mxu0
        %v3627 = vadd.f32 %v691, %v3626
        %v3628 = vpop.f32.mrf.mxu0
        %3629 = vmatprep.mubr.bf16.mxu0 0
        %3630 = vmatmul.mubr.bf16.gmra.mxu0 %v2293
        %v3631 = vpop.f32.mrf.mxu0
        %v3632 = vadd.f32 %v691, %v3631
        %v3633 = vpop.f32.mrf.mxu0
        %v3634 = vpop.f32.mrf.mxu0
        %v3635 = vadd.f32 %v691, %v3634
        %v3636 = vpop.f32.mrf.mxu0
        %3637 = vmatprep.mubr.bf16.mxu0 0
        %3638 = vmatmul.mubr.bf16.gmra.mxu0 %v2296
        %v3639 = vpop.f32.mrf.mxu0
        %v3640 = vadd.f32 %v691, %v3639
        %v3641 = vpop.f32.mrf.mxu0
        %v3642 = vpop.f32.mrf.mxu0
        %v3643 = vadd.f32 %v691, %v3642
        %v3644 = vpop.f32.mrf.mxu0
        %3645 = vmatprep.mubr.bf16.mxu0 0
        %3646 = vmatmul.mubr.bf16.gmra.mxu0 %v2299
        %v3647 = vpop.f32.mrf.mxu0
        %v3648 = vadd.f32 %v691, %v3647
        %v3649 = vpop.f32.mrf.mxu0
        %v3650 = vpop.f32.mrf.mxu0
        %v3651 = vadd.f32 %v691, %v3650
        %v3652 = vpop.f32.mrf.mxu0
        %3653 = vmatprep.mubr.bf16.mxu0 0
        %3654 = vmatmul.mubr.bf16.gmra.mxu0 %v2302
        %v3655 = vpop.f32.mrf.mxu0
        %v3656 = vadd.f32 %v691, %v3655
        %v3657 = vpop.f32.mrf.mxu0
        %v3658 = vpop.f32.mrf.mxu0
        %v3659 = vadd.f32 %v691, %v3658
        %v3660 = vpop.f32.mrf.mxu0
        %3661 = vmatprep.mubr.bf16.mxu0 0
        %3662 = vmatmul.mubr.bf16.gmra.mxu0 %v2305
        %v3663 = vpop.f32.mrf.mxu0
        %v3664 = vadd.f32 %v691, %v3663
        %v3665 = vpop.f32.mrf.mxu0
        %v3666 = vpop.f32.mrf.mxu0
        %v3667 = vadd.f32 %v691, %v3666
        %v3668 = vpop.f32.mrf.mxu0
        %3669 = vmatprep.mubr.bf16.mxu0 0
        %3670 = vmatmul.mubr.bf16.gmra.mxu0 %v2308
        %v3671 = vpop.f32.mrf.mxu0
        %v3672 = vadd.f32 %v691, %v3671
        %v3673 = vpop.f32.mrf.mxu0
        %v3674 = vpop.f32.mrf.mxu0
        %v3675 = vadd.f32 %v691, %v3674
        %v3676 = vpop.f32.mrf.mxu0
        %3677 = vmatprep.mubr.bf16.mxu0 0
        %3678 = vmatmul.mubr.bf16.gmra.mxu0 %v2311
        %v3679 = vpop.f32.mrf.mxu0
        %v3680 = vadd.f32 %v691, %v3679
        %v3681 = vpop.f32.mrf.mxu0
        %v3682 = vpop.f32.mrf.mxu0
        %v3683 = vadd.f32 %v691, %v3682
        %v3684 = vpop.f32.mrf.mxu0
        %3685 = vmatprep.mubr.bf16.mxu0 0
        %3686 = vmatmul.mubr.bf16.gmra.mxu0 %v2314
        %v3687 = vpop.f32.mrf.mxu0
        %v3688 = vadd.f32 %v691, %v3687
        %v3689 = vpop.f32.mrf.mxu0
        %v3690 = vpop.f32.mrf.mxu0
        %v3691 = vadd.f32 %v691, %v3690
        %v3692 = vpop.f32.mrf.mxu0
        %3693 = vmatprep.mubr.bf16.mxu0 0
        %3694 = vmatmul.mubr.bf16.gmra.mxu0 %v2317
        %v3695 = vpop.f32.mrf.mxu0
        %v3696 = vadd.f32 %v691, %v3695
        %v3697 = vpop.f32.mrf.mxu0
        %v3698 = vpop.f32.mrf.mxu0
        %v3699 = vadd.f32 %v691, %v3698
        %v3700 = vpop.f32.mrf.mxu0
        %3701 = vmatprep.mubr.bf16.mxu0 0
        %3702 = vmatmul.mubr.bf16.gmra.mxu0 %v2320
        %v3703 = vpop.f32.mrf.mxu0
        %v3704 = vadd.f32 %v691, %v3703
        %v3705 = vpop.f32.mrf.mxu0
        %v3706 = vpop.f32.mrf.mxu0
        %v3707 = vadd.f32 %v691, %v3706
        %v3708 = vpop.f32.mrf.mxu0
        %3709 = vmatprep.mubr.bf16.mxu0 0
        %3710 = vmatmul.mubr.bf16.gmra.mxu0 %v2323
        %v3711 = vpop.f32.mrf.mxu0
        %v3712 = vadd.f32 %v691, %v3711
        %v3713 = vpop.f32.mrf.mxu0
        %v3714 = vpop.f32.mrf.mxu0
        %v3715 = vadd.f32 %v691, %v3714
        %v3716 = vpop.f32.mrf.mxu0
        %3717 = vmatprep.mubr.bf16.mxu0 0
        %3718 = vmatmul.mubr.bf16.gmra.mxu0 %v2326
        %v3719 = vpop.f32.mrf.mxu0
        %v3720 = vadd.f32 %v691, %v3719
        %v3721 = vpop.f32.mrf.mxu0
        %v3722 = vpop.f32.mrf.mxu0
        %v3723 = vadd.f32 %v691, %v3722
        %v3724 = vpop.f32.mrf.mxu0
        %3725 = vmatprep.mubr.bf16.mxu0 0
        %3726 = vmatmul.mubr.bf16.gmra.mxu0 %v2329
        %v3727 = vpop.f32.mrf.mxu0
        %v3728 = vadd.f32 %v691, %v3727
        %v3729 = vpop.f32.mrf.mxu0
        %v3730 = vpop.f32.mrf.mxu0
        %v3731 = vadd.f32 %v691, %v3730
        %v3732 = vpop.f32.mrf.mxu0
        %3733 = vmatprep.mubr.bf16.mxu0 0
        %3734 = vmatmul.mubr.bf16.gmra.mxu0 %v2332
        %v3735 = vpop.f32.mrf.mxu0
        %v3736 = vadd.f32 %v691, %v3735
        %v3737 = vpop.f32.mrf.mxu0
        %v3738 = vpop.f32.mrf.mxu0
        %v3739 = vadd.f32 %v691, %v3738
        %v3740 = vpop.f32.mrf.mxu0
        %3741 = vmatprep.mubr.bf16.mxu0 0
        %3742 = vmatmul.mubr.bf16.gmra.mxu0 %v2335
        %v3743 = vpop.f32.mrf.mxu0
        %v3744 = vadd.f32 %v691, %v3743
        %v3745 = vpop.f32.mrf.mxu0
        %v3746 = vpop.f32.mrf.mxu0
        %v3747 = vadd.f32 %v691, %v3746
        %v3748 = vpop.f32.mrf.mxu0
        %3749 = vmatprep.mubr.bf16.mxu0 0
        %3750 = vmatmul.mubr.bf16.gmra.mxu0 %v2338
        %v3751 = vpop.f32.mrf.mxu0
        %v3752 = vadd.f32 %v691, %v3751
        %v3753 = vpop.f32.mrf.mxu0
        %v3754 = vpop.f32.mrf.mxu0
        %v3755 = vadd.f32 %v691, %v3754
        %v3756 = vpop.f32.mrf.mxu0
        %3757 = vmatprep.mubr.bf16.mxu0 0
        %3758 = vmatmul.mubr.bf16.gmra.mxu0 %v2341
        %v3759 = vpop.f32.mrf.mxu0
        %v3760 = vadd.f32 %v691, %v3759
        %v3761 = vpop.f32.mrf.mxu0
        %v3762 = vpop.f32.mrf.mxu0
        %v3763 = vadd.f32 %v691, %v3762
        %v3764 = vpop.f32.mrf.mxu0
        %3765 = vmatprep.mubr.bf16.mxu0 0
        %3766 = vmatmul.mubr.bf16.gmra.mxu0 %v2344
        %v3767 = vpop.f32.mrf.mxu0
        %v3768 = vadd.f32 %v691, %v3767
        %v3769 = vpop.f32.mrf.mxu0
        %v3770 = vpop.f32.mrf.mxu0
        %v3771 = vadd.f32 %v691, %v3770
        %v3772 = vpop.f32.mrf.mxu0
        %3773 = vmatprep.mubr.bf16.mxu0 0
        %3774 = vmatmul.mubr.bf16.gmra.mxu0 %v2347
        %v3775 = vpop.f32.mrf.mxu0
        %v3776 = vadd.f32 %v691, %v3775
        %v3777 = vpop.f32.mrf.mxu0
        %v3778 = vpop.f32.mrf.mxu0
        %v3779 = vadd.f32 %v691, %v3778
        %v3780 = vpop.f32.mrf.mxu0
        %3781 = vmatprep.mubr.bf16.mxu0 0
        %3782 = vmatmul.mubr.bf16.gmra.mxu0 %v2350
        %v3783 = vpop.f32.mrf.mxu0
        %v3784 = vadd.f32 %v691, %v3783
        %v3785 = vpop.f32.mrf.mxu0
        %v3786 = vpop.f32.mrf.mxu0
        %v3787 = vadd.f32 %v691, %v3786
        %v3788 = vpop.f32.mrf.mxu0
        %3789 = vmatprep.mubr.bf16.mxu0 0
        %3790 = vmatmul.mubr.bf16.gmra.mxu0 %v2353
        %v3791 = vpop.f32.mrf.mxu0
        %v3792 = vadd.f32 %v691, %v3791
        %v3793 = vpop.f32.mrf.mxu0
        %v3794 = vpop.f32.mrf.mxu0
        %v3795 = vadd.f32 %v691, %v3794
        %v3796 = vpop.f32.mrf.mxu0
        %3797 = vmatprep.mubr.bf16.mxu0 0
        %3798 = vmatmul.mubr.bf16.gmra.mxu0 %v2356
        %v3799 = vpop.f32.mrf.mxu0
        %v3800 = vadd.f32 %v691, %v3799
        %v3801 = vpop.f32.mrf.mxu0
        %v3802 = vpop.f32.mrf.mxu0
        %v3803 = vadd.f32 %v691, %v3802
        %v3804 = vpop.f32.mrf.mxu0
        %3805 = vmatprep.mubr.bf16.mxu0 0
        %3806 = vmatmul.mubr.bf16.gmra.mxu0 %v2359
        %v3807 = vpop.f32.mrf.mxu0
        %v3808 = vadd.f32 %v691, %v3807
        %v3809 = vpop.f32.mrf.mxu0
        %v3810 = vpop.f32.mrf.mxu0
        %v3811 = vadd.f32 %v691, %v3810
        %v3812 = vpop.f32.mrf.mxu0
        %3813 = vmatprep.mubr.bf16.mxu0 0
        %3814 = vmatmul.mubr.bf16.gmra.mxu0 %v2362
        %v3815 = vpop.f32.mrf.mxu0
        %v3816 = vadd.f32 %v691, %v3815
        %v3817 = vpop.f32.mrf.mxu0
        %v3818 = vpop.f32.mrf.mxu0
        %v3819 = vadd.f32 %v691, %v3818
        %v3820 = vpop.f32.mrf.mxu0
        %3821 = vmatprep.mubr.bf16.mxu0 0
        %3822 = vmatmul.mubr.bf16.gmra.mxu0 %v2365
        %v3823 = vpop.f32.mrf.mxu0
        %v3824 = vadd.f32 %v691, %v3823
        %v3825 = vpop.f32.mrf.mxu0
        %v3826 = vpop.f32.mrf.mxu0
        %v3827 = vadd.f32 %v691, %v3826
        %v3828 = vpop.f32.mrf.mxu0
        %3829 = vmatprep.mubr.bf16.mxu0 0
        %3830 = vmatmul.mubr.bf16.gmra.mxu0 %v2368
        %v3831 = vpop.f32.mrf.mxu0
        %v3832 = vadd.f32 %v691, %v3831
        %v3833 = vpop.f32.mrf.mxu0
        %v3834 = vpop.f32.mrf.mxu0
        %v3835 = vadd.f32 %v691, %v3834
        %v3836 = vpop.f32.mrf.mxu0
        %3837 = vmatprep.mubr.bf16.mxu0 0
        %3838 = vmatmul.mubr.bf16.gmra.mxu0 %v2371
        %v3839 = vpop.f32.mrf.mxu0
        %v3840 = vadd.f32 %v691, %v3839
        %v3841 = vpop.f32.mrf.mxu0
        %v3842 = vpop.f32.mrf.mxu0
        %v3843 = vadd.f32 %v691, %v3842
        %v3844 = vpop.f32.mrf.mxu0
        %3845 = vmatprep.mubr.bf16.mxu0 0
        %3846 = vmatmul.mubr.bf16.gmra.mxu0 %v2374
        %v3847 = vpop.f32.mrf.mxu0
        %v3848 = vadd.f32 %v691, %v3847
        %v3849 = vpop.f32.mrf.mxu0
        %v3850 = vpop.f32.mrf.mxu0
        %v3851 = vadd.f32 %v691, %v3850
        %v3852 = vpop.f32.mrf.mxu0
        %3853 = vmatprep.mubr.bf16.mxu0 0
        %3854 = vmatmul.mubr.bf16.gmra.mxu0 %v2377
        %v3855 = vpop.f32.mrf.mxu0
        %v3856 = vadd.f32 %v691, %v3855
        %v3857 = vpop.f32.mrf.mxu0
        %v3858 = vpop.f32.mrf.mxu0
        %v3859 = vadd.f32 %v691, %v3858
        %v3860 = vpop.f32.mrf.mxu0
        %3861 = vmatprep.mubr.bf16.mxu0 0
        %3862 = vmatmul.mubr.bf16.gmra.mxu0 %v2380
        %v3863 = vpop.f32.mrf.mxu0
        %v3864 = vadd.f32 %v691, %v3863
        %v3865 = vpop.f32.mrf.mxu0
        %v3866 = vpop.f32.mrf.mxu0
        %v3867 = vadd.f32 %v691, %v3866
        %v3868 = vpop.f32.mrf.mxu0
        %3869 = vmatprep.mubr.bf16.mxu0 0
        %3870 = vmatmul.mubr.bf16.gmra.mxu0 %v2383
        %v3871 = vpop.f32.mrf.mxu0
        %v3872 = vadd.f32 %v691, %v3871
        %v3873 = vpop.f32.mrf.mxu0
        %v3874 = vpop.f32.mrf.mxu0
        %v3875 = vadd.f32 %v691, %v3874
        %v3876 = vpop.f32.mrf.mxu0
        %3877 = vmatprep.mubr.bf16.mxu0 0
        %3878 = vmatmul.mubr.bf16.gmra.mxu0 %v2386
        %v3879 = vpop.f32.mrf.mxu0
        %v3880 = vadd.f32 %v691, %v3879
        %v3881 = vpop.f32.mrf.mxu0
        %v3882 = vpop.f32.mrf.mxu0
        %v3883 = vadd.f32 %v691, %v3882
        %v3884 = vpop.f32.mrf.mxu0
        %3885 = vmatprep.mubr.bf16.mxu0 0
        %3886 = vmatmul.mubr.bf16.gmra.mxu0 %v2389
        %v3887 = vpop.f32.mrf.mxu0
        %v3888 = vadd.f32 %v691, %v3887
        %v3889 = vpop.f32.mrf.mxu0
        %v3890 = vpop.f32.mrf.mxu0
        %v3891 = vadd.f32 %v691, %v3890
        %v3892 = vpop.f32.mrf.mxu0
        %3893 = vmatprep.mubr.bf16.mxu0 0
        %3894 = vmatmul.mubr.bf16.gmra.mxu0 %v2392
        %v3895 = vpop.f32.mrf.mxu0
        %v3896 = vadd.f32 %v691, %v3895
        %v3897 = vpop.f32.mrf.mxu0
        %v3898 = vpop.f32.mrf.mxu0
        %v3899 = vadd.f32 %v691, %v3898
        %v3900 = vpop.f32.mrf.mxu0
        %3901 = vmatprep.mubr.bf16.mxu0 0
        %3902 = vmatmul.mubr.bf16.gmra.mxu0 %v2395
        %v3903 = vpop.f32.mrf.mxu0
        %v3904 = vadd.f32 %v691, %v3903
        %v3905 = vpop.f32.mrf.mxu0
        %v3906 = vpop.f32.mrf.mxu0
        %v3907 = vadd.f32 %v691, %v3906
        %v3908 = vpop.f32.mrf.mxu0
        %3909 = vmatprep.mubr.bf16.mxu0 0
        %3910 = vmatmul.mubr.bf16.gmra.mxu0 %v2398
        %v3911 = vpop.f32.mrf.mxu0
        %v3912 = vadd.f32 %v691, %v3911
        %v3913 = vpop.f32.mrf.mxu0
        %v3914 = vpop.f32.mrf.mxu0
        %v3915 = vadd.f32 %v691, %v3914
        %v3916 = vpop.f32.mrf.mxu0
        %3917 = vmatprep.mubr.bf16.mxu0 0
        %3918 = vmatmul.mubr.bf16.gmra.mxu0 %v2401
        %v3919 = vpop.f32.mrf.mxu0
        %v3920 = vadd.f32 %v691, %v3919
        %v3921 = vpop.f32.mrf.mxu0
        %v3922 = vpop.f32.mrf.mxu0
        %v3923 = vadd.f32 %v691, %v3922
        %v3924 = vpop.f32.mrf.mxu0
        %3925 = vmatprep.mubr.bf16.mxu0 0
        %3926 = vmatmul.mubr.bf16.gmra.mxu0 %v2404
        %v3927 = vpop.f32.mrf.mxu0
        %v3928 = vadd.f32 %v691, %v3927
        %v3929 = vpop.f32.mrf.mxu0
        %v3930 = vpop.f32.mrf.mxu0
        %v3931 = vadd.f32 %v691, %v3930
        %v3932 = vpop.f32.mrf.mxu0
        %3933 = vmatprep.mubr.bf16.mxu0 0
        %3934 = vmatmul.mubr.bf16.gmra.mxu0 %v2407
        %v3935 = vpop.f32.mrf.mxu0
        %v3936 = vadd.f32 %v691, %v3935
        %v3937 = vpop.f32.mrf.mxu0
        %v3938 = vpop.f32.mrf.mxu0
        %v3939 = vadd.f32 %v691, %v3938
        %v3940 = vpop.f32.mrf.mxu0
        %3941 = vmatprep.mubr.bf16.mxu0 0
        %3942 = vmatmul.mubr.bf16.gmra.mxu0 %v2410
        %v3943 = vpop.f32.mrf.mxu0
        %v3944 = vadd.f32 %v691, %v3943
        %v3945 = vpop.f32.mrf.mxu0
        %v3946 = vpop.f32.mrf.mxu0
        %v3947 = vadd.f32 %v691, %v3946
        %v3948 = vpop.f32.mrf.mxu0
        %3949 = vmatprep.mubr.bf16.mxu0 0
        %3950 = vmatmul.mubr.bf16.gmra.mxu0 %v2413
        %v3951 = vpop.f32.mrf.mxu0
        %v3952 = vadd.f32 %v691, %v3951
        %v3953 = vpop.f32.mrf.mxu0
        %v3954 = vpop.f32.mrf.mxu0
        %v3955 = vadd.f32 %v691, %v3954
        %v3956 = vpop.f32.mrf.mxu0
        %3957 = vmatprep.mubr.bf16.mxu0 0
        %3958 = vmatmul.mubr.bf16.gmra.mxu0 %v2416
        %v3959 = vpop.f32.mrf.mxu0
        %v3960 = vadd.f32 %v691, %v3959
        %v3961 = vpop.f32.mrf.mxu0
        %v3962 = vpop.f32.mrf.mxu0
        %v3963 = vadd.f32 %v691, %v3962
        %v3964 = vpop.f32.mrf.mxu0
        %3965 = vmatprep.mubr.bf16.mxu0 0
        %3966 = vmatmul.mubr.bf16.gmra.mxu0 %v2419
        %v3967 = vpop.f32.mrf.mxu0
        %v3968 = vadd.f32 %v691, %v3967
        %v3969 = vpop.f32.mrf.mxu0
        %v3970 = vpop.f32.mrf.mxu0
        %v3971 = vadd.f32 %v691, %v3970
        %v3972 = vpop.f32.mrf.mxu0
        %3973 = vmatprep.mubr.bf16.mxu0 0
        %3974 = vmatmul.mubr.bf16.gmra.mxu0 %v2422
        %v3975 = vpop.f32.mrf.mxu0
        %v3976 = vadd.f32 %v691, %v3975
        %v3977 = vpop.f32.mrf.mxu0
        %v3978 = vpop.f32.mrf.mxu0
        %v3979 = vadd.f32 %v691, %v3978
        %v3980 = vpop.f32.mrf.mxu0
        %3981 = vmatprep.mubr.bf16.mxu0 0
        %3982 = vmatmul.mubr.bf16.gmra.mxu0 %v2425
        %v3983 = vpop.f32.mrf.mxu0
        %v3984 = vadd.f32 %v691, %v3983
        %v3985 = vpop.f32.mrf.mxu0
        %v3986 = vpop.f32.mrf.mxu0
        %v3987 = vadd.f32 %v691, %v3986
        %v3988 = vpop.f32.mrf.mxu0
        %3989 = vmatprep.mubr.bf16.mxu0 0
        %3990 = vmatmul.mubr.bf16.gmra.mxu0 %v2428
        %v3991 = vpop.f32.mrf.mxu0
        %v3992 = vadd.f32 %v691, %v3991
        %v3993 = vpop.f32.mrf.mxu0
        %v3994 = vpop.f32.mrf.mxu0
        %v3995 = vadd.f32 %v691, %v3994
        %v3996 = vpop.f32.mrf.mxu0
        %3997 = vmatprep.mubr.bf16.mxu0 0
        %3998 = vmatmul.mubr.bf16.gmra.mxu0 %v2431
        %v3999 = vpop.f32.mrf.mxu0
        %v4000 = vadd.f32 %v691, %v3999
        %v4001 = vpop.f32.mrf.mxu0
        %v4002 = vpop.f32.mrf.mxu0
        %v4003 = vadd.f32 %v691, %v4002
        %v4004 = vpop.f32.mrf.mxu0
        %4005 = vmatprep.mubr.bf16.mxu0 0
        %4006 = vmatmul.mubr.bf16.gmra.mxu0 %v2434
        %v4007 = vpop.f32.mrf.mxu0
        %v4008 = vadd.f32 %v691, %v4007
        %v4009 = vpop.f32.mrf.mxu0
        %v4010 = vpop.f32.mrf.mxu0
        %v4011 = vadd.f32 %v691, %v4010
        %v4012 = vpop.f32.mrf.mxu0
        %4013 = vmatprep.mubr.bf16.mxu0 0
        %4014 = vmatmul.mubr.bf16.gmra.mxu0 %v2437
        %v4015 = vpop.f32.mrf.mxu0
        %v4016 = vadd.f32 %v691, %v4015
        %v4017 = vpop.f32.mrf.mxu0
        %v4018 = vpop.f32.mrf.mxu0
        %v4019 = vadd.f32 %v691, %v4018
        %v4020 = vpop.f32.mrf.mxu0
        %4021 = vmatprep.mubr.bf16.mxu0 0
        %4022 = vmatmul.mubr.bf16.gmra.mxu0 %v2440
        %v4023 = vpop.f32.mrf.mxu0
        %v4024 = vadd.f32 %v691, %v4023
        %v4025 = vpop.f32.mrf.mxu0
        %v4026 = vpop.f32.mrf.mxu0
        %v4027 = vadd.f32 %v691, %v4026
        %v4028 = vpop.f32.mrf.mxu0
        %4029 = vmatprep.mubr.bf16.mxu0 0
        %4030 = vmatmul.mubr.bf16.gmra.mxu0 %v2443
        %v4031 = vpop.f32.mrf.mxu0
        %v4032 = vadd.f32 %v691, %v4031
        %v4033 = vpop.f32.mrf.mxu0
        %v4034 = vpop.f32.mrf.mxu0
        %v4035 = vadd.f32 %v691, %v4034
        %v4036 = vpop.f32.mrf.mxu0
        %4037 = vmatprep.mubr.bf16.mxu0 0
        %4038 = vmatmul.mubr.bf16.gmra.mxu0 %v2446
        %v4039 = vpop.f32.mrf.mxu0
        %v4040 = vadd.f32 %v691, %v4039
        %v4041 = vpop.f32.mrf.mxu0
        %v4042 = vpop.f32.mrf.mxu0
        %v4043 = vadd.f32 %v691, %v4042
        %v4044 = vpop.f32.mrf.mxu0
        %4045 = vmatprep.mubr.bf16.mxu0 0
        %4046 = vmatmul.mubr.bf16.gmra.mxu0 %v2449
        %v4047 = vpop.f32.mrf.mxu0
        %v4048 = vadd.f32 %v691, %v4047
        %v4049 = vpop.f32.mrf.mxu0
        %v4050 = vpop.f32.mrf.mxu0
        %v4051 = vadd.f32 %v691, %v4050
        %v4052 = vpop.f32.mrf.mxu0
        %4053 = vmatprep.mubr.bf16.mxu0 0
        %4054 = vmatmul.mubr.bf16.gmra.mxu0 %v2452
        %v4055 = vpop.f32.mrf.mxu0
        %v4056 = vadd.f32 %v691, %v4055
        %v4057 = vpop.f32.mrf.mxu0
        %v4058 = vpop.f32.mrf.mxu0
        %v4059 = vadd.f32 %v691, %v4058
        %v4060 = vpop.f32.mrf.mxu0
        %4061 = vmatprep.mubr.bf16.mxu0 0
        %4062 = vmatmul.mubr.bf16.gmra.mxu0 %v2455
        %v4063 = vpop.f32.mrf.mxu0
        %v4064 = vadd.f32 %v691, %v4063
        %v4065 = vpop.f32.mrf.mxu0
        %v4066 = vpop.f32.mrf.mxu0
        %v4067 = vadd.f32 %v691, %v4066
        %v4068 = vpop.f32.mrf.mxu0
        %4069 = vmatprep.mubr.bf16.mxu0 0
        %4070 = vmatmul.mubr.bf16.gmra.mxu0 %v2458
        %v4071 = vpop.f32.mrf.mxu0
        %v4072 = vadd.f32 %v691, %v4071
        %v4073 = vpop.f32.mrf.mxu0
        %v4074 = vpop.f32.mrf.mxu0
        %v4075 = vadd.f32 %v691, %v4074
        %v4076 = vpop.f32.mrf.mxu0
        %4077 = vmatprep.mubr.bf16.mxu0 0
        %4078 = vmatmul.mubr.bf16.gmra.mxu0 %v2461
        %v4079 = vpop.f32.mrf.mxu0
        %v4080 = vadd.f32 %v691, %v4079
        %v4081 = vpop.f32.mrf.mxu0
        %v4082 = vpop.f32.mrf.mxu0
        %v4083 = vadd.f32 %v691, %v4082
        %v4084 = vpop.f32.mrf.mxu0
        %4085 = vmatprep.mubr.bf16.mxu0 0
        %4086 = vmatmul.mubr.bf16.gmra.mxu0 %v2464
        %v4087 = vpop.f32.mrf.mxu0
        %v4088 = vadd.f32 %v691, %v4087
        %v4089 = vpop.f32.mrf.mxu0
        %v4090 = vpop.f32.mrf.mxu0
        %v4091 = vadd.f32 %v691, %v4090
        %v4092 = vpop.f32.mrf.mxu0
        %4093 = vmatprep.mubr.bf16.mxu0 0
        %4094 = vmatmul.mubr.bf16.gmra.mxu0 %v2467
        %v4095 = vpop.f32.mrf.mxu0
        %v4096 = vadd.f32 %v691, %v4095
        %v4097 = vpop.f32.mrf.mxu0
        %v4098 = vpop.f32.mrf.mxu0
        %v4099 = vadd.f32 %v691, %v4098
        %v4100 = vpop.f32.mrf.mxu0
        %4101 = vmatprep.mubr.bf16.mxu0 0
        %4102 = vmatmul.mubr.bf16.gmra.mxu0 %v2470
        %v4103 = vpop.f32.mrf.mxu0
        %v4104 = vadd.f32 %v691, %v4103
        %v4105 = vpop.f32.mrf.mxu0
        %v4106 = vpop.f32.mrf.mxu0
        %v4107 = vadd.f32 %v691, %v4106
        %v4108 = vpop.f32.mrf.mxu0
        %4109 = vmatprep.mubr.bf16.mxu0 0
        %4110 = vmatmul.mubr.bf16.gmra.mxu0 %v2473
        %v4111 = vpop.f32.mrf.mxu0
        %v4112 = vadd.f32 %v691, %v4111
        %v4113 = vpop.f32.mrf.mxu0
        %v4114 = vpop.f32.mrf.mxu0
        %v4115 = vadd.f32 %v691, %v4114
        %v4116 = vpop.f32.mrf.mxu0
        %4117 = vmatprep.mubr.bf16.mxu0 0
        %4118 = vmatmul.mubr.bf16.gmra.mxu0 %v2476
        %v4119 = vpop.f32.mrf.mxu0
        %v4120 = vadd.f32 %v691, %v4119
        %v4121 = vpop.f32.mrf.mxu0
        %v4122 = vpop.f32.mrf.mxu0
        %v4123 = vadd.f32 %v691, %v4122
        %v4124 = vpop.f32.mrf.mxu0
        %4125 = vmatprep.mubr.bf16.mxu0 0
        %4126 = vmatmul.mubr.bf16.gmra.mxu0 %v2479
        %v4127 = vpop.f32.mrf.mxu0
        %v4128 = vadd.f32 %v691, %v4127
        %v4129 = vpop.f32.mrf.mxu0
        %v4130 = vpop.f32.mrf.mxu0
        %v4131 = vadd.f32 %v691, %v4130
        %v4132 = vpop.f32.mrf.mxu0
        %4133 = vmatprep.mubr.bf16.mxu0 0
        %4134 = vmatmul.mubr.bf16.gmra.mxu0 %v2482
        %v4135 = vpop.f32.mrf.mxu0
        %v4136 = vadd.f32 %v691, %v4135
        %v4137 = vpop.f32.mrf.mxu0
        %v4138 = vpop.f32.mrf.mxu0
        %v4139 = vadd.f32 %v691, %v4138
        %v4140 = vpop.f32.mrf.mxu0
        %4141 = vmatprep.mubr.bf16.mxu0 0
        %4142 = vmatmul.mubr.bf16.gmra.mxu0 %v2485
        %v4143 = vpop.f32.mrf.mxu0
        %v4144 = vadd.f32 %v691, %v4143
        %v4145 = vpop.f32.mrf.mxu0
        %v4146 = vpop.f32.mrf.mxu0
        %v4147 = vadd.f32 %v691, %v4146
        %v4148 = vpop.f32.mrf.mxu0
        %4149 = vmatprep.mubr.bf16.mxu0 0
        %4150 = vmatmul.mubr.bf16.gmra.mxu0 %v2488
        %v4151 = vpop.f32.mrf.mxu0
        %v4152 = vadd.f32 %v691, %v4151
        %v4153 = vpop.f32.mrf.mxu0
        %v4154 = vpop.f32.mrf.mxu0
        %v4155 = vadd.f32 %v691, %v4154
        %v4156 = vpop.f32.mrf.mxu0
        %4157 = vmatprep.mubr.bf16.mxu0 0
        %4158 = vmatmul.mubr.bf16.gmra.mxu0 %v2491
        %v4159 = vpop.f32.mrf.mxu0
        %v4160 = vadd.f32 %v691, %v4159
        %v4161 = vpop.f32.mrf.mxu0
        %v4162 = vpop.f32.mrf.mxu0
        %v4163 = vadd.f32 %v691, %v4162
        %v4164 = vpop.f32.mrf.mxu0
        %4165 = vmatprep.mubr.bf16.mxu0 0
        %4166 = vmatmul.mubr.bf16.gmra.mxu0 %v2494
        %v4167 = vpop.f32.mrf.mxu0
        %v4168 = vadd.f32 %v691, %v4167
        %v4169 = vpop.f32.mrf.mxu0
        %v4170 = vpop.f32.mrf.mxu0
        %v4171 = vadd.f32 %v691, %v4170
        %v4172 = vpop.f32.mrf.mxu0
        %4173 = vmatprep.mubr.bf16.mxu0 0
        %4174 = vmatmul.mubr.bf16.gmra.mxu0 %v2497
        %v4175 = vpop.f32.mrf.mxu0
        %v4176 = vadd.f32 %v691, %v4175
        %v4177 = vpop.f32.mrf.mxu0
        %v4178 = vpop.f32.mrf.mxu0
        %v4179 = vadd.f32 %v691, %v4178
        %v4180 = vpop.f32.mrf.mxu0
        %4181 = vmatprep.mubr.bf16.mxu0 0
        %4182 = vmatmul.mubr.bf16.gmra.mxu0 %v2500
        %v4183 = vpop.f32.mrf.mxu0
        %v4184 = vadd.f32 %v691, %v4183
        %v4185 = vpop.f32.mrf.mxu0
        %v4186 = vpop.f32.mrf.mxu0
        %v4187 = vadd.f32 %v691, %v4186
        %v4188 = vpop.f32.mrf.mxu0
        %4189 = vmatprep.mubr.bf16.mxu0 0
        %4190 = vmatmul.mubr.bf16.gmra.mxu0 %v2503
        %v4191 = vpop.f32.mrf.mxu0
        %v4192 = vadd.f32 %v691, %v4191
        %v4193 = vpop.f32.mrf.mxu0
        %v4194 = vpop.f32.mrf.mxu0
        %v4195 = vadd.f32 %v691, %v4194
        %v4196 = vpop.f32.mrf.mxu0
        %4197 = vmatprep.mubr.bf16.mxu0 0
        %4198 = vmatmul.mubr.bf16.gmra.mxu0 %v2506
        %v4199 = vpop.f32.mrf.mxu0
        %v4200 = vadd.f32 %v691, %v4199
        %v4201 = vpop.f32.mrf.mxu0
        %v4202 = vpop.f32.mrf.mxu0
        %v4203 = vadd.f32 %v691, %v4202
        %v4204 = vpop.f32.mrf.mxu0
        %4205 = vmatprep.mubr.bf16.mxu0 0
        %4206 = vmatmul.mubr.bf16.gmra.mxu0 %v2509
        %v4207 = vpop.f32.mrf.mxu0
        %v4208 = vadd.f32 %v691, %v4207
        %v4209 = vpop.f32.mrf.mxu0
        %v4210 = vpop.f32.mrf.mxu0
        %v4211 = vadd.f32 %v691, %v4210
        %v4212 = vpop.f32.mrf.mxu0
        %4213 = vmatprep.mubr.bf16.mxu0 0
        %4214 = vmatmul.mubr.bf16.gmra.mxu0 %v2512
        %v4215 = vpop.f32.mrf.mxu0
        %v4216 = vadd.f32 %v691, %v4215
        %v4217 = vpop.f32.mrf.mxu0
        %v4218 = vpop.f32.mrf.mxu0
        %v4219 = vadd.f32 %v691, %v4218
        %v4220 = vpop.f32.mrf.mxu0
        %4221 = vmatprep.mubr.bf16.mxu0 0
        %4222 = vmatmul.mubr.bf16.gmra.mxu0 %v2515
        %v4223 = vpop.f32.mrf.mxu0
        %v4224 = vadd.f32 %v691, %v4223
        %v4225 = vpop.f32.mrf.mxu0
        %v4226 = vpop.f32.mrf.mxu0
        %v4227 = vadd.f32 %v691, %v4226
        %v4228 = vpop.f32.mrf.mxu0
        %4229 = vmatprep.mubr.bf16.mxu0 0
        %4230 = vmatmul.mubr.bf16.gmra.mxu0 %v2518
        %v4231 = vpop.f32.mrf.mxu0
        %v4232 = vadd.f32 %v691, %v4231
        %v4233 = vpop.f32.mrf.mxu0
        %v4234 = vpop.f32.mrf.mxu0
        %v4235 = vadd.f32 %v691, %v4234
        %v4236 = vpop.f32.mrf.mxu0
        %4237 = vmatprep.mubr.bf16.mxu0 0
        %4238 = vmatmul.mubr.bf16.gmra.mxu0 %v2521
        %v4239 = vpop.f32.mrf.mxu0
        %v4240 = vadd.f32 %v691, %v4239
        %v4241 = vpop.f32.mrf.mxu0
        %v4242 = vpop.f32.mrf.mxu0
        %v4243 = vadd.f32 %v691, %v4242
        %v4244 = vpop.f32.mrf.mxu0
        %4245 = vmatprep.mubr.bf16.mxu0 0
        %4246 = vmatmul.mubr.bf16.gmra.mxu0 %v2524
        %v4247 = vpop.f32.mrf.mxu0
        %v4248 = vadd.f32 %v691, %v4247
        %v4249 = vpop.f32.mrf.mxu0
        %v4250 = vpop.f32.mrf.mxu0
        %v4251 = vadd.f32 %v691, %v4250
        %v4252 = vpop.f32.mrf.mxu0
        %4253 = vmatprep.mubr.bf16.mxu0 0
        %4254 = vmatmul.mubr.bf16.gmra.mxu0 %v2527
        %v4255 = vpop.f32.mrf.mxu0
        %v4256 = vadd.f32 %v691, %v4255
        %v4257 = vpop.f32.mrf.mxu0
        %v4258 = vpop.f32.mrf.mxu0
        %v4259 = vadd.f32 %v691, %v4258
        %v4260 = vpop.f32.mrf.mxu0
        %4261 = vmatprep.mubr.bf16.mxu0 0
        %4262 = vmatmul.mubr.bf16.gmra.mxu0 %v2530
        %v4263 = vpop.f32.mrf.mxu0
        %v4264 = vadd.f32 %v691, %v4263
        %v4265 = vpop.f32.mrf.mxu0
        %v4266 = vpop.f32.mrf.mxu0
        %v4267 = vadd.f32 %v691, %v4266
        %v4268 = vpop.f32.mrf.mxu0
        %4269 = vmatprep.mubr.bf16.mxu0 0
        %4270 = vmatmul.mubr.bf16.gmra.mxu0 %v2533
        %v4271 = vpop.f32.mrf.mxu0
        %v4272 = vadd.f32 %v691, %v4271
        %v4273 = vpop.f32.mrf.mxu0
        %v4274 = vpop.f32.mrf.mxu0
        %v4275 = vadd.f32 %v691, %v4274
        %v4276 = vpop.f32.mrf.mxu0
        %4277 = vmatprep.mubr.bf16.mxu0 0
        %4278 = vmatmul.mubr.bf16.gmra.mxu0 %v2536
        %v4279 = vpop.f32.mrf.mxu0
        %v4280 = vadd.f32 %v691, %v4279
        %v4281 = vpop.f32.mrf.mxu0
        %v4282 = vpop.f32.mrf.mxu0
        %v4283 = vadd.f32 %v691, %v4282
        %v4284 = vpop.f32.mrf.mxu0
        %4285 = vmatprep.mubr.bf16.mxu0 0
        %4286 = vmatmul.mubr.bf16.gmra.mxu0 %v2539
        %v4287 = vpop.f32.mrf.mxu0
        %v4288 = vadd.f32 %v691, %v4287
        %v4289 = vpop.f32.mrf.mxu0
        %v4290 = vpop.f32.mrf.mxu0
        %v4291 = vadd.f32 %v691, %v4290
        %v4292 = vpop.f32.mrf.mxu0
        %4293 = vmatprep.mubr.bf16.mxu0 0
        %4294 = vmatmul.mubr.bf16.gmra.mxu0 %v2542
        %v4295 = vpop.f32.mrf.mxu0
        %v4296 = vadd.f32 %v691, %v4295
        %v4297 = vpop.f32.mrf.mxu0
        %v4298 = vpop.f32.mrf.mxu0
        %v4299 = vadd.f32 %v691, %v4298
        %v4300 = vpop.f32.mrf.mxu0
        %4301 = vmatprep.mubr.bf16.mxu0 0
        %4302 = vmatmul.mubr.bf16.gmra.mxu0 %v2545
        %v4303 = vpop.f32.mrf.mxu0
        %v4304 = vadd.f32 %v691, %v4303
        %v4305 = vpop.f32.mrf.mxu0
        %v4306 = vpop.f32.mrf.mxu0
        %v4307 = vadd.f32 %v691, %v4306
        %v4308 = vpop.f32.mrf.mxu0
        %4309 = vmatprep.mubr.bf16.mxu0 0
        %4310 = vmatmul.mubr.bf16.gmra.mxu0 %v2548
        %v4311 = vpop.f32.mrf.mxu0
        %v4312 = vadd.f32 %v691, %v4311
        %v4313 = vpop.f32.mrf.mxu0
        %v4314 = vpop.f32.mrf.mxu0
        %v4315 = vadd.f32 %v691, %v4314
        %v4316 = vpop.f32.mrf.mxu0
        %4317 = vmatprep.mubr.bf16.mxu0 0
        %4318 = vmatmul.mubr.bf16.gmra.mxu0 %v2551
        %v4319 = vpop.f32.mrf.mxu0
        %v4320 = vadd.f32 %v691, %v4319
        %v4321 = vpop.f32.mrf.mxu0
        %v4322 = vpop.f32.mrf.mxu0
        %v4323 = vadd.f32 %v691, %v4322
        %v4324 = vpop.f32.mrf.mxu0
        %4325 = vmatprep.mubr.bf16.mxu0 0
        %4326 = vmatmul.mubr.bf16.gmra.mxu0 %v2554
        %v4327 = vpop.f32.mrf.mxu0
        %v4328 = vadd.f32 %v691, %v4327
        %v4329 = vpop.f32.mrf.mxu0
        %v4330 = vpop.f32.mrf.mxu0
        %v4331 = vadd.f32 %v691, %v4330
        %v4332 = vpop.f32.mrf.mxu0
        %4333 = vmatprep.mubr.bf16.mxu0 0
        %4334 = vmatmul.mubr.bf16.gmra.mxu0 %v2557
        %v4335 = vpop.f32.mrf.mxu0
        %v4336 = vadd.f32 %v691, %v4335
        %v4337 = vpop.f32.mrf.mxu0
        %v4338 = vpop.f32.mrf.mxu0
        %v4339 = vadd.f32 %v691, %v4338
        %v4340 = vpop.f32.mrf.mxu0
        %4341 = vmatprep.mubr.bf16.mxu0 0
        %4342 = vmatmul.mubr.bf16.gmra.mxu0 %v2560
        %v4343 = vpop.f32.mrf.mxu0
        %v4344 = vadd.f32 %v691, %v4343
        %v4345 = vpop.f32.mrf.mxu0
        %v4346 = vpop.f32.mrf.mxu0
        %v4347 = vadd.f32 %v691, %v4346
        %v4348 = vpop.f32.mrf.mxu0
        %4349 = vmatprep.mubr.bf16.mxu0 0
        %4350 = vmatmul.mubr.bf16.gmra.mxu0 %v2563
        %v4351 = vpop.f32.mrf.mxu0
        %v4352 = vadd.f32 %v691, %v4351
        %v4353 = vpop.f32.mrf.mxu0
        %v4354 = vpop.f32.mrf.mxu0
        %v4355 = vadd.f32 %v691, %v4354
        %v4356 = vpop.f32.mrf.mxu0
        %4357 = vmatprep.mubr.bf16.mxu0 0
        %4358 = vmatmul.mubr.bf16.gmra.mxu0 %v2566
        %v4359 = vpop.f32.mrf.mxu0
        %v4360 = vadd.f32 %v691, %v4359
        %v4361 = vpop.f32.mrf.mxu0
        %v4362 = vpop.f32.mrf.mxu0
        %v4363 = vadd.f32 %v691, %v4362
        %v4364 = vpop.f32.mrf.mxu0
        %4365 = vmatprep.mubr.bf16.mxu0 0
        %4366 = vmatmul.mubr.bf16.gmra.mxu0 %v2569
        %v4367 = vpop.f32.mrf.mxu0
        %v4368 = vadd.f32 %v691, %v4367
        %v4369 = vpop.f32.mrf.mxu0
        %v4370 = vpop.f32.mrf.mxu0
        %v4371 = vadd.f32 %v691, %v4370
        %v4372 = vpop.f32.mrf.mxu0
        %4373 = vmatprep.mubr.bf16.mxu0 0
        %4374 = vmatmul.mubr.bf16.gmra.mxu0 %v2572
        %v4375 = vpop.f32.mrf.mxu0
        %v4376 = vadd.f32 %v691, %v4375
        %v4377 = vpop.f32.mrf.mxu0
        %v4378 = vpop.f32.mrf.mxu0
        %v4379 = vadd.f32 %v691, %v4378
        %v4380 = vpop.f32.mrf.mxu0
        %4381 = vmatprep.mubr.bf16.mxu0 0
        %4382 = vmatmul.mubr.bf16.gmra.mxu0 %v2575
        %v4383 = vpop.f32.mrf.mxu0
        %v4384 = vadd.f32 %v691, %v4383
        %v4385 = vpop.f32.mrf.mxu0
        %v4386 = vpop.f32.mrf.mxu0
        %v4387 = vadd.f32 %v691, %v4386
        %v4388 = vpop.f32.mrf.mxu0
        %4389 = vmatprep.mubr.bf16.mxu0 0
        %4390 = vmatmul.mubr.bf16.gmra.mxu0 %v2578
        %v4391 = vpop.f32.mrf.mxu0
        %v4392 = vadd.f32 %v691, %v4391
        %v4393 = vpop.f32.mrf.mxu0
        %v4394 = vpop.f32.mrf.mxu0
        %v4395 = vadd.f32 %v691, %v4394
        %v4396 = vpop.f32.mrf.mxu0
        %4397 = vmatprep.mubr.bf16.mxu0 0
        %4398 = vmatmul.mubr.bf16.gmra.mxu0 %v2581
        %v4399 = vpop.f32.mrf.mxu0
        %v4400 = vadd.f32 %v691, %v4399
        %v4401 = vpop.f32.mrf.mxu0
        %v4402 = vpop.f32.mrf.mxu0
        %v4403 = vadd.f32 %v691, %v4402
        %v4404 = vpop.f32.mrf.mxu0
        %4405 = vmatprep.mubr.bf16.mxu0 0
        %4406 = vmatmul.mubr.bf16.gmra.mxu0 %v2584
        %v4407 = vpop.f32.mrf.mxu0
        %v4408 = vadd.f32 %v691, %v4407
        %v4409 = vpop.f32.mrf.mxu0
        %v4410 = vpop.f32.mrf.mxu0
        %v4411 = vadd.f32 %v691, %v4410
        %v4412 = vpop.f32.mrf.mxu0
        %4413 = vmatprep.mubr.bf16.mxu0 0
        %4414 = vmatmul.mubr.bf16.gmra.mxu0 %v2587
        %v4415 = vpop.f32.mrf.mxu0
        %v4416 = vadd.f32 %v691, %v4415
        %v4417 = vpop.f32.mrf.mxu0
        %v4418 = vpop.f32.mrf.mxu0
        %v4419 = vadd.f32 %v691, %v4418
        %v4420 = vpop.f32.mrf.mxu0
        %4421 = vmatprep.mubr.bf16.mxu0 0
        %4422 = vmatmul.mubr.bf16.gmra.mxu0 %v2590
        %v4423 = vpop.f32.mrf.mxu0
        %v4424 = vadd.f32 %v691, %v4423
        %v4425 = vpop.f32.mrf.mxu0
        %v4426 = vpop.f32.mrf.mxu0
        %v4427 = vadd.f32 %v691, %v4426
        %v4428 = vpop.f32.mrf.mxu0
        %4429 = vmatprep.mubr.bf16.mxu0 0
        %4430 = vmatmul.mubr.bf16.gmra.mxu0 %v2593
        %v4431 = vpop.f32.mrf.mxu0
        %v4432 = vadd.f32 %v691, %v4431
        %v4433 = vpop.f32.mrf.mxu0
        %v4434 = vpop.f32.mrf.mxu0
        %v4435 = vadd.f32 %v691, %v4434
        %v4436 = vpop.f32.mrf.mxu0
        %4437 = vmatprep.mubr.bf16.mxu0 0
        %4438 = vmatmul.mubr.bf16.gmra.mxu0 %v2596
        %v4439 = vpop.f32.mrf.mxu0
        %v4440 = vadd.f32 %v691, %v4439
        %v4441 = vpop.f32.mrf.mxu0
        %v4442 = vpop.f32.mrf.mxu0
        %v4443 = vadd.f32 %v691, %v4442
        %v4444 = vpop.f32.mrf.mxu0
        %4445 = vmatprep.mubr.bf16.mxu0 0
        %4446 = vmatmul.mubr.bf16.gmra.mxu0 %v2599
        %v4447 = vpop.f32.mrf.mxu0
        %v4448 = vadd.f32 %v691, %v4447
        %v4449 = vpop.f32.mrf.mxu0
        %v4450 = vpop.f32.mrf.mxu0
        %v4451 = vadd.f32 %v691, %v4450
        %v4452 = vpop.f32.mrf.mxu0
        %4453 = vmatprep.mubr.bf16.mxu0 0
        %4454 = vmatmul.mubr.bf16.gmra.mxu0 %v2602
        %v4455 = vpop.f32.mrf.mxu0
        %v4456 = vadd.f32 %v691, %v4455
        %v4457 = vpop.f32.mrf.mxu0
        %v4458 = vpop.f32.mrf.mxu0
        %v4459 = vadd.f32 %v691, %v4458
        %v4460 = vpop.f32.mrf.mxu0
        %4461 = vmatprep.mubr.bf16.mxu0 0
        %4462 = vmatmul.mubr.bf16.gmra.mxu0 %v2605
        %v4463 = vpop.f32.mrf.mxu0
        %v4464 = vadd.f32 %v691, %v4463
        %v4465 = vpop.f32.mrf.mxu0
        %v4466 = vpop.f32.mrf.mxu0
        %v4467 = vadd.f32 %v691, %v4466
        %v4468 = vpop.f32.mrf.mxu0
        %4469 = vmatprep.mubr.bf16.mxu0 0
        %4470 = vmatmul.mubr.bf16.gmra.mxu0 %v2608
        %v4471 = vpop.f32.mrf.mxu0
        %v4472 = vadd.f32 %v691, %v4471
        %v4473 = vpop.f32.mrf.mxu0
        %v4474 = vpop.f32.mrf.mxu0
        %v4475 = vadd.f32 %v691, %v4474
        %v4476 = vpop.f32.mrf.mxu0
        %4477 = vmatprep.mubr.bf16.mxu0 0
        %4478 = vmatmul.mubr.bf16.gmra.mxu0 %v2611
        %v4479 = vpop.f32.mrf.mxu0
        %v4480 = vadd.f32 %v691, %v4479
        %v4481 = vpop.f32.mrf.mxu0
        %v4482 = vpop.f32.mrf.mxu0
        %v4483 = vadd.f32 %v691, %v4482
        %v4484 = vpop.f32.mrf.mxu0
        %4485 = vmatprep.mubr.bf16.mxu0 0
        %4486 = vmatmul.mubr.bf16.gmra.mxu0 %v2614
        %v4487 = vpop.f32.mrf.mxu0
        %v4488 = vadd.f32 %v691, %v4487
        %v4489 = vpop.f32.mrf.mxu0
        %v4490 = vpop.f32.mrf.mxu0
        %v4491 = vadd.f32 %v691, %v4490
        %v4492 = vpop.f32.mrf.mxu0
        %4493 = vmatprep.mubr.bf16.mxu0 0
        %4494 = vmatmul.mubr.bf16.gmra.mxu0 %v2617
        %v4495 = vpop.f32.mrf.mxu0
        %v4496 = vadd.f32 %v691, %v4495
        %v4497 = vpop.f32.mrf.mxu0
        %v4498 = vpop.f32.mrf.mxu0
        %v4499 = vadd.f32 %v691, %v4498
        %v4500 = vpop.f32.mrf.mxu0
        %4501 = vmatprep.mubr.bf16.mxu0 0
        %4502 = vmatmul.mubr.bf16.gmra.mxu0 %v2620
        %v4503 = vpop.f32.mrf.mxu0
        %v4504 = vadd.f32 %v691, %v4503
        %v4505 = vpop.f32.mrf.mxu0
        %v4506 = vpop.f32.mrf.mxu0
        %v4507 = vadd.f32 %v691, %v4506
        %v4508 = vpop.f32.mrf.mxu0
        %4509 = vmatprep.mubr.bf16.mxu0 0
        %4510 = vmatmul.mubr.bf16.gmra.mxu0 %v2623
        %v4511 = vpop.f32.mrf.mxu0
        %v4512 = vadd.f32 %v691, %v4511
        %v4513 = vpop.f32.mrf.mxu0
        %v4514 = vpop.f32.mrf.mxu0
        %v4515 = vadd.f32 %v691, %v4514
        %v4516 = vpop.f32.mrf.mxu0
        %4517 = vmatprep.mubr.bf16.mxu0 0
        %4518 = vmatmul.mubr.bf16.gmra.mxu0 %v2626
        %v4519 = vpop.f32.mrf.mxu0
        %v4520 = vadd.f32 %v691, %v4519
        %v4521 = vpop.f32.mrf.mxu0
        %v4522 = vpop.f32.mrf.mxu0
        %v4523 = vadd.f32 %v691, %v4522
        %v4524 = vpop.f32.mrf.mxu0
        %4525 = vmatprep.mubr.bf16.mxu0 0
        %4526 = vmatmul.mubr.bf16.gmra.mxu0 %v2629
        %v4527 = vpop.f32.mrf.mxu0
        %v4528 = vadd.f32 %v691, %v4527
        %v4529 = vpop.f32.mrf.mxu0
        %v4530 = vpop.f32.mrf.mxu0
        %v4531 = vadd.f32 %v691, %v4530
        %v4532 = vpop.f32.mrf.mxu0
        %4533 = vmatprep.mubr.bf16.mxu0 0
        %4534 = vmatmul.mubr.bf16.gmra.mxu0 %v2632
        %v4535 = vpop.f32.mrf.mxu0
        %v4536 = vadd.f32 %v691, %v4535
        %v4537 = vpop.f32.mrf.mxu0
        %v4538 = vpop.f32.mrf.mxu0
        %v4539 = vadd.f32 %v691, %v4538
        %v4540 = vpop.f32.mrf.mxu0
        %4541 = vmatprep.mubr.bf16.mxu0 0
        %4542 = vmatmul.mubr.bf16.gmra.mxu0 %v2635
        %v4543 = vpop.f32.mrf.mxu0
        %v4544 = vadd.f32 %v691, %v4543
        %v4545 = vpop.f32.mrf.mxu0
        %v4546 = vpop.f32.mrf.mxu0
        %v4547 = vadd.f32 %v691, %v4546
        %v4548 = vpop.f32.mrf.mxu0
        %4549 = vmatprep.mubr.bf16.mxu0 0
        %4550 = vmatmul.mubr.bf16.gmra.mxu0 %v2638
        %v4551 = vpop.f32.mrf.mxu0
        %v4552 = vadd.f32 %v691, %v4551
        %v4553 = vpop.f32.mrf.mxu0
        %v4554 = vpop.f32.mrf.mxu0
        %v4555 = vadd.f32 %v691, %v4554
        %v4556 = vpop.f32.mrf.mxu0
        %4557 = vmatprep.mubr.bf16.mxu0 0
        %4558 = vmatmul.mubr.bf16.gmra.mxu0 %v2641
        %v4559 = vpop.f32.mrf.mxu0
        %v4560 = vadd.f32 %v691, %v4559
        %v4561 = vpop.f32.mrf.mxu0
        %v4562 = vpop.f32.mrf.mxu0
        %v4563 = vadd.f32 %v691, %v4562
        %v4564 = vpop.f32.mrf.mxu0
        %4565 = vmatprep.mubr.bf16.mxu0 0
        %4566 = vmatmul.mubr.bf16.gmra.mxu0 %v2644
        %v4567 = vpop.f32.mrf.mxu0
        %v4568 = vadd.f32 %v691, %v4567
        %v4569 = vpop.f32.mrf.mxu0
        %v4570 = vpop.f32.mrf.mxu0
        %v4571 = vadd.f32 %v691, %v4570
        %v4572 = vpop.f32.mrf.mxu0
        %4573 = vmatprep.mubr.bf16.mxu0 0
        %4574 = vmatmul.mubr.bf16.gmra.mxu0 %v2647
        %v4575 = vpop.f32.mrf.mxu0
        %v4576 = vadd.f32 %v691, %v4575
        %v4577 = vpop.f32.mrf.mxu0
        %v4578 = vpop.f32.mrf.mxu0
        %v4579 = vadd.f32 %v691, %v4578
        %v4580 = vpop.f32.mrf.mxu0
        %4581 = vmatprep.mubr.bf16.mxu0 0
        %4582 = vmatmul.mubr.bf16.gmra.mxu0 %v2650
        %v4583 = vpop.f32.mrf.mxu0
        %v4584 = vadd.f32 %v691, %v4583
        %v4585 = vpop.f32.mrf.mxu0
        %v4586 = vpop.f32.mrf.mxu0
        %v4587 = vadd.f32 %v691, %v4586
        %v4588 = vpop.f32.mrf.mxu0
        %4589 = vmatprep.mubr.bf16.mxu0 0
        %4590 = vmatmul.mubr.bf16.gmra.mxu0 %v2653
        %v4591 = vpop.f32.mrf.mxu0
        %v4592 = vadd.f32 %v691, %v4591
        %v4593 = vpop.f32.mrf.mxu0
        %v4594 = vpop.f32.mrf.mxu0
        %v4595 = vadd.f32 %v691, %v4594
        %v4596 = vpop.f32.mrf.mxu0
        %4597 = vmatprep.mubr.bf16.mxu0 0
        %4598 = vmatmul.mubr.bf16.gmra.mxu0 %v2656
        %v4599 = vpop.f32.mrf.mxu0
        %v4600 = vadd.f32 %v691, %v4599
        %v4601 = vpop.f32.mrf.mxu0
        %v4602 = vpop.f32.mrf.mxu0
        %v4603 = vadd.f32 %v691, %v4602
        %v4604 = vpop.f32.mrf.mxu0
        %4605 = vmatprep.mubr.bf16.mxu0 0
        %4606 = vmatmul.mubr.bf16.gmra.mxu0 %v2659
        %v4607 = vpop.f32.mrf.mxu0
        %v4608 = vadd.f32 %v691, %v4607
        %v4609 = vpop.f32.mrf.mxu0
        %v4610 = vpop.f32.mrf.mxu0
        %v4611 = vadd.f32 %v691, %v4610
        %v4612 = vpop.f32.mrf.mxu0
        %4613 = vmatprep.mubr.bf16.mxu0 0
        %4614 = vmatmul.mubr.bf16.gmra.mxu0 %v2662
        %v4615 = vpop.f32.mrf.mxu0
        %v4616 = vadd.f32 %v691, %v4615
        %v4617 = vpop.f32.mrf.mxu0
        %v4618 = vpop.f32.mrf.mxu0
        %v4619 = vadd.f32 %v691, %v4618
        %v4620 = vpop.f32.mrf.mxu0
        %4621 = vmatprep.mubr.bf16.mxu0 0
        %4622 = vmatmul.mubr.bf16.gmra.mxu0 %v2665
        %v4623 = vpop.f32.mrf.mxu0
        %v4624 = vadd.f32 %v691, %v4623
        %v4625 = vpop.f32.mrf.mxu0
        %v4626 = vpop.f32.mrf.mxu0
        %v4627 = vadd.f32 %v691, %v4626
        %v4628 = vpop.f32.mrf.mxu0
        %4629 = vmatprep.mubr.bf16.mxu0 0
        %4630 = vmatmul.mubr.bf16.gmra.mxu0 %v2668
        %v4631 = vpop.f32.mrf.mxu0
        %v4632 = vadd.f32 %v691, %v4631
        %v4633 = vpop.f32.mrf.mxu0
        %v4634 = vpop.f32.mrf.mxu0
        %v4635 = vadd.f32 %v691, %v4634
        %v4636 = vpop.f32.mrf.mxu0
        %4637 = vmatprep.mubr.bf16.mxu0 0
        %4638 = vmatmul.mubr.bf16.gmra.mxu0 %v2671
        %v4639 = vpop.f32.mrf.mxu0
        %v4640 = vadd.f32 %v691, %v4639
        %v4641 = vpop.f32.mrf.mxu0
        %v4642 = vpop.f32.mrf.mxu0
        %v4643 = vadd.f32 %v691, %v4642
        %v4644 = vpop.f32.mrf.mxu0
        %4645 = vmatprep.mubr.bf16.mxu0 0
        %4646 = vmatmul.mubr.bf16.gmra.mxu0 %v2674
        %v4647 = vpop.f32.mrf.mxu0
        %v4648 = vadd.f32 %v691, %v4647
        %v4649 = vpop.f32.mrf.mxu0
        %v4650 = vpop.f32.mrf.mxu0
        %v4651 = vadd.f32 %v691, %v4650
        %v4652 = vpop.f32.mrf.mxu0
        %4653 = vmatprep.mubr.bf16.mxu0 0
        %4654 = vmatmul.mubr.bf16.gmra.mxu0 %v2677
        %v4655 = vpop.f32.mrf.mxu0
        %v4656 = vadd.f32 %v691, %v4655
        %v4657 = vpop.f32.mrf.mxu0
        %v4658 = vpop.f32.mrf.mxu0
        %v4659 = vadd.f32 %v691, %v4658
        %v4660 = vpop.f32.mrf.mxu0
        %4661 = vmatprep.mubr.bf16.mxu0 0
        %4662 = vmatmul.mubr.bf16.gmra.mxu0 %v2680
        %v4663 = vpop.f32.mrf.mxu0
        %v4664 = vadd.f32 %v691, %v4663
        %v4665 = vpop.f32.mrf.mxu0
        %v4666 = vpop.f32.mrf.mxu0
        %v4667 = vadd.f32 %v691, %v4666
        %v4668 = vpop.f32.mrf.mxu0
        %4669 = vmatprep.mubr.bf16.mxu0 0
        %4670 = vmatmul.mubr.bf16.gmra.mxu0 %v2683
        %v4671 = vpop.f32.mrf.mxu0
        %v4672 = vadd.f32 %v691, %v4671
        %v4673 = vpop.f32.mrf.mxu0
        %v4674 = vpop.f32.mrf.mxu0
        %v4675 = vadd.f32 %v691, %v4674
        %v4676 = vpop.f32.mrf.mxu0
        %4677 = vmatprep.mubr.bf16.mxu0 0
        %4678 = vmatmul.mubr.bf16.gmra.mxu0 %v2686
        %v4679 = vpop.f32.mrf.mxu0
        %v4680 = vadd.f32 %v691, %v4679
        %v4681 = vpop.f32.mrf.mxu0
        %v4682 = vpop.f32.mrf.mxu0
        %v4683 = vadd.f32 %v691, %v4682
        %v4684 = vpop.f32.mrf.mxu0
        %4685 = vmatprep.mubr.bf16.mxu0 0
        %4686 = vmatmul.mubr.bf16.gmra.mxu0 %v2689
        %v4687 = vpop.f32.mrf.mxu0
        %v4688 = vadd.f32 %v691, %v4687
        %v4689 = vpop.f32.mrf.mxu0
        %v4690 = vpop.f32.mrf.mxu0
        %v4691 = vadd.f32 %v691, %v4690
        %v4692 = vpop.f32.mrf.mxu0
        %4693 = vmatprep.mubr.bf16.mxu0 0
        %4694 = vmatmul.mubr.bf16.gmra.mxu0 %v2692
        %v4695 = vpop.f32.mrf.mxu0
        %v4696 = vadd.f32 %v691, %v4695
        %v4697 = vpop.f32.mrf.mxu0
        %v4698 = vpop.f32.mrf.mxu0
        %v4699 = vadd.f32 %v691, %v4698
        %v4700 = vpop.f32.mrf.mxu0
        %4701 = vmatprep.mubr.bf16.mxu0 0
        %4702 = vmatmul.mubr.bf16.gmra.mxu0 %v2695
        %v4703 = vpop.f32.mrf.mxu0
        %v4704 = vadd.f32 %v691, %v4703
        %v4705 = vpop.f32.mrf.mxu0
        %v4706 = vpop.f32.mrf.mxu0
        %v4707 = vadd.f32 %v691, %v4706
        %v4708 = vpop.f32.mrf.mxu0
        %4709 = vmatprep.mubr.bf16.mxu0 0
        %4710 = vmatmul.mubr.bf16.gmra.mxu0 %v2698
        %v4711 = vpop.f32.mrf.mxu0
        %v4712 = vadd.f32 %v691, %v4711
        %v4713 = vpop.f32.mrf.mxu0
        %v4714 = vpop.f32.mrf.mxu0
        %v4715 = vadd.f32 %v691, %v4714
        %v4716 = vpop.f32.mrf.mxu0
        %4717 = vmatprep.mubr.bf16.mxu0 0
        %4718 = vmatmul.mubr.bf16.gmra.mxu0 %v2701
        %v4719 = vpop.f32.mrf.mxu0
        %v4720 = vadd.f32 %v691, %v4719
        %v4721 = vpop.f32.mrf.mxu0
        %v4722 = vpop.f32.mrf.mxu0
        %v4723 = vadd.f32 %v691, %v4722
        %v4724 = vpop.f32.mrf.mxu0
        %4725 = vmatprep.mubr.bf16.mxu0 0
        %4726 = vmatmul.mubr.bf16.gmra.mxu0 %v2704
        %v4727 = vpop.f32.mrf.mxu0
        %v4728 = vadd.f32 %v691, %v4727
        %v4729 = vpop.f32.mrf.mxu0
        %v4730 = vpop.f32.mrf.mxu0
        %v4731 = vadd.f32 %v691, %v4730
        %v4732 = vpop.f32.mrf.mxu0
        %4733 = vmatprep.mubr.bf16.mxu0 0
        %4734 = vmatmul.mubr.bf16.gmra.mxu0 %v2707
        %v4735 = vpop.f32.mrf.mxu0
        %v4736 = vadd.f32 %v691, %v4735
        %v4737 = vpop.f32.mrf.mxu0
        %v4738 = vpop.f32.mrf.mxu0
        %v4739 = vadd.f32 %v691, %v4738
        %v4740 = vpop.f32.mrf.mxu0
        %4741 = vmatprep.mubr.bf16.mxu0 0
        %4742 = vmatmul.mubr.bf16.gmra.mxu0 %v2710
        %v4743 = vpop.f32.mrf.mxu0
        %v4744 = vadd.f32 %v691, %v4743
        %v4745 = vpop.f32.mrf.mxu0
        %v4746 = vpop.f32.mrf.mxu0
        %v4747 = vadd.f32 %v691, %v4746
        %v4748 = vpop.f32.mrf.mxu0
        %4749 = vmatprep.mubr.bf16.mxu0 0
        %4750 = vmatmul.mubr.bf16.gmra.mxu0 %v2713
        %v4751 = vpop.f32.mrf.mxu0
        %v4752 = vadd.f32 %v691, %v4751
        %v4753 = vpop.f32.mrf.mxu0
        %v4754 = vpop.f32.mrf.mxu0
        %v4755 = vadd.f32 %v691, %v4754
        %v4756 = vpop.f32.mrf.mxu0
        %4757 = vmatprep.mubr.bf16.mxu0 0
        %4758 = vmatmul.mubr.bf16.gmra.mxu0 %v2716
        %v4759 = vpop.f32.mrf.mxu0
        %v4760 = vadd.f32 %v691, %v4759
        %v4761 = vpop.f32.mrf.mxu0
        %v4762 = vpop.f32.mrf.mxu0
        %v4763 = vadd.f32 %v691, %v4762
        %v4764 = vpop.f32.mrf.mxu0
        %4765 = vmatprep.mubr.bf16.mxu0 0
        %4766 = vmatmul.mubr.bf16.gmra.mxu0 %v2719
        %v4767 = vpop.f32.mrf.mxu0
        %v4768 = vadd.f32 %v691, %v4767
        %v4769 = vpop.f32.mrf.mxu0
        %v4770 = vpop.f32.mrf.mxu0
        %v4771 = vadd.f32 %v691, %v4770
        %v4772 = vpop.f32.mrf.mxu0
        %4773 = vmatprep.mubr.bf16.mxu0 0
        %4774 = vmatmul.mubr.bf16.gmra.mxu0 %v2722
        %v4775 = vpop.f32.mrf.mxu0
        %v4776 = vadd.f32 %v691, %v4775
        %v4777 = vpop.f32.mrf.mxu0
        %v4778 = vpop.f32.mrf.mxu0
        %v4779 = vadd.f32 %v691, %v4778
        %v4780 = vpop.f32.mrf.mxu0
        %4781 = vmatprep.mubr.bf16.mxu0 0
        %4782 = vmatmul.mubr.bf16.gmra.mxu0 %v2725
        %v4783 = vpop.f32.mrf.mxu0
        %v4784 = vadd.f32 %v691, %v4783
        %v4785 = vpop.f32.mrf.mxu0
        %v4786 = vpop.f32.mrf.mxu0
        %v4787 = vadd.f32 %v691, %v4786
        %v4788 = vpop.f32.mrf.mxu0
        %4789 = vmatprep.mubr.bf16.mxu0 0
        %4790 = vmatmul.mubr.bf16.gmra.mxu0 %v2728
        %v4791 = vpop.f32.mrf.mxu0
        %v4792 = vadd.f32 %v691, %v4791
        %v4793 = vpop.f32.mrf.mxu0
        %v4794 = vpop.f32.mrf.mxu0
        %v4795 = vadd.f32 %v691, %v4794
        %v4796 = vpop.f32.mrf.mxu0
        %4797 = vmatprep.mubr.bf16.mxu0 0
        %4798 = vmatmul.mubr.bf16.gmra.mxu0 %v2731
        %v4799 = vpop.f32.mrf.mxu0
        %v4800 = vadd.f32 %v691, %v4799
        %v4801 = vpop.f32.mrf.mxu0
        %v4802 = vpop.f32.mrf.mxu0
        %v4803 = vadd.f32 %v691, %v4802
        %v4804 = vpop.f32.mrf.mxu0
        %4805 = vmatprep.mubr.bf16.mxu0 0
        %4806 = vmatmul.mubr.bf16.gmra.mxu0 %v2734
        %v4807 = vpop.f32.mrf.mxu0
        %v4808 = vadd.f32 %v691, %v4807
        %v4809 = vpop.f32.mrf.mxu0
        %v4810 = vpop.f32.mrf.mxu0
        %v4811 = vadd.f32 %v691, %v4810
        %v4812 = vpop.f32.mrf.mxu0
        %4813 = vmatprep.mubr.bf16.mxu0 0
        %4814 = vmatmul.mubr.bf16.gmra.mxu0 %v2737
        %v4815 = vpop.f32.mrf.mxu0
        %v4816 = vadd.f32 %v691, %v4815
        %v4817 = vpop.f32.mrf.mxu0
        %v4818 = vpop.f32.mrf.mxu0
        %v4819 = vadd.f32 %v691, %v4818
        %v4820 = vpop.f32.mrf.mxu0
        %4821 = vmatprep.mubr.bf16.mxu0 0
        %4822 = vmatmul.mubr.bf16.gmra.mxu0 %v2740
        %v4823 = vpop.f32.mrf.mxu0
        %v4824 = vadd.f32 %v691, %v4823
        %v4825 = vpop.f32.mrf.mxu0
        %v4826 = vpop.f32.mrf.mxu0
        %v4827 = vadd.f32 %v691, %v4826
        %v4828 = vpop.f32.mrf.mxu0
        %4829 = vdwg.mxu0
        %v4830 = vmax.f32 %v2784, 0.0
        %v4831 = vmax.f32 %v2787, 0.0
        %v4832 = vmax.f32 %v2792, 0.0
        %v4833 = vmax.f32 %v2795, 0.0
        %v4834 = vmax.f32 %v2800, 0.0
        %v4835 = vmax.f32 %v2803, 0.0
        %v4836 = vmax.f32 %v2808, 0.0
        %v4837 = vmax.f32 %v2811, 0.0
        %v4838 = vmax.f32 %v2816, 0.0
        %v4839 = vmax.f32 %v2819, 0.0
        %v4840 = vmax.f32 %v2824, 0.0
        %v4841 = vmax.f32 %v2827, 0.0
        %v4842 = vmax.f32 %v2832, 0.0
        %v4843 = vmax.f32 %v2835, 0.0
        %v4844 = vmax.f32 %v2840, 0.0
        %v4845 = vmax.f32 %v2843, 0.0
        %v4846 = vmax.f32 %v2848, 0.0
        %v4847 = vmax.f32 %v2851, 0.0
        %v4848 = vmax.f32 %v2856, 0.0
        %v4849 = vmax.f32 %v2859, 0.0
        %v4850 = vmax.f32 %v2864, 0.0
        %v4851 = vmax.f32 %v2867, 0.0
        %v4852 = vmax.f32 %v2872, 0.0
        %v4853 = vmax.f32 %v2875, 0.0
        %v4854 = vmax.f32 %v2880, 0.0
        %v4855 = vmax.f32 %v2883, 0.0
        %v4856 = vmax.f32 %v2888, 0.0
        %v4857 = vmax.f32 %v2891, 0.0
        %v4858 = vmax.f32 %v2896, 0.0
        %v4859 = vmax.f32 %v2899, 0.0
        %v4860 = vmax.f32 %v2904, 0.0
        %v4861 = vmax.f32 %v2907, 0.0
        %v4862 = vmax.f32 %v2912, 0.0
        %v4863 = vmax.f32 %v2915, 0.0
        %v4864 = vmax.f32 %v2920, 0.0
        %v4865 = vmax.f32 %v2923, 0.0
        %v4866 = vmax.f32 %v2928, 0.0
        %v4867 = vmax.f32 %v2931, 0.0
        %v4868 = vmax.f32 %v2936, 0.0
        %v4869 = vmax.f32 %v2939, 0.0
        %v4870 = vmax.f32 %v2944, 0.0
        %v4871 = vmax.f32 %v2947, 0.0
        %v4872 = vmax.f32 %v2952, 0.0
        %v4873 = vmax.f32 %v2955, 0.0
        %v4874 = vmax.f32 %v2960, 0.0
        %v4875 = vmax.f32 %v2963, 0.0
        %v4876 = vmax.f32 %v2968, 0.0
        %v4877 = vmax.f32 %v2971, 0.0
        %v4878 = vmax.f32 %v2976, 0.0
        %v4879 = vmax.f32 %v2979, 0.0
        %v4880 = vmax.f32 %v2984, 0.0
        %v4881 = vmax.f32 %v2987, 0.0
        %v4882 = vmax.f32 %v2992, 0.0
        %v4883 = vmax.f32 %v2995, 0.0
        %v4884 = vmax.f32 %v3000, 0.0
        %v4885 = vmax.f32 %v3003, 0.0
        %v4886 = vmax.f32 %v3008, 0.0
        %v4887 = vmax.f32 %v3011, 0.0
        %v4888 = vmax.f32 %v3016, 0.0
        %v4889 = vmax.f32 %v3019, 0.0
        %v4890 = vmax.f32 %v3024, 0.0
        %v4891 = vmax.f32 %v3027, 0.0
        %v4892 = vmax.f32 %v3032, 0.0
        %v4893 = vmax.f32 %v3035, 0.0
        %v4894 = vmax.f32 %v3040, 0.0
        %v4895 = vmax.f32 %v3043, 0.0
        %v4896 = vmax.f32 %v3048, 0.0
        %v4897 = vmax.f32 %v3051, 0.0
        %v4898 = vmax.f32 %v3056, 0.0
        %v4899 = vmax.f32 %v3059, 0.0
        %v4900 = vmax.f32 %v3064, 0.0
        %v4901 = vmax.f32 %v3067, 0.0
        %v4902 = vmax.f32 %v3072, 0.0
        %v4903 = vmax.f32 %v3075, 0.0
        %v4904 = vmax.f32 %v3080, 0.0
        %v4905 = vmax.f32 %v3083, 0.0
        %v4906 = vmax.f32 %v3088, 0.0
        %v4907 = vmax.f32 %v3091, 0.0
        %v4908 = vmax.f32 %v3096, 0.0
        %v4909 = vmax.f32 %v3099, 0.0
        %v4910 = vmax.f32 %v3104, 0.0
        %v4911 = vmax.f32 %v3107, 0.0
        %v4912 = vmax.f32 %v3112, 0.0
        %v4913 = vmax.f32 %v3115, 0.0
        %v4914 = vmax.f32 %v3120, 0.0
        %v4915 = vmax.f32 %v3123, 0.0
        %v4916 = vmax.f32 %v3128, 0.0
        %v4917 = vmax.f32 %v3131, 0.0
        %v4918 = vmax.f32 %v3136, 0.0
        %v4919 = vmax.f32 %v3139, 0.0
        %v4920 = vmax.f32 %v3144, 0.0
        %v4921 = vmax.f32 %v3147, 0.0
        %v4922 = vmax.f32 %v3152, 0.0
        %v4923 = vmax.f32 %v3155, 0.0
        %v4924 = vmax.f32 %v3160, 0.0
        %v4925 = vmax.f32 %v3163, 0.0
        %v4926 = vmax.f32 %v3168, 0.0
        %v4927 = vmax.f32 %v3171, 0.0
        %v4928 = vmax.f32 %v3176, 0.0
        %v4929 = vmax.f32 %v3179, 0.0
        %v4930 = vmax.f32 %v3184, 0.0
        %v4931 = vmax.f32 %v3187, 0.0
        %v4932 = vmax.f32 %v3192, 0.0
        %v4933 = vmax.f32 %v3195, 0.0
        %v4934 = vmax.f32 %v3200, 0.0
        %v4935 = vmax.f32 %v3203, 0.0
        %v4936 = vmax.f32 %v3208, 0.0
        %v4937 = vmax.f32 %v3211, 0.0
        %v4938 = vmax.f32 %v3216, 0.0
        %v4939 = vmax.f32 %v3219, 0.0
        %v4940 = vmax.f32 %v3224, 0.0
        %v4941 = vmax.f32 %v3227, 0.0
        %v4942 = vmax.f32 %v3232, 0.0
        %v4943 = vmax.f32 %v3235, 0.0
        %v4944 = vmax.f32 %v3240, 0.0
        %v4945 = vmax.f32 %v3243, 0.0
        %v4946 = vmax.f32 %v3248, 0.0
        %v4947 = vmax.f32 %v3251, 0.0
        %v4948 = vmax.f32 %v3256, 0.0
        %v4949 = vmax.f32 %v3259, 0.0
        %v4950 = vmax.f32 %v3264, 0.0
        %v4951 = vmax.f32 %v3267, 0.0
        %v4952 = vmax.f32 %v3272, 0.0
        %v4953 = vmax.f32 %v3275, 0.0
        %v4954 = vmax.f32 %v3280, 0.0
        %v4955 = vmax.f32 %v3283, 0.0
        %v4956 = vmax.f32 %v3288, 0.0
        %v4957 = vmax.f32 %v3291, 0.0
        %v4958 = vmax.f32 %v3296, 0.0
        %v4959 = vmax.f32 %v3299, 0.0
        %v4960 = vmax.f32 %v3304, 0.0
        %v4961 = vmax.f32 %v3307, 0.0
        %v4962 = vmax.f32 %v3312, 0.0
        %v4963 = vmax.f32 %v3315, 0.0
        %v4964 = vmax.f32 %v3320, 0.0
        %v4965 = vmax.f32 %v3323, 0.0
        %v4966 = vmax.f32 %v3328, 0.0
        %v4967 = vmax.f32 %v3331, 0.0
        %v4968 = vmax.f32 %v3336, 0.0
        %v4969 = vmax.f32 %v3339, 0.0
        %v4970 = vmax.f32 %v3344, 0.0
        %v4971 = vmax.f32 %v3347, 0.0
        %v4972 = vmax.f32 %v3352, 0.0
        %v4973 = vmax.f32 %v3355, 0.0
        %v4974 = vmax.f32 %v3360, 0.0
        %v4975 = vmax.f32 %v3363, 0.0
        %v4976 = vmax.f32 %v3368, 0.0
        %v4977 = vmax.f32 %v3371, 0.0
        %v4978 = vmax.f32 %v3376, 0.0
        %v4979 = vmax.f32 %v3379, 0.0
        %v4980 = vmax.f32 %v3384, 0.0
        %v4981 = vmax.f32 %v3387, 0.0
        %v4982 = vmax.f32 %v3392, 0.0
        %v4983 = vmax.f32 %v3395, 0.0
        %v4984 = vmax.f32 %v3400, 0.0
        %v4985 = vmax.f32 %v3403, 0.0
        %v4986 = vmax.f32 %v3408, 0.0
        %v4987 = vmax.f32 %v3411, 0.0
        %v4988 = vmax.f32 %v3416, 0.0
        %v4989 = vmax.f32 %v3419, 0.0
        %v4990 = vmax.f32 %v3424, 0.0
        %v4991 = vmax.f32 %v3427, 0.0
        %v4992 = vmax.f32 %v3432, 0.0
        %v4993 = vmax.f32 %v3435, 0.0
        %v4994 = vmax.f32 %v3440, 0.0
        %v4995 = vmax.f32 %v3443, 0.0
        %v4996 = vmax.f32 %v3448, 0.0
        %v4997 = vmax.f32 %v3451, 0.0
        %v4998 = vmax.f32 %v3456, 0.0
        %v4999 = vmax.f32 %v3459, 0.0
        %v5000 = vmax.f32 %v3464, 0.0
        %v5001 = vmax.f32 %v3467, 0.0
        %v5002 = vmax.f32 %v3472, 0.0
        %v5003 = vmax.f32 %v3475, 0.0
        %v5004 = vmax.f32 %v3480, 0.0
        %v5005 = vmax.f32 %v3483, 0.0
        %v5006 = vmax.f32 %v3488, 0.0
        %v5007 = vmax.f32 %v3491, 0.0
        %v5008 = vmax.f32 %v3496, 0.0
        %v5009 = vmax.f32 %v3499, 0.0
        %v5010 = vmax.f32 %v3504, 0.0
        %v5011 = vmax.f32 %v3507, 0.0
        %v5012 = vmax.f32 %v3512, 0.0
        %v5013 = vmax.f32 %v3515, 0.0
        %v5014 = vmax.f32 %v3520, 0.0
        %v5015 = vmax.f32 %v3523, 0.0
        %v5016 = vmax.f32 %v3528, 0.0
        %v5017 = vmax.f32 %v3531, 0.0
        %v5018 = vmax.f32 %v3536, 0.0
        %v5019 = vmax.f32 %v3539, 0.0
        %v5020 = vmax.f32 %v3544, 0.0
        %v5021 = vmax.f32 %v3547, 0.0
        %v5022 = vmax.f32 %v3552, 0.0
        %v5023 = vmax.f32 %v3555, 0.0
        %v5024 = vmax.f32 %v3560, 0.0
        %v5025 = vmax.f32 %v3563, 0.0
        %v5026 = vmax.f32 %v3568, 0.0
        %v5027 = vmax.f32 %v3571, 0.0
        %v5028 = vmax.f32 %v3576, 0.0
        %v5029 = vmax.f32 %v3579, 0.0
        %v5030 = vmax.f32 %v3584, 0.0
        %v5031 = vmax.f32 %v3587, 0.0
        %v5032 = vmax.f32 %v3592, 0.0
        %v5033 = vmax.f32 %v3595, 0.0
        %v5034 = vmax.f32 %v3600, 0.0
        %v5035 = vmax.f32 %v3603, 0.0
        %v5036 = vmax.f32 %v3608, 0.0
        %v5037 = vmax.f32 %v3611, 0.0
        %v5038 = vmax.f32 %v3616, 0.0
        %v5039 = vmax.f32 %v3619, 0.0
        %v5040 = vmax.f32 %v3624, 0.0
        %v5041 = vmax.f32 %v3627, 0.0
        %v5042 = vmax.f32 %v3632, 0.0
        %v5043 = vmax.f32 %v3635, 0.0
        %v5044 = vmax.f32 %v3640, 0.0
        %v5045 = vmax.f32 %v3643, 0.0
        %v5046 = vmax.f32 %v3648, 0.0
        %v5047 = vmax.f32 %v3651, 0.0
        %v5048 = vmax.f32 %v3656, 0.0
        %v5049 = vmax.f32 %v3659, 0.0
        %v5050 = vmax.f32 %v3664, 0.0
        %v5051 = vmax.f32 %v3667, 0.0
        %v5052 = vmax.f32 %v3672, 0.0
        %v5053 = vmax.f32 %v3675, 0.0
        %v5054 = vmax.f32 %v3680, 0.0
        %v5055 = vmax.f32 %v3683, 0.0
        %v5056 = vmax.f32 %v3688, 0.0
        %v5057 = vmax.f32 %v3691, 0.0
        %v5058 = vmax.f32 %v3696, 0.0
        %v5059 = vmax.f32 %v3699, 0.0
        %v5060 = vmax.f32 %v3704, 0.0
        %v5061 = vmax.f32 %v3707, 0.0
        %v5062 = vmax.f32 %v3712, 0.0
        %v5063 = vmax.f32 %v3715, 0.0
        %v5064 = vmax.f32 %v3720, 0.0
        %v5065 = vmax.f32 %v3723, 0.0
        %v5066 = vmax.f32 %v3728, 0.0
        %v5067 = vmax.f32 %v3731, 0.0
        %v5068 = vmax.f32 %v3736, 0.0
        %v5069 = vmax.f32 %v3739, 0.0
        %v5070 = vmax.f32 %v3744, 0.0
        %v5071 = vmax.f32 %v3747, 0.0
        %v5072 = vmax.f32 %v3752, 0.0
        %v5073 = vmax.f32 %v3755, 0.0
        %v5074 = vmax.f32 %v3760, 0.0
        %v5075 = vmax.f32 %v3763, 0.0
        %v5076 = vmax.f32 %v3768, 0.0
        %v5077 = vmax.f32 %v3771, 0.0
        %v5078 = vmax.f32 %v3776, 0.0
        %v5079 = vmax.f32 %v3779, 0.0
        %v5080 = vmax.f32 %v3784, 0.0
        %v5081 = vmax.f32 %v3787, 0.0
        %v5082 = vmax.f32 %v3792, 0.0
        %v5083 = vmax.f32 %v3795, 0.0
        %v5084 = vmax.f32 %v3800, 0.0
        %v5085 = vmax.f32 %v3803, 0.0
        %v5086 = vmax.f32 %v3808, 0.0
        %v5087 = vmax.f32 %v3811, 0.0
        %v5088 = vmax.f32 %v3816, 0.0
        %v5089 = vmax.f32 %v3819, 0.0
        %v5090 = vmax.f32 %v3824, 0.0
        %v5091 = vmax.f32 %v3827, 0.0
        %v5092 = vmax.f32 %v3832, 0.0
        %v5093 = vmax.f32 %v3835, 0.0
        %v5094 = vmax.f32 %v3840, 0.0
        %v5095 = vmax.f32 %v3843, 0.0
        %v5096 = vmax.f32 %v3848, 0.0
        %v5097 = vmax.f32 %v3851, 0.0
        %v5098 = vmax.f32 %v3856, 0.0
        %v5099 = vmax.f32 %v3859, 0.0
        %v5100 = vmax.f32 %v3864, 0.0
        %v5101 = vmax.f32 %v3867, 0.0
        %v5102 = vmax.f32 %v3872, 0.0
        %v5103 = vmax.f32 %v3875, 0.0
        %v5104 = vmax.f32 %v3880, 0.0
        %v5105 = vmax.f32 %v3883, 0.0
        %v5106 = vmax.f32 %v3888, 0.0
        %v5107 = vmax.f32 %v3891, 0.0
        %v5108 = vmax.f32 %v3896, 0.0
        %v5109 = vmax.f32 %v3899, 0.0
        %v5110 = vmax.f32 %v3904, 0.0
        %v5111 = vmax.f32 %v3907, 0.0
        %v5112 = vmax.f32 %v3912, 0.0
        %v5113 = vmax.f32 %v3915, 0.0
        %v5114 = vmax.f32 %v3920, 0.0
        %v5115 = vmax.f32 %v3923, 0.0
        %v5116 = vmax.f32 %v3928, 0.0
        %v5117 = vmax.f32 %v3931, 0.0
        %v5118 = vmax.f32 %v3936, 0.0
        %v5119 = vmax.f32 %v3939, 0.0
        %v5120 = vmax.f32 %v3944, 0.0
        %v5121 = vmax.f32 %v3947, 0.0
        %v5122 = vmax.f32 %v3952, 0.0
        %v5123 = vmax.f32 %v3955, 0.0
        %v5124 = vmax.f32 %v3960, 0.0
        %v5125 = vmax.f32 %v3963, 0.0
        %v5126 = vmax.f32 %v3968, 0.0
        %v5127 = vmax.f32 %v3971, 0.0
        %v5128 = vmax.f32 %v3976, 0.0
        %v5129 = vmax.f32 %v3979, 0.0
        %v5130 = vmax.f32 %v3984, 0.0
        %v5131 = vmax.f32 %v3987, 0.0
        %v5132 = vmax.f32 %v3992, 0.0
        %v5133 = vmax.f32 %v3995, 0.0
        %v5134 = vmax.f32 %v4000, 0.0
        %v5135 = vmax.f32 %v4003, 0.0
        %v5136 = vmax.f32 %v4008, 0.0
        %v5137 = vmax.f32 %v4011, 0.0
        %v5138 = vmax.f32 %v4016, 0.0
        %v5139 = vmax.f32 %v4019, 0.0
        %v5140 = vmax.f32 %v4024, 0.0
        %v5141 = vmax.f32 %v4027, 0.0
        %v5142 = vmax.f32 %v4032, 0.0
        %v5143 = vmax.f32 %v4035, 0.0
        %v5144 = vmax.f32 %v4040, 0.0
        %v5145 = vmax.f32 %v4043, 0.0
        %v5146 = vmax.f32 %v4048, 0.0
        %v5147 = vmax.f32 %v4051, 0.0
        %v5148 = vmax.f32 %v4056, 0.0
        %v5149 = vmax.f32 %v4059, 0.0
        %v5150 = vmax.f32 %v4064, 0.0
        %v5151 = vmax.f32 %v4067, 0.0
        %v5152 = vmax.f32 %v4072, 0.0
        %v5153 = vmax.f32 %v4075, 0.0
        %v5154 = vmax.f32 %v4080, 0.0
        %v5155 = vmax.f32 %v4083, 0.0
        %v5156 = vmax.f32 %v4088, 0.0
        %v5157 = vmax.f32 %v4091, 0.0
        %v5158 = vmax.f32 %v4096, 0.0
        %v5159 = vmax.f32 %v4099, 0.0
        %v5160 = vmax.f32 %v4104, 0.0
        %v5161 = vmax.f32 %v4107, 0.0
        %v5162 = vmax.f32 %v4112, 0.0
        %v5163 = vmax.f32 %v4115, 0.0
        %v5164 = vmax.f32 %v4120, 0.0
        %v5165 = vmax.f32 %v4123, 0.0
        %v5166 = vmax.f32 %v4128, 0.0
        %v5167 = vmax.f32 %v4131, 0.0
        %v5168 = vmax.f32 %v4136, 0.0
        %v5169 = vmax.f32 %v4139, 0.0
        %v5170 = vmax.f32 %v4144, 0.0
        %v5171 = vmax.f32 %v4147, 0.0
        %v5172 = vmax.f32 %v4152, 0.0
        %v5173 = vmax.f32 %v4155, 0.0
        %v5174 = vmax.f32 %v4160, 0.0
        %v5175 = vmax.f32 %v4163, 0.0
        %v5176 = vmax.f32 %v4168, 0.0
        %v5177 = vmax.f32 %v4171, 0.0
        %v5178 = vmax.f32 %v4176, 0.0
        %v5179 = vmax.f32 %v4179, 0.0
        %v5180 = vmax.f32 %v4184, 0.0
        %v5181 = vmax.f32 %v4187, 0.0
        %v5182 = vmax.f32 %v4192, 0.0
        %v5183 = vmax.f32 %v4195, 0.0
        %v5184 = vmax.f32 %v4200, 0.0
        %v5185 = vmax.f32 %v4203, 0.0
        %v5186 = vmax.f32 %v4208, 0.0
        %v5187 = vmax.f32 %v4211, 0.0
        %v5188 = vmax.f32 %v4216, 0.0
        %v5189 = vmax.f32 %v4219, 0.0
        %v5190 = vmax.f32 %v4224, 0.0
        %v5191 = vmax.f32 %v4227, 0.0
        %v5192 = vmax.f32 %v4232, 0.0
        %v5193 = vmax.f32 %v4235, 0.0
        %v5194 = vmax.f32 %v4240, 0.0
        %v5195 = vmax.f32 %v4243, 0.0
        %v5196 = vmax.f32 %v4248, 0.0
        %v5197 = vmax.f32 %v4251, 0.0
        %v5198 = vmax.f32 %v4256, 0.0
        %v5199 = vmax.f32 %v4259, 0.0
        %v5200 = vmax.f32 %v4264, 0.0
        %v5201 = vmax.f32 %v4267, 0.0
        %v5202 = vmax.f32 %v4272, 0.0
        %v5203 = vmax.f32 %v4275, 0.0
        %v5204 = vmax.f32 %v4280, 0.0
        %v5205 = vmax.f32 %v4283, 0.0
        %v5206 = vmax.f32 %v4288, 0.0
        %v5207 = vmax.f32 %v4291, 0.0
        %v5208 = vmax.f32 %v4296, 0.0
        %v5209 = vmax.f32 %v4299, 0.0
        %v5210 = vmax.f32 %v4304, 0.0
        %v5211 = vmax.f32 %v4307, 0.0
        %v5212 = vmax.f32 %v4312, 0.0
        %v5213 = vmax.f32 %v4315, 0.0
        %v5214 = vmax.f32 %v4320, 0.0
        %v5215 = vmax.f32 %v4323, 0.0
        %v5216 = vmax.f32 %v4328, 0.0
        %v5217 = vmax.f32 %v4331, 0.0
        %v5218 = vmax.f32 %v4336, 0.0
        %v5219 = vmax.f32 %v4339, 0.0
        %v5220 = vmax.f32 %v4344, 0.0
        %v5221 = vmax.f32 %v4347, 0.0
        %v5222 = vmax.f32 %v4352, 0.0
        %v5223 = vmax.f32 %v4355, 0.0
        %v5224 = vmax.f32 %v4360, 0.0
        %v5225 = vmax.f32 %v4363, 0.0
        %v5226 = vmax.f32 %v4368, 0.0
        %v5227 = vmax.f32 %v4371, 0.0
        %v5228 = vmax.f32 %v4376, 0.0
        %v5229 = vmax.f32 %v4379, 0.0
        %v5230 = vmax.f32 %v4384, 0.0
        %v5231 = vmax.f32 %v4387, 0.0
        %v5232 = vmax.f32 %v4392, 0.0
        %v5233 = vmax.f32 %v4395, 0.0
        %v5234 = vmax.f32 %v4400, 0.0
        %v5235 = vmax.f32 %v4403, 0.0
        %v5236 = vmax.f32 %v4408, 0.0
        %v5237 = vmax.f32 %v4411, 0.0
        %v5238 = vmax.f32 %v4416, 0.0
        %v5239 = vmax.f32 %v4419, 0.0
        %v5240 = vmax.f32 %v4424, 0.0
        %v5241 = vmax.f32 %v4427, 0.0
        %v5242 = vmax.f32 %v4432, 0.0
        %v5243 = vmax.f32 %v4435, 0.0
        %v5244 = vmax.f32 %v4440, 0.0
        %v5245 = vmax.f32 %v4443, 0.0
        %v5246 = vmax.f32 %v4448, 0.0
        %v5247 = vmax.f32 %v4451, 0.0
        %v5248 = vmax.f32 %v4456, 0.0
        %v5249 = vmax.f32 %v4459, 0.0
        %v5250 = vmax.f32 %v4464, 0.0
        %v5251 = vmax.f32 %v4467, 0.0
        %v5252 = vmax.f32 %v4472, 0.0
        %v5253 = vmax.f32 %v4475, 0.0
        %v5254 = vmax.f32 %v4480, 0.0
        %v5255 = vmax.f32 %v4483, 0.0
        %v5256 = vmax.f32 %v4488, 0.0
        %v5257 = vmax.f32 %v4491, 0.0
        %v5258 = vmax.f32 %v4496, 0.0
        %v5259 = vmax.f32 %v4499, 0.0
        %v5260 = vmax.f32 %v4504, 0.0
        %v5261 = vmax.f32 %v4507, 0.0
        %v5262 = vmax.f32 %v4512, 0.0
        %v5263 = vmax.f32 %v4515, 0.0
        %v5264 = vmax.f32 %v4520, 0.0
        %v5265 = vmax.f32 %v4523, 0.0
        %v5266 = vmax.f32 %v4528, 0.0
        %v5267 = vmax.f32 %v4531, 0.0
        %v5268 = vmax.f32 %v4536, 0.0
        %v5269 = vmax.f32 %v4539, 0.0
        %v5270 = vmax.f32 %v4544, 0.0
        %v5271 = vmax.f32 %v4547, 0.0
        %v5272 = vmax.f32 %v4552, 0.0
        %v5273 = vmax.f32 %v4555, 0.0
        %v5274 = vmax.f32 %v4560, 0.0
        %v5275 = vmax.f32 %v4563, 0.0
        %v5276 = vmax.f32 %v4568, 0.0
        %v5277 = vmax.f32 %v4571, 0.0
        %v5278 = vmax.f32 %v4576, 0.0
        %v5279 = vmax.f32 %v4579, 0.0
        %v5280 = vmax.f32 %v4584, 0.0
        %v5281 = vmax.f32 %v4587, 0.0
        %v5282 = vmax.f32 %v4592, 0.0
        %v5283 = vmax.f32 %v4595, 0.0
        %v5284 = vmax.f32 %v4600, 0.0
        %v5285 = vmax.f32 %v4603, 0.0
        %v5286 = vmax.f32 %v4608, 0.0
        %v5287 = vmax.f32 %v4611, 0.0
        %v5288 = vmax.f32 %v4616, 0.0
        %v5289 = vmax.f32 %v4619, 0.0
        %v5290 = vmax.f32 %v4624, 0.0
        %v5291 = vmax.f32 %v4627, 0.0
        %v5292 = vmax.f32 %v4632, 0.0
        %v5293 = vmax.f32 %v4635, 0.0
        %v5294 = vmax.f32 %v4640, 0.0
        %v5295 = vmax.f32 %v4643, 0.0
        %v5296 = vmax.f32 %v4648, 0.0
        %v5297 = vmax.f32 %v4651, 0.0
        %v5298 = vmax.f32 %v4656, 0.0
        %v5299 = vmax.f32 %v4659, 0.0
        %v5300 = vmax.f32 %v4664, 0.0
        %v5301 = vmax.f32 %v4667, 0.0
        %v5302 = vmax.f32 %v4672, 0.0
        %v5303 = vmax.f32 %v4675, 0.0
        %v5304 = vmax.f32 %v4680, 0.0
        %v5305 = vmax.f32 %v4683, 0.0
        %v5306 = vmax.f32 %v4688, 0.0
        %v5307 = vmax.f32 %v4691, 0.0
        %v5308 = vmax.f32 %v4696, 0.0
        %v5309 = vmax.f32 %v4699, 0.0
        %v5310 = vmax.f32 %v4704, 0.0
        %v5311 = vmax.f32 %v4707, 0.0
        %v5312 = vmax.f32 %v4712, 0.0
        %v5313 = vmax.f32 %v4715, 0.0
        %v5314 = vmax.f32 %v4720, 0.0
        %v5315 = vmax.f32 %v4723, 0.0
        %v5316 = vmax.f32 %v4728, 0.0
        %v5317 = vmax.f32 %v4731, 0.0
        %v5318 = vmax.f32 %v4736, 0.0
        %v5319 = vmax.f32 %v4739, 0.0
        %v5320 = vmax.f32 %v4744, 0.0
        %v5321 = vmax.f32 %v4747, 0.0
        %v5322 = vmax.f32 %v4752, 0.0
        %v5323 = vmax.f32 %v4755, 0.0
        %v5324 = vmax.f32 %v4760, 0.0
        %v5325 = vmax.f32 %v4763, 0.0
        %v5326 = vmax.f32 %v4768, 0.0
        %v5327 = vmax.f32 %v4771, 0.0
        %v5328 = vmax.f32 %v4776, 0.0
        %v5329 = vmax.f32 %v4779, 0.0
        %v5330 = vmax.f32 %v4784, 0.0
        %v5331 = vmax.f32 %v4787, 0.0
        %v5332 = vmax.f32 %v4792, 0.0
        %v5333 = vmax.f32 %v4795, 0.0
        %v5334 = vmax.f32 %v4800, 0.0
        %v5335 = vmax.f32 %v4803, 0.0
        %v5336 = vmax.f32 %v4808, 0.0
        %v5337 = vmax.f32 %v4811, 0.0
        %v5338 = vmax.f32 %v4816, 0.0
        %v5339 = vmax.f32 %v4819, 0.0
        %v5340 = vmax.f32 %v4824, 0.0
        %v5341 = vmax.f32 %v4827, 0.0
        %5342 = vst [vmem:[%s164] sm:$0xff] %v4830
        %5343 = vst [vmem:[%s164 + $0x8] sm:$0xff] %v4831
        %5344 = vst [vmem:[%s164 + $0x10] sm:$0xff] %v4832
        %5345 = vst [vmem:[%s164 + $0x18] sm:$0xff] %v4833
        %5346 = vst [vmem:[%s164 + $0x20] sm:$0xff] %v4834
        %5347 = vst [vmem:[%s164 + $0x28] sm:$0xff] %v4835
        %5348 = vst [vmem:[%s164 + $0x30] sm:$0xff] %v4836
        %5349 = vst [vmem:[%s164 + $0x38] sm:$0xff] %v4837
        %5350 = vst [vmem:[%s164 + $0x40] sm:$0xff] %v4838
        %5351 = vst [vmem:[%s164 + $0x48] sm:$0xff] %v4839
        %5352 = vst [vmem:[%s164 + $0x50] sm:$0xff] %v4840
        %5353 = vst [vmem:[%s164 + $0x58] sm:$0xff] %v4841
        %5354 = vst [vmem:[%s164 + $0x60] sm:$0xff] %v4842
        %5355 = vst [vmem:[%s164 + $0x68] sm:$0xff] %v4843
        %5356 = vst [vmem:[%s164 + $0x70] sm:$0xff] %v4844
        %5357 = vst [vmem:[%s164 + $0x78] sm:$0xff] %v4845
        %5358 = vst [vmem:[%s164 + $0x80] sm:$0xff] %v4846
        %5359 = vst [vmem:[%s164 + $0x88] sm:$0xff] %v4847
        %5360 = vst [vmem:[%s164 + $0x90] sm:$0xff] %v4848
        %5361 = vst [vmem:[%s164 + $0x98] sm:$0xff] %v4849
        %5362 = vst [vmem:[%s164 + $0xa0] sm:$0xff] %v4850
        %5363 = vst [vmem:[%s164 + $0xa8] sm:$0xff] %v4851
        %5364 = vst [vmem:[%s164 + $0xb0] sm:$0xff] %v4852
        %5365 = vst [vmem:[%s164 + $0xb8] sm:$0xff] %v4853
        %5366 = vst [vmem:[%s164 + $0xc0] sm:$0xff] %v4854
        %5367 = vst [vmem:[%s164 + $0xc8] sm:$0xff] %v4855
        %5368 = vst [vmem:[%s164 + $0xd0] sm:$0xff] %v4856
        %5369 = vst [vmem:[%s164 + $0xd8] sm:$0xff] %v4857
        %5370 = vst [vmem:[%s164 + $0xe0] sm:$0xff] %v4858
        %5371 = vst [vmem:[%s164 + $0xe8] sm:$0xff] %v4859
        %5372 = vst [vmem:[%s164 + $0xf0] sm:$0xff] %v4860
        %5373 = vst [vmem:[%s164 + $0xf8] sm:$0xff] %v4861
        %5374 = vst [vmem:[%s164 + $0x100] sm:$0xff] %v4862
        %5375 = vst [vmem:[%s164 + $0x108] sm:$0xff] %v4863
        %5376 = vst [vmem:[%s164 + $0x110] sm:$0xff] %v4864
        %5377 = vst [vmem:[%s164 + $0x118] sm:$0xff] %v4865
        %5378 = vst [vmem:[%s164 + $0x120] sm:$0xff] %v4866
        %5379 = vst [vmem:[%s164 + $0x128] sm:$0xff] %v4867
        %5380 = vst [vmem:[%s164 + $0x130] sm:$0xff] %v4868
        %5381 = vst [vmem:[%s164 + $0x138] sm:$0xff] %v4869
        %5382 = vst [vmem:[%s164 + $0x140] sm:$0xff] %v4870
        %5383 = vst [vmem:[%s164 + $0x148] sm:$0xff] %v4871
        %5384 = vst [vmem:[%s164 + $0x150] sm:$0xff] %v4872
        %5385 = vst [vmem:[%s164 + $0x158] sm:$0xff] %v4873
        %5386 = vst [vmem:[%s164 + $0x160] sm:$0xff] %v4874
        %5387 = vst [vmem:[%s164 + $0x168] sm:$0xff] %v4875
        %5388 = vst [vmem:[%s164 + $0x170] sm:$0xff] %v4876
        %5389 = vst [vmem:[%s164 + $0x178] sm:$0xff] %v4877
        %5390 = vst [vmem:[%s164 + $0x180] sm:$0xff] %v4878
        %5391 = vst [vmem:[%s164 + $0x188] sm:$0xff] %v4879
        %5392 = vst [vmem:[%s164 + $0x190] sm:$0xff] %v4880
        %5393 = vst [vmem:[%s164 + $0x198] sm:$0xff] %v4881
        %5394 = vst [vmem:[%s164 + $0x1a0] sm:$0xff] %v4882
        %5395 = vst [vmem:[%s164 + $0x1a8] sm:$0xff] %v4883
        %5396 = vst [vmem:[%s164 + $0x1b0] sm:$0xff] %v4884
        %5397 = vst [vmem:[%s164 + $0x1b8] sm:$0xff] %v4885
        %5398 = vst [vmem:[%s164 + $0x1c0] sm:$0xff] %v4886
        %5399 = vst [vmem:[%s164 + $0x1c8] sm:$0xff] %v4887
        %5400 = vst [vmem:[%s164 + $0x1d0] sm:$0xff] %v4888
        %5401 = vst [vmem:[%s164 + $0x1d8] sm:$0xff] %v4889
        %5402 = vst [vmem:[%s164 + $0x1e0] sm:$0xff] %v4890
        %5403 = vst [vmem:[%s164 + $0x1e8] sm:$0xff] %v4891
        %5404 = vst [vmem:[%s164 + $0x1f0] sm:$0xff] %v4892
        %5405 = vst [vmem:[%s164 + $0x1f8] sm:$0xff] %v4893
        %5406 = vst [vmem:[%s164 + $0x200] sm:$0xff] %v4894
        %5407 = vst [vmem:[%s164 + $0x208] sm:$0xff] %v4895
        %5408 = vst [vmem:[%s164 + $0x210] sm:$0xff] %v4896
        %5409 = vst [vmem:[%s164 + $0x218] sm:$0xff] %v4897
        %5410 = vst [vmem:[%s164 + $0x220] sm:$0xff] %v4898
        %5411 = vst [vmem:[%s164 + $0x228] sm:$0xff] %v4899
        %5412 = vst [vmem:[%s164 + $0x230] sm:$0xff] %v4900
        %5413 = vst [vmem:[%s164 + $0x238] sm:$0xff] %v4901
        %5414 = vst [vmem:[%s164 + $0x240] sm:$0xff] %v4902
        %5415 = vst [vmem:[%s164 + $0x248] sm:$0xff] %v4903
        %5416 = vst [vmem:[%s164 + $0x250] sm:$0xff] %v4904
        %5417 = vst [vmem:[%s164 + $0x258] sm:$0xff] %v4905
        %5418 = vst [vmem:[%s164 + $0x260] sm:$0xff] %v4906
        %5419 = vst [vmem:[%s164 + $0x268] sm:$0xff] %v4907
        %5420 = vst [vmem:[%s164 + $0x270] sm:$0xff] %v4908
        %5421 = vst [vmem:[%s164 + $0x278] sm:$0xff] %v4909
        %5422 = vst [vmem:[%s164 + $0x280] sm:$0xff] %v4910
        %5423 = vst [vmem:[%s164 + $0x288] sm:$0xff] %v4911
        %5424 = vst [vmem:[%s164 + $0x290] sm:$0xff] %v4912
        %5425 = vst [vmem:[%s164 + $0x298] sm:$0xff] %v4913
        %5426 = vst [vmem:[%s164 + $0x2a0] sm:$0xff] %v4914
        %5427 = vst [vmem:[%s164 + $0x2a8] sm:$0xff] %v4915
        %5428 = vst [vmem:[%s164 + $0x2b0] sm:$0xff] %v4916
        %5429 = vst [vmem:[%s164 + $0x2b8] sm:$0xff] %v4917
        %5430 = vst [vmem:[%s164 + $0x2c0] sm:$0xff] %v4918
        %5431 = vst [vmem:[%s164 + $0x2c8] sm:$0xff] %v4919
        %5432 = vst [vmem:[%s164 + $0x2d0] sm:$0xff] %v4920
        %5433 = vst [vmem:[%s164 + $0x2d8] sm:$0xff] %v4921
        %5434 = vst [vmem:[%s164 + $0x2e0] sm:$0xff] %v4922
        %5435 = vst [vmem:[%s164 + $0x2e8] sm:$0xff] %v4923
        %5436 = vst [vmem:[%s164 + $0x2f0] sm:$0xff] %v4924
        %5437 = vst [vmem:[%s164 + $0x2f8] sm:$0xff] %v4925
        %5438 = vst [vmem:[%s164 + $0x300] sm:$0xff] %v4926
        %5439 = vst [vmem:[%s164 + $0x308] sm:$0xff] %v4927
        %5440 = vst [vmem:[%s164 + $0x310] sm:$0xff] %v4928
        %5441 = vst [vmem:[%s164 + $0x318] sm:$0xff] %v4929
        %5442 = vst [vmem:[%s164 + $0x320] sm:$0xff] %v4930
        %5443 = vst [vmem:[%s164 + $0x328] sm:$0xff] %v4931
        %5444 = vst [vmem:[%s164 + $0x330] sm:$0xff] %v4932
        %5445 = vst [vmem:[%s164 + $0x338] sm:$0xff] %v4933
        %5446 = vst [vmem:[%s164 + $0x340] sm:$0xff] %v4934
        %5447 = vst [vmem:[%s164 + $0x348] sm:$0xff] %v4935
        %5448 = vst [vmem:[%s164 + $0x350] sm:$0xff] %v4936
        %5449 = vst [vmem:[%s164 + $0x358] sm:$0xff] %v4937
        %5450 = vst [vmem:[%s164 + $0x360] sm:$0xff] %v4938
        %5451 = vst [vmem:[%s164 + $0x368] sm:$0xff] %v4939
        %5452 = vst [vmem:[%s164 + $0x370] sm:$0xff] %v4940
        %5453 = vst [vmem:[%s164 + $0x378] sm:$0xff] %v4941
        %5454 = vst [vmem:[%s164 + $0x380] sm:$0xff] %v4942
        %5455 = vst [vmem:[%s164 + $0x388] sm:$0xff] %v4943
        %5456 = vst [vmem:[%s164 + $0x390] sm:$0xff] %v4944
        %5457 = vst [vmem:[%s164 + $0x398] sm:$0xff] %v4945
        %5458 = vst [vmem:[%s164 + $0x3a0] sm:$0xff] %v4946
        %5459 = vst [vmem:[%s164 + $0x3a8] sm:$0xff] %v4947
        %5460 = vst [vmem:[%s164 + $0x3b0] sm:$0xff] %v4948
        %5461 = vst [vmem:[%s164 + $0x3b8] sm:$0xff] %v4949
        %5462 = vst [vmem:[%s164 + $0x3c0] sm:$0xff] %v4950
        %5463 = vst [vmem:[%s164 + $0x3c8] sm:$0xff] %v4951
        %5464 = vst [vmem:[%s164 + $0x3d0] sm:$0xff] %v4952
        %5465 = vst [vmem:[%s164 + $0x3d8] sm:$0xff] %v4953
        %5466 = vst [vmem:[%s164 + $0x3e0] sm:$0xff] %v4954
        %5467 = vst [vmem:[%s164 + $0x3e8] sm:$0xff] %v4955
        %5468 = vst [vmem:[%s164 + $0x3f0] sm:$0xff] %v4956
        %5469 = vst [vmem:[%s164 + $0x3f8] sm:$0xff] %v4957
        %5470 = vst [vmem:[%s164 + $0x400] sm:$0xff] %v4958
        %5471 = vst [vmem:[%s164 + $0x408] sm:$0xff] %v4959
        %5472 = vst [vmem:[%s164 + $0x410] sm:$0xff] %v4960
        %5473 = vst [vmem:[%s164 + $0x418] sm:$0xff] %v4961
        %5474 = vst [vmem:[%s164 + $0x420] sm:$0xff] %v4962
        %5475 = vst [vmem:[%s164 + $0x428] sm:$0xff] %v4963
        %5476 = vst [vmem:[%s164 + $0x430] sm:$0xff] %v4964
        %5477 = vst [vmem:[%s164 + $0x438] sm:$0xff] %v4965
        %5478 = vst [vmem:[%s164 + $0x440] sm:$0xff] %v4966
        %5479 = vst [vmem:[%s164 + $0x448] sm:$0xff] %v4967
        %5480 = vst [vmem:[%s164 + $0x450] sm:$0xff] %v4968
        %5481 = vst [vmem:[%s164 + $0x458] sm:$0xff] %v4969
        %5482 = vst [vmem:[%s164 + $0x460] sm:$0xff] %v4970
        %5483 = vst [vmem:[%s164 + $0x468] sm:$0xff] %v4971
        %5484 = vst [vmem:[%s164 + $0x470] sm:$0xff] %v4972
        %5485 = vst [vmem:[%s164 + $0x478] sm:$0xff] %v4973
        %5486 = vst [vmem:[%s164 + $0x480] sm:$0xff] %v4974
        %5487 = vst [vmem:[%s164 + $0x488] sm:$0xff] %v4975
        %5488 = vst [vmem:[%s164 + $0x490] sm:$0xff] %v4976
        %5489 = vst [vmem:[%s164 + $0x498] sm:$0xff] %v4977
        %5490 = vst [vmem:[%s164 + $0x4a0] sm:$0xff] %v4978
        %5491 = vst [vmem:[%s164 + $0x4a8] sm:$0xff] %v4979
        %5492 = vst [vmem:[%s164 + $0x4b0] sm:$0xff] %v4980
        %5493 = vst [vmem:[%s164 + $0x4b8] sm:$0xff] %v4981
        %5494 = vst [vmem:[%s164 + $0x4c0] sm:$0xff] %v4982
        %5495 = vst [vmem:[%s164 + $0x4c8] sm:$0xff] %v4983
        %5496 = vst [vmem:[%s164 + $0x4d0] sm:$0xff] %v4984
        %5497 = vst [vmem:[%s164 + $0x4d8] sm:$0xff] %v4985
        %5498 = vst [vmem:[%s164 + $0x4e0] sm:$0xff] %v4986
        %5499 = vst [vmem:[%s164 + $0x4e8] sm:$0xff] %v4987
        %5500 = vst [vmem:[%s164 + $0x4f0] sm:$0xff] %v4988
        %5501 = vst [vmem:[%s164 + $0x4f8] sm:$0xff] %v4989
        %5502 = vst [vmem:[%s164 + $0x500] sm:$0xff] %v4990
        %5503 = vst [vmem:[%s164 + $0x508] sm:$0xff] %v4991
        %5504 = vst [vmem:[%s164 + $0x510] sm:$0xff] %v4992
        %5505 = vst [vmem:[%s164 + $0x518] sm:$0xff] %v4993
        %5506 = vst [vmem:[%s164 + $0x520] sm:$0xff] %v4994
        %5507 = vst [vmem:[%s164 + $0x528] sm:$0xff] %v4995
        %5508 = vst [vmem:[%s164 + $0x530] sm:$0xff] %v4996
        %5509 = vst [vmem:[%s164 + $0x538] sm:$0xff] %v4997
        %5510 = vst [vmem:[%s164 + $0x540] sm:$0xff] %v4998
        %5511 = vst [vmem:[%s164 + $0x548] sm:$0xff] %v4999
        %5512 = vst [vmem:[%s164 + $0x550] sm:$0xff] %v5000
        %5513 = vst [vmem:[%s164 + $0x558] sm:$0xff] %v5001
        %5514 = vst [vmem:[%s164 + $0x560] sm:$0xff] %v5002
        %5515 = vst [vmem:[%s164 + $0x568] sm:$0xff] %v5003
        %5516 = vst [vmem:[%s164 + $0x570] sm:$0xff] %v5004
        %5517 = vst [vmem:[%s164 + $0x578] sm:$0xff] %v5005
        %5518 = vst [vmem:[%s164 + $0x580] sm:$0xff] %v5006
        %5519 = vst [vmem:[%s164 + $0x588] sm:$0xff] %v5007
        %5520 = vst [vmem:[%s164 + $0x590] sm:$0xff] %v5008
        %5521 = vst [vmem:[%s164 + $0x598] sm:$0xff] %v5009
        %5522 = vst [vmem:[%s164 + $0x5a0] sm:$0xff] %v5010
        %5523 = vst [vmem:[%s164 + $0x5a8] sm:$0xff] %v5011
        %5524 = vst [vmem:[%s164 + $0x5b0] sm:$0xff] %v5012
        %5525 = vst [vmem:[%s164 + $0x5b8] sm:$0xff] %v5013
        %5526 = vst [vmem:[%s164 + $0x5c0] sm:$0xff] %v5014
        %5527 = vst [vmem:[%s164 + $0x5c8] sm:$0xff] %v5015
        %5528 = vst [vmem:[%s164 + $0x5d0] sm:$0xff] %v5016
        %5529 = vst [vmem:[%s164 + $0x5d8] sm:$0xff] %v5017
        %5530 = vst [vmem:[%s164 + $0x5e0] sm:$0xff] %v5018
        %5531 = vst [vmem:[%s164 + $0x5e8] sm:$0xff] %v5019
        %5532 = vst [vmem:[%s164 + $0x5f0] sm:$0xff] %v5020
        %5533 = vst [vmem:[%s164 + $0x5f8] sm:$0xff] %v5021
        %5534 = vst [vmem:[%s164 + $0x600] sm:$0xff] %v5022
        %5535 = vst [vmem:[%s164 + $0x608] sm:$0xff] %v5023
        %5536 = vst [vmem:[%s164 + $0x610] sm:$0xff] %v5024
        %5537 = vst [vmem:[%s164 + $0x618] sm:$0xff] %v5025
        %5538 = vst [vmem:[%s164 + $0x620] sm:$0xff] %v5026
        %5539 = vst [vmem:[%s164 + $0x628] sm:$0xff] %v5027
        %5540 = vst [vmem:[%s164 + $0x630] sm:$0xff] %v5028
        %5541 = vst [vmem:[%s164 + $0x638] sm:$0xff] %v5029
        %5542 = vst [vmem:[%s164 + $0x640] sm:$0xff] %v5030
        %5543 = vst [vmem:[%s164 + $0x648] sm:$0xff] %v5031
        %5544 = vst [vmem:[%s164 + $0x650] sm:$0xff] %v5032
        %5545 = vst [vmem:[%s164 + $0x658] sm:$0xff] %v5033
        %5546 = vst [vmem:[%s164 + $0x660] sm:$0xff] %v5034
        %5547 = vst [vmem:[%s164 + $0x668] sm:$0xff] %v5035
        %5548 = vst [vmem:[%s164 + $0x670] sm:$0xff] %v5036
        %5549 = vst [vmem:[%s164 + $0x678] sm:$0xff] %v5037
        %5550 = vst [vmem:[%s164 + $0x680] sm:$0xff] %v5038
        %5551 = vst [vmem:[%s164 + $0x688] sm:$0xff] %v5039
        %5552 = vst [vmem:[%s164 + $0x690] sm:$0xff] %v5040
        %5553 = vst [vmem:[%s164 + $0x698] sm:$0xff] %v5041
        %5554 = vst [vmem:[%s164 + $0x6a0] sm:$0xff] %v5042
        %5555 = vst [vmem:[%s164 + $0x6a8] sm:$0xff] %v5043
        %5556 = vst [vmem:[%s164 + $0x6b0] sm:$0xff] %v5044
        %5557 = vst [vmem:[%s164 + $0x6b8] sm:$0xff] %v5045
        %5558 = vst [vmem:[%s164 + $0x6c0] sm:$0xff] %v5046
        %5559 = vst [vmem:[%s164 + $0x6c8] sm:$0xff] %v5047
        %5560 = vst [vmem:[%s164 + $0x6d0] sm:$0xff] %v5048
        %5561 = vst [vmem:[%s164 + $0x6d8] sm:$0xff] %v5049
        %5562 = vst [vmem:[%s164 + $0x6e0] sm:$0xff] %v5050
        %5563 = vst [vmem:[%s164 + $0x6e8] sm:$0xff] %v5051
        %5564 = vst [vmem:[%s164 + $0x6f0] sm:$0xff] %v5052
        %5565 = vst [vmem:[%s164 + $0x6f8] sm:$0xff] %v5053
        %5566 = vst [vmem:[%s164 + $0x700] sm:$0xff] %v5054
        %5567 = vst [vmem:[%s164 + $0x708] sm:$0xff] %v5055
        %5568 = vst [vmem:[%s164 + $0x710] sm:$0xff] %v5056
        %5569 = vst [vmem:[%s164 + $0x718] sm:$0xff] %v5057
        %5570 = vst [vmem:[%s164 + $0x720] sm:$0xff] %v5058
        %5571 = vst [vmem:[%s164 + $0x728] sm:$0xff] %v5059
        %5572 = vst [vmem:[%s164 + $0x730] sm:$0xff] %v5060
        %5573 = vst [vmem:[%s164 + $0x738] sm:$0xff] %v5061
        %5574 = vst [vmem:[%s164 + $0x740] sm:$0xff] %v5062
        %5575 = vst [vmem:[%s164 + $0x748] sm:$0xff] %v5063
        %5576 = vst [vmem:[%s164 + $0x750] sm:$0xff] %v5064
        %5577 = vst [vmem:[%s164 + $0x758] sm:$0xff] %v5065
        %5578 = vst [vmem:[%s164 + $0x760] sm:$0xff] %v5066
        %5579 = vst [vmem:[%s164 + $0x768] sm:$0xff] %v5067
        %5580 = vst [vmem:[%s164 + $0x770] sm:$0xff] %v5068
        %5581 = vst [vmem:[%s164 + $0x778] sm:$0xff] %v5069
        %5582 = vst [vmem:[%s164 + $0x780] sm:$0xff] %v5070
        %5583 = vst [vmem:[%s164 + $0x788] sm:$0xff] %v5071
        %5584 = vst [vmem:[%s164 + $0x790] sm:$0xff] %v5072
        %5585 = vst [vmem:[%s164 + $0x798] sm:$0xff] %v5073
        %5586 = vst [vmem:[%s164 + $0x7a0] sm:$0xff] %v5074
        %5587 = vst [vmem:[%s164 + $0x7a8] sm:$0xff] %v5075
        %5588 = vst [vmem:[%s164 + $0x7b0] sm:$0xff] %v5076
        %5589 = vst [vmem:[%s164 + $0x7b8] sm:$0xff] %v5077
        %5590 = vst [vmem:[%s164 + $0x7c0] sm:$0xff] %v5078
        %5591 = vst [vmem:[%s164 + $0x7c8] sm:$0xff] %v5079
        %5592 = vst [vmem:[%s164 + $0x7d0] sm:$0xff] %v5080
        %5593 = vst [vmem:[%s164 + $0x7d8] sm:$0xff] %v5081
        %5594 = vst [vmem:[%s164 + $0x7e0] sm:$0xff] %v5082
        %5595 = vst [vmem:[%s164 + $0x7e8] sm:$0xff] %v5083
        %5596 = vst [vmem:[%s164 + $0x7f0] sm:$0xff] %v5084
        %5597 = vst [vmem:[%s164 + $0x7f8] sm:$0xff] %v5085
        %5598 = vst [vmem:[%s164 + $0x800] sm:$0xff] %v5086
        %5599 = vst [vmem:[%s164 + $0x808] sm:$0xff] %v5087
        %5600 = vst [vmem:[%s164 + $0x810] sm:$0xff] %v5088
        %5601 = vst [vmem:[%s164 + $0x818] sm:$0xff] %v5089
        %5602 = vst [vmem:[%s164 + $0x820] sm:$0xff] %v5090
        %5603 = vst [vmem:[%s164 + $0x828] sm:$0xff] %v5091
        %5604 = vst [vmem:[%s164 + $0x830] sm:$0xff] %v5092
        %5605 = vst [vmem:[%s164 + $0x838] sm:$0xff] %v5093
        %5606 = vst [vmem:[%s164 + $0x840] sm:$0xff] %v5094
        %5607 = vst [vmem:[%s164 + $0x848] sm:$0xff] %v5095
        %5608 = vst [vmem:[%s164 + $0x850] sm:$0xff] %v5096
        %5609 = vst [vmem:[%s164 + $0x858] sm:$0xff] %v5097
        %5610 = vst [vmem:[%s164 + $0x860] sm:$0xff] %v5098
        %5611 = vst [vmem:[%s164 + $0x868] sm:$0xff] %v5099
        %5612 = vst [vmem:[%s164 + $0x870] sm:$0xff] %v5100
        %5613 = vst [vmem:[%s164 + $0x878] sm:$0xff] %v5101
        %5614 = vst [vmem:[%s164 + $0x880] sm:$0xff] %v5102
        %5615 = vst [vmem:[%s164 + $0x888] sm:$0xff] %v5103
        %5616 = vst [vmem:[%s164 + $0x890] sm:$0xff] %v5104
        %5617 = vst [vmem:[%s164 + $0x898] sm:$0xff] %v5105
        %5618 = vst [vmem:[%s164 + $0x8a0] sm:$0xff] %v5106
        %5619 = vst [vmem:[%s164 + $0x8a8] sm:$0xff] %v5107
        %5620 = vst [vmem:[%s164 + $0x8b0] sm:$0xff] %v5108
        %5621 = vst [vmem:[%s164 + $0x8b8] sm:$0xff] %v5109
        %5622 = vst [vmem:[%s164 + $0x8c0] sm:$0xff] %v5110
        %5623 = vst [vmem:[%s164 + $0x8c8] sm:$0xff] %v5111
        %5624 = vst [vmem:[%s164 + $0x8d0] sm:$0xff] %v5112
        %5625 = vst [vmem:[%s164 + $0x8d8] sm:$0xff] %v5113
        %5626 = vst [vmem:[%s164 + $0x8e0] sm:$0xff] %v5114
        %5627 = vst [vmem:[%s164 + $0x8e8] sm:$0xff] %v5115
        %5628 = vst [vmem:[%s164 + $0x8f0] sm:$0xff] %v5116
        %5629 = vst [vmem:[%s164 + $0x8f8] sm:$0xff] %v5117
        %5630 = vst [vmem:[%s164 + $0x900] sm:$0xff] %v5118
        %5631 = vst [vmem:[%s164 + $0x908] sm:$0xff] %v5119
        %5632 = vst [vmem:[%s164 + $0x910] sm:$0xff] %v5120
        %5633 = vst [vmem:[%s164 + $0x918] sm:$0xff] %v5121
        %5634 = vst [vmem:[%s164 + $0x920] sm:$0xff] %v5122
        %5635 = vst [vmem:[%s164 + $0x928] sm:$0xff] %v5123
        %5636 = vst [vmem:[%s164 + $0x930] sm:$0xff] %v5124
        %5637 = vst [vmem:[%s164 + $0x938] sm:$0xff] %v5125
        %5638 = vst [vmem:[%s164 + $0x940] sm:$0xff] %v5126
        %5639 = vst [vmem:[%s164 + $0x948] sm:$0xff] %v5127
        %5640 = vst [vmem:[%s164 + $0x950] sm:$0xff] %v5128
        %5641 = vst [vmem:[%s164 + $0x958] sm:$0xff] %v5129
        %5642 = vst [vmem:[%s164 + $0x960] sm:$0xff] %v5130
        %5643 = vst [vmem:[%s164 + $0x968] sm:$0xff] %v5131
        %5644 = vst [vmem:[%s164 + $0x970] sm:$0xff] %v5132
        %5645 = vst [vmem:[%s164 + $0x978] sm:$0xff] %v5133
        %5646 = vst [vmem:[%s164 + $0x980] sm:$0xff] %v5134
        %5647 = vst [vmem:[%s164 + $0x988] sm:$0xff] %v5135
        %5648 = vst [vmem:[%s164 + $0x990] sm:$0xff] %v5136
        %5649 = vst [vmem:[%s164 + $0x998] sm:$0xff] %v5137
        %5650 = vst [vmem:[%s164 + $0x9a0] sm:$0xff] %v5138
        %5651 = vst [vmem:[%s164 + $0x9a8] sm:$0xff] %v5139
        %5652 = vst [vmem:[%s164 + $0x9b0] sm:$0xff] %v5140
        %5653 = vst [vmem:[%s164 + $0x9b8] sm:$0xff] %v5141
        %5654 = vst [vmem:[%s164 + $0x9c0] sm:$0xff] %v5142
        %5655 = vst [vmem:[%s164 + $0x9c8] sm:$0xff] %v5143
        %5656 = vst [vmem:[%s164 + $0x9d0] sm:$0xff] %v5144
        %5657 = vst [vmem:[%s164 + $0x9d8] sm:$0xff] %v5145
        %5658 = vst [vmem:[%s164 + $0x9e0] sm:$0xff] %v5146
        %5659 = vst [vmem:[%s164 + $0x9e8] sm:$0xff] %v5147
        %5660 = vst [vmem:[%s164 + $0x9f0] sm:$0xff] %v5148
        %5661 = vst [vmem:[%s164 + $0x9f8] sm:$0xff] %v5149
        %5662 = vst [vmem:[%s164 + $0xa00] sm:$0xff] %v5150
        %5663 = vst [vmem:[%s164 + $0xa08] sm:$0xff] %v5151
        %5664 = vst [vmem:[%s164 + $0xa10] sm:$0xff] %v5152
        %5665 = vst [vmem:[%s164 + $0xa18] sm:$0xff] %v5153
        %5666 = vst [vmem:[%s164 + $0xa20] sm:$0xff] %v5154
        %5667 = vst [vmem:[%s164 + $0xa28] sm:$0xff] %v5155
        %5668 = vst [vmem:[%s164 + $0xa30] sm:$0xff] %v5156
        %5669 = vst [vmem:[%s164 + $0xa38] sm:$0xff] %v5157
        %5670 = vst [vmem:[%s164 + $0xa40] sm:$0xff] %v5158
        %5671 = vst [vmem:[%s164 + $0xa48] sm:$0xff] %v5159
        %5672 = vst [vmem:[%s164 + $0xa50] sm:$0xff] %v5160
        %5673 = vst [vmem:[%s164 + $0xa58] sm:$0xff] %v5161
        %5674 = vst [vmem:[%s164 + $0xa60] sm:$0xff] %v5162
        %5675 = vst [vmem:[%s164 + $0xa68] sm:$0xff] %v5163
        %5676 = vst [vmem:[%s164 + $0xa70] sm:$0xff] %v5164
        %5677 = vst [vmem:[%s164 + $0xa78] sm:$0xff] %v5165
        %5678 = vst [vmem:[%s164 + $0xa80] sm:$0xff] %v5166
        %5679 = vst [vmem:[%s164 + $0xa88] sm:$0xff] %v5167
        %5680 = vst [vmem:[%s164 + $0xa90] sm:$0xff] %v5168
        %5681 = vst [vmem:[%s164 + $0xa98] sm:$0xff] %v5169
        %5682 = vst [vmem:[%s164 + $0xaa0] sm:$0xff] %v5170
        %5683 = vst [vmem:[%s164 + $0xaa8] sm:$0xff] %v5171
        %5684 = vst [vmem:[%s164 + $0xab0] sm:$0xff] %v5172
        %5685 = vst [vmem:[%s164 + $0xab8] sm:$0xff] %v5173
        %5686 = vst [vmem:[%s164 + $0xac0] sm:$0xff] %v5174
        %5687 = vst [vmem:[%s164 + $0xac8] sm:$0xff] %v5175
        %5688 = vst [vmem:[%s164 + $0xad0] sm:$0xff] %v5176
        %5689 = vst [vmem:[%s164 + $0xad8] sm:$0xff] %v5177
        %5690 = vst [vmem:[%s164 + $0xae0] sm:$0xff] %v5178
        %5691 = vst [vmem:[%s164 + $0xae8] sm:$0xff] %v5179
        %5692 = vst [vmem:[%s164 + $0xaf0] sm:$0xff] %v5180
        %5693 = vst [vmem:[%s164 + $0xaf8] sm:$0xff] %v5181
        %5694 = vst [vmem:[%s164 + $0xb00] sm:$0xff] %v5182
        %5695 = vst [vmem:[%s164 + $0xb08] sm:$0xff] %v5183
        %5696 = vst [vmem:[%s164 + $0xb10] sm:$0xff] %v5184
        %5697 = vst [vmem:[%s164 + $0xb18] sm:$0xff] %v5185
        %5698 = vst [vmem:[%s164 + $0xb20] sm:$0xff] %v5186
        %5699 = vst [vmem:[%s164 + $0xb28] sm:$0xff] %v5187
        %5700 = vst [vmem:[%s164 + $0xb30] sm:$0xff] %v5188
        %5701 = vst [vmem:[%s164 + $0xb38] sm:$0xff] %v5189
        %5702 = vst [vmem:[%s164 + $0xb40] sm:$0xff] %v5190
        %5703 = vst [vmem:[%s164 + $0xb48] sm:$0xff] %v5191
        %5704 = vst [vmem:[%s164 + $0xb50] sm:$0xff] %v5192
        %5705 = vst [vmem:[%s164 + $0xb58] sm:$0xff] %v5193
        %5706 = vst [vmem:[%s164 + $0xb60] sm:$0xff] %v5194
        %5707 = vst [vmem:[%s164 + $0xb68] sm:$0xff] %v5195
        %5708 = vst [vmem:[%s164 + $0xb70] sm:$0xff] %v5196
        %5709 = vst [vmem:[%s164 + $0xb78] sm:$0xff] %v5197
        %5710 = vst [vmem:[%s164 + $0xb80] sm:$0xff] %v5198
        %5711 = vst [vmem:[%s164 + $0xb88] sm:$0xff] %v5199
        %5712 = vst [vmem:[%s164 + $0xb90] sm:$0xff] %v5200
        %5713 = vst [vmem:[%s164 + $0xb98] sm:$0xff] %v5201
        %5714 = vst [vmem:[%s164 + $0xba0] sm:$0xff] %v5202
        %5715 = vst [vmem:[%s164 + $0xba8] sm:$0xff] %v5203
        %5716 = vst [vmem:[%s164 + $0xbb0] sm:$0xff] %v5204
        %5717 = vst [vmem:[%s164 + $0xbb8] sm:$0xff] %v5205
        %5718 = vst [vmem:[%s164 + $0xbc0] sm:$0xff] %v5206
        %5719 = vst [vmem:[%s164 + $0xbc8] sm:$0xff] %v5207
        %5720 = vst [vmem:[%s164 + $0xbd0] sm:$0xff] %v5208
        %5721 = vst [vmem:[%s164 + $0xbd8] sm:$0xff] %v5209
        %5722 = vst [vmem:[%s164 + $0xbe0] sm:$0xff] %v5210
        %5723 = vst [vmem:[%s164 + $0xbe8] sm:$0xff] %v5211
        %5724 = vst [vmem:[%s164 + $0xbf0] sm:$0xff] %v5212
        %5725 = vst [vmem:[%s164 + $0xbf8] sm:$0xff] %v5213
        %5726 = vst [vmem:[%s164 + $0xc00] sm:$0xff] %v5214
        %5727 = vst [vmem:[%s164 + $0xc08] sm:$0xff] %v5215
        %5728 = vst [vmem:[%s164 + $0xc10] sm:$0xff] %v5216
        %5729 = vst [vmem:[%s164 + $0xc18] sm:$0xff] %v5217
        %5730 = vst [vmem:[%s164 + $0xc20] sm:$0xff] %v5218
        %5731 = vst [vmem:[%s164 + $0xc28] sm:$0xff] %v5219
        %5732 = vst [vmem:[%s164 + $0xc30] sm:$0xff] %v5220
        %5733 = vst [vmem:[%s164 + $0xc38] sm:$0xff] %v5221
        %5734 = vst [vmem:[%s164 + $0xc40] sm:$0xff] %v5222
        %5735 = vst [vmem:[%s164 + $0xc48] sm:$0xff] %v5223
        %5736 = vst [vmem:[%s164 + $0xc50] sm:$0xff] %v5224
        %5737 = vst [vmem:[%s164 + $0xc58] sm:$0xff] %v5225
        %5738 = vst [vmem:[%s164 + $0xc60] sm:$0xff] %v5226
        %5739 = vst [vmem:[%s164 + $0xc68] sm:$0xff] %v5227
        %5740 = vst [vmem:[%s164 + $0xc70] sm:$0xff] %v5228
        %5741 = vst [vmem:[%s164 + $0xc78] sm:$0xff] %v5229
        %5742 = vst [vmem:[%s164 + $0xc80] sm:$0xff] %v5230
        %5743 = vst [vmem:[%s164 + $0xc88] sm:$0xff] %v5231
        %5744 = vst [vmem:[%s164 + $0xc90] sm:$0xff] %v5232
        %5745 = vst [vmem:[%s164 + $0xc98] sm:$0xff] %v5233
        %5746 = vst [vmem:[%s164 + $0xca0] sm:$0xff] %v5234
        %5747 = vst [vmem:[%s164 + $0xca8] sm:$0xff] %v5235
        %5748 = vst [vmem:[%s164 + $0xcb0] sm:$0xff] %v5236
        %5749 = vst [vmem:[%s164 + $0xcb8] sm:$0xff] %v5237
        %5750 = vst [vmem:[%s164 + $0xcc0] sm:$0xff] %v5238
        %5751 = vst [vmem:[%s164 + $0xcc8] sm:$0xff] %v5239
        %5752 = vst [vmem:[%s164 + $0xcd0] sm:$0xff] %v5240
        %5753 = vst [vmem:[%s164 + $0xcd8] sm:$0xff] %v5241
        %5754 = vst [vmem:[%s164 + $0xce0] sm:$0xff] %v5242
        %5755 = vst [vmem:[%s164 + $0xce8] sm:$0xff] %v5243
        %5756 = vst [vmem:[%s164 + $0xcf0] sm:$0xff] %v5244
        %5757 = vst [vmem:[%s164 + $0xcf8] sm:$0xff] %v5245
        %5758 = vst [vmem:[%s164 + $0xd00] sm:$0xff] %v5246
        %5759 = vst [vmem:[%s164 + $0xd08] sm:$0xff] %v5247
        %5760 = vst [vmem:[%s164 + $0xd10] sm:$0xff] %v5248
        %5761 = vst [vmem:[%s164 + $0xd18] sm:$0xff] %v5249
        %5762 = vst [vmem:[%s164 + $0xd20] sm:$0xff] %v5250
        %5763 = vst [vmem:[%s164 + $0xd28] sm:$0xff] %v5251
        %5764 = vst [vmem:[%s164 + $0xd30] sm:$0xff] %v5252
        %5765 = vst [vmem:[%s164 + $0xd38] sm:$0xff] %v5253
        %5766 = vst [vmem:[%s164 + $0xd40] sm:$0xff] %v5254
        %5767 = vst [vmem:[%s164 + $0xd48] sm:$0xff] %v5255
        %5768 = vst [vmem:[%s164 + $0xd50] sm:$0xff] %v5256
        %5769 = vst [vmem:[%s164 + $0xd58] sm:$0xff] %v5257
        %5770 = vst [vmem:[%s164 + $0xd60] sm:$0xff] %v5258
        %5771 = vst [vmem:[%s164 + $0xd68] sm:$0xff] %v5259
        %5772 = vst [vmem:[%s164 + $0xd70] sm:$0xff] %v5260
        %5773 = vst [vmem:[%s164 + $0xd78] sm:$0xff] %v5261
        %5774 = vst [vmem:[%s164 + $0xd80] sm:$0xff] %v5262
        %5775 = vst [vmem:[%s164 + $0xd88] sm:$0xff] %v5263
        %5776 = vst [vmem:[%s164 + $0xd90] sm:$0xff] %v5264
        %5777 = vst [vmem:[%s164 + $0xd98] sm:$0xff] %v5265
        %5778 = vst [vmem:[%s164 + $0xda0] sm:$0xff] %v5266
        %5779 = vst [vmem:[%s164 + $0xda8] sm:$0xff] %v5267
        %5780 = vst [vmem:[%s164 + $0xdb0] sm:$0xff] %v5268
        %5781 = vst [vmem:[%s164 + $0xdb8] sm:$0xff] %v5269
        %5782 = vst [vmem:[%s164 + $0xdc0] sm:$0xff] %v5270
        %5783 = vst [vmem:[%s164 + $0xdc8] sm:$0xff] %v5271
        %5784 = vst [vmem:[%s164 + $0xdd0] sm:$0xff] %v5272
        %5785 = vst [vmem:[%s164 + $0xdd8] sm:$0xff] %v5273
        %5786 = vst [vmem:[%s164 + $0xde0] sm:$0xff] %v5274
        %5787 = vst [vmem:[%s164 + $0xde8] sm:$0xff] %v5275
        %5788 = vst [vmem:[%s164 + $0xdf0] sm:$0xff] %v5276
        %5789 = vst [vmem:[%s164 + $0xdf8] sm:$0xff] %v5277
        %5790 = vst [vmem:[%s164 + $0xe00] sm:$0xff] %v5278
        %5791 = vst [vmem:[%s164 + $0xe08] sm:$0xff] %v5279
        %5792 = vst [vmem:[%s164 + $0xe10] sm:$0xff] %v5280
        %5793 = vst [vmem:[%s164 + $0xe18] sm:$0xff] %v5281
        %5794 = vst [vmem:[%s164 + $0xe20] sm:$0xff] %v5282
        %5795 = vst [vmem:[%s164 + $0xe28] sm:$0xff] %v5283
        %5796 = vst [vmem:[%s164 + $0xe30] sm:$0xff] %v5284
        %5797 = vst [vmem:[%s164 + $0xe38] sm:$0xff] %v5285
        %5798 = vst [vmem:[%s164 + $0xe40] sm:$0xff] %v5286
        %5799 = vst [vmem:[%s164 + $0xe48] sm:$0xff] %v5287
        %5800 = vst [vmem:[%s164 + $0xe50] sm:$0xff] %v5288
        %5801 = vst [vmem:[%s164 + $0xe58] sm:$0xff] %v5289
        %5802 = vst [vmem:[%s164 + $0xe60] sm:$0xff] %v5290
        %5803 = vst [vmem:[%s164 + $0xe68] sm:$0xff] %v5291
        %5804 = vst [vmem:[%s164 + $0xe70] sm:$0xff] %v5292
        %5805 = vst [vmem:[%s164 + $0xe78] sm:$0xff] %v5293
        %5806 = vst [vmem:[%s164 + $0xe80] sm:$0xff] %v5294
        %5807 = vst [vmem:[%s164 + $0xe88] sm:$0xff] %v5295
        %5808 = vst [vmem:[%s164 + $0xe90] sm:$0xff] %v5296
        %5809 = vst [vmem:[%s164 + $0xe98] sm:$0xff] %v5297
        %5810 = vst [vmem:[%s164 + $0xea0] sm:$0xff] %v5298
        %5811 = vst [vmem:[%s164 + $0xea8] sm:$0xff] %v5299
        %5812 = vst [vmem:[%s164 + $0xeb0] sm:$0xff] %v5300
        %5813 = vst [vmem:[%s164 + $0xeb8] sm:$0xff] %v5301
        %5814 = vst [vmem:[%s164 + $0xec0] sm:$0xff] %v5302
        %5815 = vst [vmem:[%s164 + $0xec8] sm:$0xff] %v5303
        %5816 = vst [vmem:[%s164 + $0xed0] sm:$0xff] %v5304
        %5817 = vst [vmem:[%s164 + $0xed8] sm:$0xff] %v5305
        %5818 = vst [vmem:[%s164 + $0xee0] sm:$0xff] %v5306
        %5819 = vst [vmem:[%s164 + $0xee8] sm:$0xff] %v5307
        %5820 = vst [vmem:[%s164 + $0xef0] sm:$0xff] %v5308
        %5821 = vst [vmem:[%s164 + $0xef8] sm:$0xff] %v5309
        %5822 = vst [vmem:[%s164 + $0xf00] sm:$0xff] %v5310
        %5823 = vst [vmem:[%s164 + $0xf08] sm:$0xff] %v5311
        %5824 = vst [vmem:[%s164 + $0xf10] sm:$0xff] %v5312
        %5825 = vst [vmem:[%s164 + $0xf18] sm:$0xff] %v5313
        %5826 = vst [vmem:[%s164 + $0xf20] sm:$0xff] %v5314
        %5827 = vst [vmem:[%s164 + $0xf28] sm:$0xff] %v5315
        %5828 = vst [vmem:[%s164 + $0xf30] sm:$0xff] %v5316
        %5829 = vst [vmem:[%s164 + $0xf38] sm:$0xff] %v5317
        %5830 = vst [vmem:[%s164 + $0xf40] sm:$0xff] %v5318
        %5831 = vst [vmem:[%s164 + $0xf48] sm:$0xff] %v5319
        %5832 = vst [vmem:[%s164 + $0xf50] sm:$0xff] %v5320
        %5833 = vst [vmem:[%s164 + $0xf58] sm:$0xff] %v5321
        %5834 = vst [vmem:[%s164 + $0xf60] sm:$0xff] %v5322
        %5835 = vst [vmem:[%s164 + $0xf68] sm:$0xff] %v5323
        %5836 = vst [vmem:[%s164 + $0xf70] sm:$0xff] %v5324
        %5837 = vst [vmem:[%s164 + $0xf78] sm:$0xff] %v5325
        %5838 = vst [vmem:[%s164 + $0xf80] sm:$0xff] %v5326
        %5839 = vst [vmem:[%s164 + $0xf88] sm:$0xff] %v5327
        %5840 = vst [vmem:[%s164 + $0xf90] sm:$0xff] %v5328
        %5841 = vst [vmem:[%s164 + $0xf98] sm:$0xff] %v5329
        %5842 = vst [vmem:[%s164 + $0xfa0] sm:$0xff] %v5330
        %5843 = vst [vmem:[%s164 + $0xfa8] sm:$0xff] %v5331
        %5844 = vst [vmem:[%s164 + $0xfb0] sm:$0xff] %v5332
        %5845 = vst [vmem:[%s164 + $0xfb8] sm:$0xff] %v5333
        %5846 = vst [vmem:[%s164 + $0xfc0] sm:$0xff] %v5334
        %5847 = vst [vmem:[%s164 + $0xfc8] sm:$0xff] %v5335
        %5848 = vst [vmem:[%s164 + $0xfd0] sm:$0xff] %v5336
        %5849 = vst [vmem:[%s164 + $0xfd8] sm:$0xff] %v5337
        %5850 = vst [vmem:[%s164 + $0xfe0] sm:$0xff] %v5338
        %5851 = vst [vmem:[%s164 + $0xfe8] sm:$0xff] %v5339
        %5852 = vst [vmem:[%s164 + $0xff0] sm:$0xff] %v5340
        %5853 = vst [vmem:[%s164 + $0xff8] sm:$0xff] %v5341
        %s5854 = sand.u32 %s93, 1
        %s5855 = scalar_lea.sflag [#allocation3], %s5854
        %s5856 = sand.u32 %s93, 1
        %s5857 = smul.addr %s5856, 4096
        %s5858 = scalar_lea.vmem [#allocation2], %s5857
        // Predicated region
        $region33: #{conv2d.1} parent=31 // pred_check
          %p5859 = pneg %p103
        $region34: #{conv2d.1} parent=31 // pred_check_branch
          %5861 = sbr.rel (%p5859) target = $region36
        $region35: #{conv2d.1} parent=31 // pred_region
          %s5862 = smul.u32 512, %s17
          %s5864 = ssub.s32 65536, 65536
          %5865 = vsyncadd %s5855, %s5864
          %s5866 = smul.addr %s5862, 128
          %s5867 = scalar_lea.hbm %s3, %s5866
          %s5868 = sshll.u32 %s5858, 4
          %s5869 = int_to_ptr.vmem [resolvable:$true] %s5868
          %5874 = dma.vmem_to_hbm [thread:$0]  %s5869, 65536, %s5867, %s5855, 128, 128, 8
        $region36: #{conv2d.1} parent=31 // pred_fallthru
          _
      $region32: #{conv2d.1} parent=5 // pred_fallthru
        _
      %p5875 = scmp.le.s32.totalorder 2, %s12
      // Predicated region
      $region37: #{conv2d.1} parent=5 // pred_check
        %p5876 = pneg %p5875
      $region38: #{conv2d.1} parent=5 // pred_check_branch
        %5878 = sbr.rel (%p5876) target = $region40
      $region39: #{conv2d.1} parent=5 // pred_region
        %s5879 = ssub.s32 %s12, 2
        // Predicated region
        $region41: #{conv2d.1} parent=39 // pred_check
          %p5880 = pneg %p109
        $region42: #{conv2d.1} parent=39 // pred_check_branch
          %5882 = sbr.rel (%p5880) target = $region44
        $region43: #{conv2d.1} parent=39 // pred_region
          %s5883 = sand.u32 %s94, 1
          %s5884 = scalar_lea.sflag [#allocation3], %s5883
          %s5885 = sand.u32 %s94, 1
          %s5886 = smul.addr %s5885, 4096
          %s5887 = scalar_lea.vmem [#allocation2], %s5886
          %5888 = dma.done %s5884, 65536
        $region44: #{conv2d.1} parent=39 // pred_fallthru
          _
      $region40: #{conv2d.1} parent=5 // pred_fallthru
        _
    $region6: #{conv2d.1} parent=1 // loop_footer
      %s16 = sadd.s32 1, %s12
    $region7: #{conv2d.1} parent=1 // loop_footer_branch
      %11 = sbr.rel target = $region3
    $region8: #{conv2d.1} parent=1 // loop_exit
      _
    %5889 = vsyncpa [#allocation3], 1
    %s5890 = scalar_lea.sflag [#allocation3], 1
    %5891 = vsyncpa %s5890, 1

</llo_original>
